<compile_context>
chip_gen: v7x
topology: tpu7x:2x2x1
jax: 0.10.0
libtpu: 0.0.40
codegen_flags: <defaults>
</compile_context>

<pallas_src>
import functools

import jax
import jax.numpy as jnp
from jax.experimental import pallas as pl
from jax.experimental.pallas import tpu as pltpu


# --------------------------------------------------------------------------
# Fused ResidualBlock kernel: one grid step == one image of the batch.
#
# refs = (x, w_0, b_0, ..., w_{L-1}, b_{L-1}, [w_short^T], out,
#         pad_scratch_0, ..., pad_scratch_{L-1})
#   x            : (1, Cin, H*W)   channel-major (== NCHW-flat) image block
#   w_i (i<L-1)  : (k*k*in_chs[i], out_chs[i])   im2col-flattened HWIO
#   w_{L-1}      : (out_chs[-1], k*k*in_chs[-1]) pre-transposed (NT form)
#   b_i (i<L-1)  : (1, out_chs[i])
#   b_{L-1}      : (out_chs[-1], 1)
#   w_short^T    : (Cout, Cin)      only present when has_proj
#   out          : (1, Cout, H*W)   channel-major == NCHW-flat, lane dense
#   pad_scratch_i: VMEM (H+2p_i, W+2p_i, in_chs[i])
# --------------------------------------------------------------------------
def _resblock_kernel(*refs, H, W, ksizes, in_chs, out_chs, has_proj):
    L = len(ksizes)
    ref_iter = iter(refs)
    x_ref = next(ref_iter)
    wb_refs = [(next(ref_iter), next(ref_iter)) for _ in range(L)]
    sc_ref = next(ref_iter) if has_proj else None
    o_ref = next(ref_iter)
    pad_refs = [next(ref_iter) for _ in range(L)]

    x_cm = x_ref[0]                                  # (Cin, H*W) channel-major
    # Single tiny XLU transpose -> spatial-major view for the im2col path.
    # (Replaces a separate host-side XLA transpose op on HBM.)
    h = jnp.transpose(x_cm).reshape(H, W, in_chs[0])  # (H, W, Cin)

    main_t = None
    for i, ((w_ref, b_ref), pad_ref) in enumerate(zip(wb_refs, pad_refs)):
        K = ksizes[i]
        p = K // 2
        cin = in_chs[i]
        cout = out_chs[i]
        last = i == L - 1

        # "same" zero padding inside VMEM (no extra HBM copy in the wrapper).
        pad_ref[...] = jnp.zeros((H + 2 * p, W + 2 * p, cin), jnp.float32)
        pad_ref[p:p + H, p:p + W, :] = h

        # im2col: concatenate the K*K shifted windows on the channel axis and
        # run ONE MXU matmul with contraction depth K*K*cin (instead of K*K
        # tiny depth-cin matmuls -> far fewer MXU push/pop sequences).
        col = jnp.concatenate(
            [pad_ref[kh:kh + H, kw:kw + W, :].reshape(H * W, cin)
             for kh in range(K) for kw in range(K)],
            axis=1)                                  # (H*W, K*K*cin)

        if not last:
            y = jnp.dot(col, w_ref[...], preferred_element_type=jnp.float32)
            y = jnp.maximum(y + b_ref[...], 0.0)     # bias + inter-conv ReLU
            h = y.reshape(H, W, cout)                # spatial view for next pad
        else:
            # Last conv in NT form (both operands contract their minor dim):
            # weight was pre-transposed on the host to (Cout, K*K*cin), so the
            # result is channel-major (Cout, H*W) with no in-kernel transpose.
            main_t = jax.lax.dot_general(
                w_ref[...], col,
                dimension_numbers=(((1,), (1,)), ((), ())),
                preferred_element_type=jnp.float32) + b_ref[...]  # (Cout, H*W)

    if has_proj:
        # 1x1 shortcut conv: plain NN matmul on the channel-major input.
        short_t = jnp.dot(sc_ref[...], x_cm,
                          preferred_element_type=jnp.float32)     # (Cout, H*W)
    else:
        # Identity shortcut (Cin == Cout): plain VPU add, no extra operand.
        short_t = x_cm                                            # (Cout, H*W)

    # Channel-major, lane-dense store: minor dim H*W -> unmasked vector
    # stores, and the block is already NCHW-flat (wrapper reshape is free).
    o_ref[0] = jnp.maximum(main_t + short_t, 0.0)


def residual_block_forward(x_nchw, conv_weights, conv_biases, ksizes, w_short):
    """Fused ResidualBlock forward.  x_nchw: (N, Cin, H, W), weights HWIO."""
    N, Cin, H, W = x_nchw.shape
    L = len(conv_weights)
    out_chs = tuple(int(w.shape[-1]) for w in conv_weights)
    in_chs = (Cin,) + out_chs[:-1]
    Cout = out_chs[-1]
    has_proj = w_short is not None

    # NCHW-flat (channel-major) view of the input: a FREE reshape, no XLA
    # transpose op on HBM.  The kernel makes its own tiny spatial-major view.
    x_cm = x_nchw.reshape(N, Cin, H * W)

    operands = [x_cm]
    in_specs = [pl.BlockSpec((1, Cin, H * W), lambda i: (i, 0, 0))]
    for li, (w, b) in enumerate(zip(conv_weights, conv_biases)):
        wf = w.reshape(-1, w.shape[-1])              # (k*k*cin, cout)
        if li == L - 1:
            wf = wf.T                                # (cout, k*k*cin)  NT form
            bf = b.reshape(-1, 1)                    # (cout, 1)
        else:
            bf = b.reshape(1, -1)                    # (1, cout)
        operands += [wf, bf]
        in_specs += [pl.BlockSpec(wf.shape, lambda i: (0, 0)),
                     pl.BlockSpec(bf.shape, lambda i: (0, 0))]
    if has_proj:
        wst = w_short.T                              # (cout, cin)
        operands.append(wst)
        in_specs.append(pl.BlockSpec(wst.shape, lambda i: (0, 0)))

    scratch_shapes = [
        pltpu.VMEM((H + 2 * (k // 2), W + 2 * (k // 2), c), jnp.float32)
        for k, c in zip(ksizes, in_chs)
    ]

    kernel = functools.partial(
        _resblock_kernel, H=H, W=W, ksizes=tuple(int(k) for k in ksizes),
        in_chs=in_chs, out_chs=out_chs, has_proj=has_proj)

    out_cm = pl.pallas_call(
        kernel,
        out_shape=jax.ShapeDtypeStruct((N, Cout, H * W), jnp.float32),
        grid=(N,),
        in_specs=in_specs,
        out_specs=pl.BlockSpec((1, Cout, H * W), lambda i: (i, 0, 0)),
        scratch_shapes=scratch_shapes,
        compiler_params=pltpu.CompilerParams(
            dimension_semantics=("parallel",)),      # v7x: images across cores
    )(*operands)
    return out_cm.reshape(N, Cout, H, W)             # NCHW; free reshape


# --------------------------------------------------------------------------
# ResidualBlock wrapper (parameters initialized deterministically in-script)
# --------------------------------------------------------------------------
class ResidualBlockPallas:
    def __init__(self, in_channels, channels, kernel_sizes, key):
        assert channels and kernel_sizes
        assert len(channels) == len(kernel_sizes)
        assert all(k % 2 == 1 for k in kernel_sizes)
        self.ksizes = tuple(int(k) for k in kernel_sizes)
        self.weights, self.biases = [], []
        cin = in_channels
        for cout, k in zip(channels, kernel_sizes):
            key, wk, bk = jax.random.split(key, 3)
            fan_in = cin * k * k
            scale = (2.0 / fan_in) ** 0.5
            self.weights.append(
                scale * jax.random.normal(wk, (k, k, cin, cout), jnp.float32))
            self.biases.append(
                0.01 * jax.random.normal(bk, (cout,), jnp.float32))
            cin = cout
        if in_channels != channels[-1]:
            key, sk = jax.random.split(key)
            self.w_short = (1.0 / in_channels ** 0.5) * jax.random.normal(
                sk, (in_channels, channels[-1]), jnp.float32)
        else:
            self.w_short = None                      # identity shortcut

        ws, bs = list(self.weights), list(self.biases)
        kss, wsh = self.ksizes, self.w_short
        self._forward = jax.jit(
            lambda x: residual_block_forward(x, ws, bs, kss, wsh))

    def __call__(self, x_nchw):
        return self._forward(x_nchw)


# --------------------------------------------------------------------------
# Pure-JAX reference (correctness sanity check)
# --------------------------------------------------------------------------
def _reference(block, x_nchw):
    x = jnp.transpose(x_nchw, (0, 2, 3, 1))
    h = x
    n_convs = len(block.weights)
    for i, (w, b) in enumerate(zip(block.weights, block.biases)):
        h = jax.lax.conv_general_dilated(
            h, w, window_strides=(1, 1), padding="SAME",
            dimension_numbers=("NHWC", "HWIO", "NHWC")) + b
        if i < n_convs - 1:
            h = jnp.maximum(h, 0.0)
    if block.w_short is not None:
        shortcut = jnp.einsum("nhwc,cd->nhwd", x, block.w_short)
    else:
        shortcut = x
    out = jnp.maximum(h + shortcut, 0.0)
    return jnp.transpose(out, (0, 3, 1, 2))


if __name__ == "__main__":
    key = jax.random.PRNGKey(0)
    key, xkey, pkey, xkey2, pkey2 = jax.random.split(key, 5)

    # Small shapes consistent with the module: NCHW input.
    N, C_in, H, W = 2, 4, 16, 16
    channels = [8, 8]
    kernel_sizes = [3, 3]

    # --- projection-shortcut config (Cin != channels[-1]) ---
    x = jax.random.normal(xkey, (N, C_in, H, W), jnp.float32)
    block = ResidualBlockPallas(C_in, channels, kernel_sizes, pkey)
    out = jax.block_until_ready(block(x))
    ref = _reference(block, x)
    assert out.shape == (N, channels[-1], H, W)
    assert jnp.allclose(out, ref, atol=1e-4, rtol=1e-4), "mismatch (proj)"

    # --- identity-shortcut config (Cin == channels[-1]) ---
    x2 = jax.random.normal(xkey2, (N, channels[-1], H, W), jnp.float32)
    block2 = ResidualBlockPallas(channels[-1], channels, kernel_sizes, pkey2)
    out2 = jax.block_until_ready(block2(x2))
    ref2 = _reference(block2, x2)
    assert out2.shape == (N, channels[-1], H, W)
    assert jnp.allclose(out2, ref2, atol=1e-4, rtol=1e-4), "mismatch (identity)"

    print("KERNEL_OK")
</pallas_src>

<mosaic_0001>
module attributes {stable_mosaic.version = 11 : i64} {
  func.func @_resblock_kernel(%arg0: i32, %arg1: memref<1x4x256xf32, #tpu.memory_space<vmem>>, %arg2: memref<36x8xf32, #tpu.memory_space<vmem>>, %arg3: memref<1x8xf32, #tpu.memory_space<vmem>>, %arg4: memref<8x72xf32, #tpu.memory_space<vmem>>, %arg5: memref<8x1xf32, #tpu.memory_space<vmem>>, %arg6: memref<8x4xf32, #tpu.memory_space<vmem>>, %arg7: memref<1x8x256xf32, #tpu.memory_space<vmem>>, %arg8: memref<18x18x4xf32, #tpu.memory_space<vmem>>, %arg9: memref<18x18x8xf32, #tpu.memory_space<vmem>>) attributes {dimension_semantics = [#tpu.dimension_semantics<parallel>], iteration_bounds = array<i64: 2>, scalar_prefetch = 0 : i64, scratch_operands = 2 : i64, tpu.core_type = #tpu.core_type<tc>, window_params = [{transform_indices = @transform_0, window_bounds = array<i64: 1, 4, 256>}, {pipeline_mode = #tpu.pipeline_mode<synchronous>, transform_indices = @transform_1, window_bounds = array<i64: 36, 8>}, {pipeline_mode = #tpu.pipeline_mode<synchronous>, transform_indices = @transform_2, window_bounds = array<i64: 1, 8>}, {pipeline_mode = #tpu.pipeline_mode<synchronous>, transform_indices = @transform_3, window_bounds = array<i64: 8, 72>}, {pipeline_mode = #tpu.pipeline_mode<synchronous>, transform_indices = @transform_4, window_bounds = array<i64: 8, 1>}, {pipeline_mode = #tpu.pipeline_mode<synchronous>, transform_indices = @transform_5, window_bounds = array<i64: 8, 4>}, {transform_indices = @transform_6, window_bounds = array<i64: 1, 8, 256>}]} {
    %c0 = arith.constant 0 : index
    %c0_0 = arith.constant 0 : index
    %c0_1 = arith.constant 0 : index
    %0 = vector.load %arg1[%c0, %c0_0, %c0_1] : memref<1x4x256xf32, #tpu.memory_space<vmem>>, vector<1x4x256xf32>
    %1 = vector.shape_cast %0 : vector<1x4x256xf32> to vector<4x256xf32>
    %2 = tpu.transpose %1, [1, 0] : vector<4x256xf32> -> vector<256x4xf32>
    %3 = vector.shape_cast %2 : vector<256x4xf32> to vector<16x16x4xf32>
    %cst = arith.constant 0.000000e+00 : f32
    %4 = vector.broadcast %cst : f32 to vector<18x18x4xf32>
    %c0_2 = arith.constant 0 : index
    %c0_3 = arith.constant 0 : index
    %c0_4 = arith.constant 0 : index
    %5 = vector.load %arg8[%c0_2, %c0_3, %c0_4] : memref<18x18x4xf32, #tpu.memory_space<vmem>>, vector<18x18x4xf32>
    tpu.vector_store %arg8[%c0_2, %c0_3, %c0_4], %4 {strides = array<i32>} : memref<18x18x4xf32, #tpu.memory_space<vmem>>, vector<18x18x4xf32>,
    %c1 = arith.constant 1 : index
    %c1_5 = arith.constant 1 : index
    %c0_6 = arith.constant 0 : index
    %6 = vector.load %arg8[%c1, %c1_5, %c0_6] : memref<18x18x4xf32, #tpu.memory_space<vmem>>, vector<16x16x4xf32>
    tpu.vector_store %arg8[%c1, %c1_5, %c0_6], %3 {strides = array<i32>} : memref<18x18x4xf32, #tpu.memory_space<vmem>>, vector<16x16x4xf32>,
    %c0_7 = arith.constant 0 : index
    %c0_8 = arith.constant 0 : index
    %c0_9 = arith.constant 0 : index
    %7 = vector.load %arg8[%c0_7, %c0_8, %c0_9] : memref<18x18x4xf32, #tpu.memory_space<vmem>>, vector<16x16x4xf32>
    %8 = vector.shape_cast %7 : vector<16x16x4xf32> to vector<256x4xf32>
    %c0_10 = arith.constant 0 : index
    %c1_11 = arith.constant 1 : index
    %c0_12 = arith.constant 0 : index
    %9 = vector.load %arg8[%c0_10, %c1_11, %c0_12] : memref<18x18x4xf32, #tpu.memory_space<vmem>>, vector<16x16x4xf32>
    %10 = vector.shape_cast %9 : vector<16x16x4xf32> to vector<256x4xf32>
    %c0_13 = arith.constant 0 : index
    %c2 = arith.constant 2 : index
    %c0_14 = arith.constant 0 : index
    %11 = vector.load %arg8[%c0_13, %c2, %c0_14] : memref<18x18x4xf32, #tpu.memory_space<vmem>>, vector<16x16x4xf32>
    %12 = vector.shape_cast %11 : vector<16x16x4xf32> to vector<256x4xf32>
    %c1_15 = arith.constant 1 : index
    %c0_16 = arith.constant 0 : index
    %c0_17 = arith.constant 0 : index
    %13 = vector.load %arg8[%c1_15, %c0_16, %c0_17] : memref<18x18x4xf32, #tpu.memory_space<vmem>>, vector<16x16x4xf32>
    %14 = vector.shape_cast %13 : vector<16x16x4xf32> to vector<256x4xf32>
    %c1_18 = arith.constant 1 : index
    %c1_19 = arith.constant 1 : index
    %c0_20 = arith.constant 0 : index
    %15 = vector.load %arg8[%c1_18, %c1_19, %c0_20] : memref<18x18x4xf32, #tpu.memory_space<vmem>>, vector<16x16x4xf32>
    %16 = vector.shape_cast %15 : vector<16x16x4xf32> to vector<256x4xf32>
    %c1_21 = arith.constant 1 : index
    %c2_22 = arith.constant 2 : index
    %c0_23 = arith.constant 0 : index
    %17 = vector.load %arg8[%c1_21, %c2_22, %c0_23] : memref<18x18x4xf32, #tpu.memory_space<vmem>>, vector<16x16x4xf32>
    %18 = vector.shape_cast %17 : vector<16x16x4xf32> to vector<256x4xf32>
    %c2_24 = arith.constant 2 : index
    %c0_25 = arith.constant 0 : index
    %c0_26 = arith.constant 0 : index
    %19 = vector.load %arg8[%c2_24, %c0_25, %c0_26] : memref<18x18x4xf32, #tpu.memory_space<vmem>>, vector<16x16x4xf32>
    %20 = vector.shape_cast %19 : vector<16x16x4xf32> to vector<256x4xf32>
    %c2_27 = arith.constant 2 : index
    %c1_28 = arith.constant 1 : index
    %c0_29 = arith.constant 0 : index
    %21 = vector.load %arg8[%c2_27, %c1_28, %c0_29] : memref<18x18x4xf32, #tpu.memory_space<vmem>>, vector<16x16x4xf32>
    %22 = vector.shape_cast %21 : vector<16x16x4xf32> to vector<256x4xf32>
    %c2_30 = arith.constant 2 : index
    %c2_31 = arith.constant 2 : index
    %c0_32 = arith.constant 0 : index
    %23 = vector.load %arg8[%c2_30, %c2_31, %c0_32] : memref<18x18x4xf32, #tpu.memory_space<vmem>>, vector<16x16x4xf32>
    %24 = vector.shape_cast %23 : vector<16x16x4xf32> to vector<256x4xf32>
    %25 = tpu.concatenate %8, %10, %12, %14, %16, %18, %20, %22, %24 in 1 : vector<256x4xf32>, vector<256x4xf32>, vector<256x4xf32>, vector<256x4xf32>, vector<256x4xf32>, vector<256x4xf32>, vector<256x4xf32>, vector<256x4xf32>, vector<256x4xf32> -> vector<256x36xf32>
    %c0_33 = arith.constant 0 : index
    %c0_34 = arith.constant 0 : index
    %26 = vector.load %arg2[%c0_33, %c0_34] : memref<36x8xf32, #tpu.memory_space<vmem>>, vector<36x8xf32>
    %cst_35 = arith.constant dense<0.000000e+00> : vector<256x8xf32>
    %27 = tpu.matmul %25, %26, %cst_35 {dimension_numbers = #tpu.dot_dimension_numbers<[1], [0], [0], [1], [0, 0, 1, 1], [], []>} : vector<256x36xf32>, vector<36x8xf32>, vector<256x8xf32> -> vector<256x8xf32>
    %c0_36 = arith.constant 0 : index
    %c0_37 = arith.constant 0 : index
    %28 = vector.load %arg3[%c0_36, %c0_37] : memref<1x8xf32, #tpu.memory_space<vmem>>, vector<1x8xf32>
    %29 = vector.broadcast %28 : vector<1x8xf32> to vector<256x8xf32>
    %30 = arith.addf %27, %29 : vector<256x8xf32>
    %cst_38 = arith.constant 0.000000e+00 : f32
    %31 = vector.broadcast %cst_38 : f32 to vector<256x8xf32>
    %32 = arith.maximumf %30, %31 : vector<256x8xf32>
    %33 = vector.shape_cast %32 : vector<256x8xf32> to vector<16x16x8xf32>
    %cst_39 = arith.constant 0.000000e+00 : f32
    %34 = vector.broadcast %cst_39 : f32 to vector<18x18x8xf32>
    %c0_40 = arith.constant 0 : index
    %c0_41 = arith.constant 0 : index
    %c0_42 = arith.constant 0 : index
    %35 = vector.load %arg9[%c0_40, %c0_41, %c0_42] : memref<18x18x8xf32, #tpu.memory_space<vmem>>, vector<18x18x8xf32>
    tpu.vector_store %arg9[%c0_40, %c0_41, %c0_42], %34 {strides = array<i32>} : memref<18x18x8xf32, #tpu.memory_space<vmem>>, vector<18x18x8xf32>,
    %c1_43 = arith.constant 1 : index
    %c1_44 = arith.constant 1 : index
    %c0_45 = arith.constant 0 : index
    %36 = vector.load %arg9[%c1_43, %c1_44, %c0_45] : memref<18x18x8xf32, #tpu.memory_space<vmem>>, vector<16x16x8xf32>
    tpu.vector_store %arg9[%c1_43, %c1_44, %c0_45], %33 {strides = array<i32>} : memref<18x18x8xf32, #tpu.memory_space<vmem>>, vector<16x16x8xf32>,
    %c0_46 = arith.constant 0 : index
    %c0_47 = arith.constant 0 : index
    %c0_48 = arith.constant 0 : index
    %37 = vector.load %arg9[%c0_46, %c0_47, %c0_48] : memref<18x18x8xf32, #tpu.memory_space<vmem>>, vector<16x16x8xf32>
    %38 = vector.shape_cast %37 : vector<16x16x8xf32> to vector<256x8xf32>
    %c0_49 = arith.constant 0 : index
    %c1_50 = arith.constant 1 : index
    %c0_51 = arith.constant 0 : index
    %39 = vector.load %arg9[%c0_49, %c1_50, %c0_51] : memref<18x18x8xf32, #tpu.memory_space<vmem>>, vector<16x16x8xf32>
    %40 = vector.shape_cast %39 : vector<16x16x8xf32> to vector<256x8xf32>
    %c0_52 = arith.constant 0 : index
    %c2_53 = arith.constant 2 : index
    %c0_54 = arith.constant 0 : index
    %41 = vector.load %arg9[%c0_52, %c2_53, %c0_54] : memref<18x18x8xf32, #tpu.memory_space<vmem>>, vector<16x16x8xf32>
    %42 = vector.shape_cast %41 : vector<16x16x8xf32> to vector<256x8xf32>
    %c1_55 = arith.constant 1 : index
    %c0_56 = arith.constant 0 : index
    %c0_57 = arith.constant 0 : index
    %43 = vector.load %arg9[%c1_55, %c0_56, %c0_57] : memref<18x18x8xf32, #tpu.memory_space<vmem>>, vector<16x16x8xf32>
    %44 = vector.shape_cast %43 : vector<16x16x8xf32> to vector<256x8xf32>
    %c1_58 = arith.constant 1 : index
    %c1_59 = arith.constant 1 : index
    %c0_60 = arith.constant 0 : index
    %45 = vector.load %arg9[%c1_58, %c1_59, %c0_60] : memref<18x18x8xf32, #tpu.memory_space<vmem>>, vector<16x16x8xf32>
    %46 = vector.shape_cast %45 : vector<16x16x8xf32> to vector<256x8xf32>
    %c1_61 = arith.constant 1 : index
    %c2_62 = arith.constant 2 : index
    %c0_63 = arith.constant 0 : index
    %47 = vector.load %arg9[%c1_61, %c2_62, %c0_63] : memref<18x18x8xf32, #tpu.memory_space<vmem>>, vector<16x16x8xf32>
    %48 = vector.shape_cast %47 : vector<16x16x8xf32> to vector<256x8xf32>
    %c2_64 = arith.constant 2 : index
    %c0_65 = arith.constant 0 : index
    %c0_66 = arith.constant 0 : index
    %49 = vector.load %arg9[%c2_64, %c0_65, %c0_66] : memref<18x18x8xf32, #tpu.memory_space<vmem>>, vector<16x16x8xf32>
    %50 = vector.shape_cast %49 : vector<16x16x8xf32> to vector<256x8xf32>
    %c2_67 = arith.constant 2 : index
    %c1_68 = arith.constant 1 : index
    %c0_69 = arith.constant 0 : index
    %51 = vector.load %arg9[%c2_67, %c1_68, %c0_69] : memref<18x18x8xf32, #tpu.memory_space<vmem>>, vector<16x16x8xf32>
    %52 = vector.shape_cast %51 : vector<16x16x8xf32> to vector<256x8xf32>
    %c2_70 = arith.constant 2 : index
    %c2_71 = arith.constant 2 : index
    %c0_72 = arith.constant 0 : index
    %53 = vector.load %arg9[%c2_70, %c2_71, %c0_72] : memref<18x18x8xf32, #tpu.memory_space<vmem>>, vector<16x16x8xf32>
    %54 = vector.shape_cast %53 : vector<16x16x8xf32> to vector<256x8xf32>
    %55 = tpu.concatenate %38, %40, %42, %44, %46, %48, %50, %52, %54 in 1 : vector<256x8xf32>, vector<256x8xf32>, vector<256x8xf32>, vector<256x8xf32>, vector<256x8xf32>, vector<256x8xf32>, vector<256x8xf32>, vector<256x8xf32>, vector<256x8xf32> -> vector<256x72xf32>
    %c0_73 = arith.constant 0 : index
    %c0_74 = arith.constant 0 : index
    %56 = vector.load %arg4[%c0_73, %c0_74] : memref<8x72xf32, #tpu.memory_space<vmem>>, vector<8x72xf32>
    %cst_75 = arith.constant dense<0.000000e+00> : vector<8x256xf32>
    %57 = tpu.matmul %56, %55, %cst_75 {dimension_numbers = #tpu.dot_dimension_numbers<[1], [1], [0], [0], [0, 0, 1, 0], [], []>} : vector<8x72xf32>, vector<256x72xf32>, vector<8x256xf32> -> vector<8x256xf32>
    %c0_76 = arith.constant 0 : index
    %c0_77 = arith.constant 0 : index
    %58 = vector.load %arg5[%c0_76, %c0_77] : memref<8x1xf32, #tpu.memory_space<vmem>>, vector<8x1xf32>
    %59 = vector.broadcast %58 : vector<8x1xf32> to vector<8x256xf32>
    %60 = arith.addf %57, %59 : vector<8x256xf32>
    %c0_78 = arith.constant 0 : index
    %c0_79 = arith.constant 0 : index
    %61 = vector.load %arg6[%c0_78, %c0_79] : memref<8x4xf32, #tpu.memory_space<vmem>>, vector<8x4xf32>
    %cst_80 = arith.constant dense<0.000000e+00> : vector<8x256xf32>
    %62 = tpu.matmul %61, %1, %cst_80 {dimension_numbers = #tpu.dot_dimension_numbers<[1], [0], [0], [1], [0, 0, 1, 1], [], []>} : vector<8x4xf32>, vector<4x256xf32>, vector<8x256xf32> -> vector<8x256xf32>
    %63 = arith.addf %60, %62 : vector<8x256xf32>
    %cst_81 = arith.constant 0.000000e+00 : f32
    %64 = vector.broadcast %cst_81 : f32 to vector<8x256xf32>
    %65 = arith.maximumf %63, %64 : vector<8x256xf32>
    %c0_82 = arith.constant 0 : index
    %c0_83 = arith.constant 0 : index
    %c0_84 = arith.constant 0 : index
    %66 = vector.load %arg7[%c0_82, %c0_83, %c0_84] : memref<1x8x256xf32, #tpu.memory_space<vmem>>, vector<1x8x256xf32>
    %67 = vector.shape_cast %66 : vector<1x8x256xf32> to vector<8x256xf32>
    %68 = vector.shape_cast %65 : vector<8x256xf32> to vector<1x8x256xf32>
    tpu.vector_store %arg7[%c0_82, %c0_83, %c0_84], %68 {strides = array<i32>} : memref<1x8x256xf32, #tpu.memory_space<vmem>>, vector<1x8x256xf32>,
    return
  }
  func.func @transform_0(%arg0: i32) -> (i32, i32, i32) {
    %c0_i32 = arith.constant 0 : i32
    %c0_i32_0 = arith.constant 0 : i32
    %c0_i32_1 = arith.constant 0 : i32
    return %arg0, %c0_i32, %c0_i32_0 : i32, i32, i32
  }
  func.func @transform_1(%arg0: i32) -> (i32, i32) {
    %c0_i32 = arith.constant 0 : i32
    %c0_i32_0 = arith.constant 0 : i32
    %c0_i32_1 = arith.constant 0 : i32
    return %c0_i32, %c0_i32_0 : i32, i32
  }
  func.func @transform_2(%arg0: i32) -> (i32, i32) {
    %c0_i32 = arith.constant 0 : i32
    %c0_i32_0 = arith.constant 0 : i32
    %c0_i32_1 = arith.constant 0 : i32
    return %c0_i32, %c0_i32_0 : i32, i32
  }
  func.func @transform_3(%arg0: i32) -> (i32, i32) {
    %c0_i32 = arith.constant 0 : i32
    %c0_i32_0 = arith.constant 0 : i32
    %c0_i32_1 = arith.constant 0 : i32
    return %c0_i32, %c0_i32_0 : i32, i32
  }
  func.func @transform_4(%arg0: i32) -> (i32, i32) {
    %c0_i32 = arith.constant 0 : i32
    %c0_i32_0 = arith.constant 0 : i32
    %c0_i32_1 = arith.constant 0 : i32
    return %c0_i32, %c0_i32_0 : i32, i32
  }
  func.func @transform_5(%arg0: i32) -> (i32, i32) {
    %c0_i32 = arith.constant 0 : i32
    %c0_i32_0 = arith.constant 0 : i32
    %c0_i32_1 = arith.constant 0 : i32
    return %c0_i32, %c0_i32_0 : i32, i32
  }
  func.func @transform_6(%arg0: i32) -> (i32, i32, i32) {
    %c0_i32 = arith.constant 0 : i32
    %c0_i32_0 = arith.constant 0 : i32
    %c0_i32_1 = arith.constant 0 : i32
    return %arg0, %c0_i32, %c0_i32_0 : i32, i32, i32
  }
}

</mosaic_0001>

<llo_original>
// kernel: _lambda_.1
$region0: #{_lambda_.1}
  #allocation0 [shape = 'u32[]', space=smem, size = 0x4, offset = 0x4, fixed_abs, tag = 'smem constant byte address 0x4 - core index']
  #allocation1 [shape = 'u32[144,128]{1,0:T(1,128)}', space=vmem, size = 0x12000, scoped, tag = 'internal scratch']
  #allocation2 [shape = 'f32[18,18,4]{2,1,0:T(8,128)}', space=vmem, size = 0x36000, scoped, tag = 'scratch operand']
  #allocation3 [shape = 'f32[18,18,8]{2,1,0:T(8,128)}', space=vmem, size = 0x36000, scoped, tag = 'scratch operand']
  %s0 = inlined_call_operand.vmem [shape: f32[2,4,256], index: 0, kind: input, shape index: {}]
  %s1 = inlined_call_operand.vmem [shape: f32[36,8], index: 1, kind: input, shape index: {}]
  %s2 = inlined_call_operand.vmem [shape: f32[1,8], index: 2, kind: input, shape index: {}]
  %s3 = inlined_call_operand.vmem [shape: f32[8,72], index: 3, kind: input, shape index: {}]
  %s4 = inlined_call_operand.vmem [shape: f32[8,1], index: 4, kind: input, shape index: {}]
  %s5 = inlined_call_operand.vmem [shape: f32[8,4], index: 5, kind: input, shape index: {}]
  %s6 = inlined_call_operand.vmem [shape: f32[2,8,256], index: 6, kind: output, shape index: {}]
  %s7 = sld [smem:[#allocation0]]
  $region57: #{_lambda_.1} parent=0
    _
  %s9 = ssub.s32 1, %s7
  %s10 = scalar_select 0, %s9, %s7
  loop: start=0, step=1, limit=4
  $region2: #{_lambda_.1} parent=0 // loop_pre_header
    _
  $region3: #{_lambda_.1} parent=0 // loop_header
    %s12 = sphi 0, %s16
    %p13 = scmp.ge.s32.totalorder %s12, 4
    %s22 = sphi 0, %s24
    %s25 = sphi 0, %s22
    %s26 = sphi 0, %s25
    %s42 = sphi 0, %s26
    %s46 = sphi 0, %s46
    %s48 = sphi 0, %s46
    %s49 = sphi 0, %s48
    %s63 = sphi 0, %s49
    %s67 = sphi 0, %s67
    %s69 = sphi 0, %s67
    %s70 = sphi 0, %s69
    %s84 = sphi 0, %s70
    %s88 = sphi 0, %s88
    %s90 = sphi 0, %s88
    %s91 = sphi 0, %s90
    %s105 = sphi 0, %s91
    %s109 = sphi 0, %s109
    %s111 = sphi 0, %s109
    %s112 = sphi 0, %s111
    %s126 = sphi 0, %s112
    %s130 = sphi 0, %s130
    %s132 = sphi 0, %s130
    %s133 = sphi 0, %s132
    %s147 = sphi 0, %s133
    %s153 = sphi 0, %s155
    %s156 = sphi 0, %s153
    %s157 = sphi 0, %s156
    %s173 = sphi 0, %s157
  $region4: #{_lambda_.1} parent=0 // loop_header_branch
    %15 = sbr.rel (%p13) target = $region8
  $region5: #{_lambda_.1} parent=0 // loop_body
    %s17 = ssub.s32 %s12, 1
    %s18 = ssub.s32 %s12, 2
    %s19 = sadd.s32 %s12, 1
    %s20 = ssub.s32 %s12, %s19
    %p21 = scmp.eq.s32.totalorder %s20, 0
    %s23 = sadd.s32 %s22, 1
    %s24 = scalar_select %p21, %s22, %s23
    %p27 = pneg %p21
    %p28 = scmp.eq.s32.totalorder %s12, 1
    %p29 = por %p27, %p28
    %p30 = scmp.ne.s32.totalorder %s22, %s25
    %p31 = scmp.eq.s32.totalorder %s12, 0
    %p32 = por %p30, %p31
    %p33 = scmp.ne.s32.totalorder %s22, %s25
    %p34 = scmp.eq.s32.totalorder %s17, 1
    %p35 = por %p33, %p34
    %p36 = scmp.ne.s32.totalorder %s25, %s26
    %p37 = scmp.eq.s32.totalorder %s17, 0
    %p38 = por %p36, %p37
    %p39 = scmp.ne.s32.totalorder %s25, %s26
    %p40 = scmp.eq.s32.totalorder %s18, 1
    %p41 = por %p39, %p40
    %p43 = scmp.ne.s32.totalorder %s26, %s42
    %p44 = scmp.eq.s32.totalorder %s18, 0
    %p45 = por %p43, %p44
    %s47 = sadd.s32 %s46, 1
    %p50 = scmp.eq.s32.totalorder %s12, 1
    %p51 = scmp.ne.s32.totalorder %s46, %s48
    %p52 = scmp.eq.s32.totalorder %s12, 0
    %p53 = por %p51, %p52
    %p54 = scmp.ne.s32.totalorder %s46, %s48
    %p55 = scmp.eq.s32.totalorder %s17, 1
    %p56 = por %p54, %p55
    %p57 = scmp.ne.s32.totalorder %s48, %s49
    %p58 = scmp.eq.s32.totalorder %s17, 0
    %p59 = por %p57, %p58
    %p60 = scmp.ne.s32.totalorder %s48, %s49
    %p61 = scmp.eq.s32.totalorder %s18, 1
    %p62 = por %p60, %p61
    %p64 = scmp.ne.s32.totalorder %s49, %s63
    %p65 = scmp.eq.s32.totalorder %s18, 0
    %p66 = por %p64, %p65
    %s68 = sadd.s32 %s67, 1
    %p71 = scmp.eq.s32.totalorder %s12, 1
    %p72 = scmp.ne.s32.totalorder %s67, %s69
    %p73 = scmp.eq.s32.totalorder %s12, 0
    %p74 = por %p72, %p73
    %p75 = scmp.ne.s32.totalorder %s67, %s69
    %p76 = scmp.eq.s32.totalorder %s17, 1
    %p77 = por %p75, %p76
    %p78 = scmp.ne.s32.totalorder %s69, %s70
    %p79 = scmp.eq.s32.totalorder %s17, 0
    %p80 = por %p78, %p79
    %p81 = scmp.ne.s32.totalorder %s69, %s70
    %p82 = scmp.eq.s32.totalorder %s18, 1
    %p83 = por %p81, %p82
    %p85 = scmp.ne.s32.totalorder %s70, %s84
    %p86 = scmp.eq.s32.totalorder %s18, 0
    %p87 = por %p85, %p86
    %s89 = sadd.s32 %s88, 1
    %p92 = scmp.eq.s32.totalorder %s12, 1
    %p93 = scmp.ne.s32.totalorder %s88, %s90
    %p94 = scmp.eq.s32.totalorder %s12, 0
    %p95 = por %p93, %p94
    %p96 = scmp.ne.s32.totalorder %s88, %s90
    %p97 = scmp.eq.s32.totalorder %s17, 1
    %p98 = por %p96, %p97
    %p99 = scmp.ne.s32.totalorder %s90, %s91
    %p100 = scmp.eq.s32.totalorder %s17, 0
    %p101 = por %p99, %p100
    %p102 = scmp.ne.s32.totalorder %s90, %s91
    %p103 = scmp.eq.s32.totalorder %s18, 1
    %p104 = por %p102, %p103
    %p106 = scmp.ne.s32.totalorder %s91, %s105
    %p107 = scmp.eq.s32.totalorder %s18, 0
    %p108 = por %p106, %p107
    %s110 = sadd.s32 %s109, 1
    %p113 = scmp.eq.s32.totalorder %s12, 1
    %p114 = scmp.ne.s32.totalorder %s109, %s111
    %p115 = scmp.eq.s32.totalorder %s12, 0
    %p116 = por %p114, %p115
    %p117 = scmp.ne.s32.totalorder %s109, %s111
    %p118 = scmp.eq.s32.totalorder %s17, 1
    %p119 = por %p117, %p118
    %p120 = scmp.ne.s32.totalorder %s111, %s112
    %p121 = scmp.eq.s32.totalorder %s17, 0
    %p122 = por %p120, %p121
    %p123 = scmp.ne.s32.totalorder %s111, %s112
    %p124 = scmp.eq.s32.totalorder %s18, 1
    %p125 = por %p123, %p124
    %p127 = scmp.ne.s32.totalorder %s112, %s126
    %p128 = scmp.eq.s32.totalorder %s18, 0
    %p129 = por %p127, %p128
    %s131 = sadd.s32 %s130, 1
    %p134 = scmp.eq.s32.totalorder %s12, 1
    %p135 = scmp.ne.s32.totalorder %s130, %s132
    %p136 = scmp.eq.s32.totalorder %s12, 0
    %p137 = por %p135, %p136
    %p138 = scmp.ne.s32.totalorder %s130, %s132
    %p139 = scmp.eq.s32.totalorder %s17, 1
    %p140 = por %p138, %p139
    %p141 = scmp.ne.s32.totalorder %s132, %s133
    %p142 = scmp.eq.s32.totalorder %s17, 0
    %p143 = por %p141, %p142
    %p144 = scmp.ne.s32.totalorder %s132, %s133
    %p145 = scmp.eq.s32.totalorder %s18, 1
    %p146 = por %p144, %p145
    %p148 = scmp.ne.s32.totalorder %s133, %s147
    %p149 = scmp.eq.s32.totalorder %s18, 0
    %p150 = por %p148, %p149
    %s151 = ssub.s32 %s12, %s19
    %p152 = scmp.eq.s32.totalorder %s151, 0
    %s154 = sadd.s32 %s153, 1
    %s155 = scalar_select %p152, %s153, %s154
    %p158 = pneg %p152
    %p159 = scmp.eq.s32.totalorder %s12, 1
    %p160 = por %p158, %p159
    %p161 = scmp.ne.s32.totalorder %s153, %s156
    %p162 = scmp.eq.s32.totalorder %s12, 0
    %p163 = por %p161, %p162
    %p164 = scmp.ne.s32.totalorder %s153, %s156
    %p165 = scmp.eq.s32.totalorder %s17, 1
    %p166 = por %p164, %p165
    %p167 = scmp.ne.s32.totalorder %s156, %s157
    %p168 = scmp.eq.s32.totalorder %s17, 0
    %p169 = por %p167, %p168
    %p170 = scmp.ne.s32.totalorder %s156, %s157
    %p171 = scmp.eq.s32.totalorder %s18, 1
    %p172 = por %p170, %p171
    %p174 = scmp.ne.s32.totalorder %s157, %s173
    %p175 = scmp.eq.s32.totalorder %s18, 0
    %p176 = por %p174, %p175
    %p177 = scmp.le.s32.totalorder 1, %s12
    %p178 = scmp.lt.s32.totalorder %s12, 3
    %p179 = pnand %p177, %p178
    %p180 = pneg %p179
    // Predicated region
    $region9: #{_lambda_.1} parent=5 // pred_check
      _
    $region10: #{_lambda_.1} parent=5 // pred_check_branch
      %182 = sbr.rel (%p179) target = $region12
    $region11: #{_lambda_.1} parent=5 // pred_region
      %s183 = ssub.s32 %s12, 1
      // Predicated region
      $region13: #{_lambda_.1} parent=11 // pred_check
        %p184 = pneg %p59
      $region14: #{_lambda_.1} parent=11 // pred_check_branch
        %186 = sbr.rel (%p184) target = $region16
      $region15: #{_lambda_.1} parent=11 // pred_region
        _
      $region16: #{_lambda_.1} parent=11 // pred_fallthru
        _
      // Predicated region
      $region17: #{_lambda_.1} parent=11 // pred_check
        %p187 = pneg %p80
      $region18: #{_lambda_.1} parent=11 // pred_check_branch
        %189 = sbr.rel (%p187) target = $region20
      $region19: #{_lambda_.1} parent=11 // pred_region
        _
      $region20: #{_lambda_.1} parent=11 // pred_fallthru
        _
      // Predicated region
      $region21: #{_lambda_.1} parent=11 // pred_check
        %p190 = pneg %p101
      $region22: #{_lambda_.1} parent=11 // pred_check_branch
        %192 = sbr.rel (%p190) target = $region24
      $region23: #{_lambda_.1} parent=11 // pred_region
        _
      $region24: #{_lambda_.1} parent=11 // pred_fallthru
        _
      // Predicated region
      $region25: #{_lambda_.1} parent=11 // pred_check
        %p193 = pneg %p122
      $region26: #{_lambda_.1} parent=11 // pred_check_branch
        %195 = sbr.rel (%p193) target = $region28
      $region27: #{_lambda_.1} parent=11 // pred_region
        _
      $region28: #{_lambda_.1} parent=11 // pred_fallthru
        _
      // Predicated region
      $region29: #{_lambda_.1} parent=11 // pred_check
        %p196 = pneg %p143
      $region30: #{_lambda_.1} parent=11 // pred_check_branch
        %198 = sbr.rel (%p196) target = $region32
      $region31: #{_lambda_.1} parent=11 // pred_region
        _
      $region32: #{_lambda_.1} parent=11 // pred_fallthru
        _
    $region12: #{_lambda_.1} parent=5 // pred_fallthru
      _
    %p199 = scmp.lt.s32.totalorder %s12, 2
    // Predicated region
    $region33: #{_lambda_.1} parent=5 // pred_check
      %p200 = pneg %p199
    $region34: #{_lambda_.1} parent=5 // pred_check_branch
      %202 = sbr.rel (%p200) target = $region36
    $region35: #{_lambda_.1} parent=5 // pred_region
      // Predicated region
      $region37: #{_lambda_.1} parent=35 // pred_check
        %p203 = pneg %p32
      $region38: #{_lambda_.1} parent=35 // pred_check_branch
        %205 = sbr.rel (%p203) target = $region40
      $region39: #{_lambda_.1} parent=35 // pred_region
        %p206 = scmp.lt.s32.totalorder %s12, 1
        %s207 = scalar_select %p206, %s12, 1
        %s208 = smul.addr %s207, 2
        %s209 = smul.addr %s208, 4
        %s210 = scalar_lea.vmem %s0, %s209
      $region40: #{_lambda_.1} parent=35 // pred_fallthru
        _
    $region36: #{_lambda_.1} parent=5 // pred_fallthru
      _
    %p211 = scmp.le.s32.totalorder 1, %s12
    %p212 = scmp.lt.s32.totalorder %s12, 3
    %p213 = pnand %p211, %p212
    %p214 = pneg %p213
    // Predicated region
    $region41: #{_lambda_.1} parent=5 // pred_check
      _
    $region42: #{_lambda_.1} parent=5 // pred_check_branch
      %216 = sbr.rel (%p213) target = $region44
    $region43: #{_lambda_.1} parent=5 // pred_region
      %s217 = ssub.s32 %s12, 1
      %p218 = scmp.lt.s32.totalorder %s17, 1
      %s219 = scalar_select %p218, %s17, 1
      %s220 = smul.addr %s219, 2
      %s221 = smul.addr %s220, 4
      %s222 = scalar_lea.vmem %s0, %s221
      %p223 = pneg %p38
      %p224 = pneg %p35
      %p225 = pneg %p59
      %p226 = pneg %p56
      %p227 = pneg %p80
      %p228 = pneg %p77
      %p229 = pneg %p101
      %p230 = pneg %p98
      %p231 = pneg %p122
      %p232 = pneg %p119
      %p233 = pneg %p143
      %p234 = pneg %p140
      %p235 = pneg %p169
      %p236 = pneg %p166
      %p237 = scmp.lt.s32.totalorder %s17, 1
      %s238 = scalar_select %p237, %s17, 1
      %s239 = smul.addr %s238, 2
      %s240 = smul.addr %s239, 8
      %s241 = scalar_lea.vmem %s6, %s240
      %p242 = scmp.lt.s32.totalorder %s17, 1
      %s243 = scalar_select %p242, %s17, 1
      %s244 = smul.addr %s243, 2
      %s245 = smul.addr %s244, 4
      %s246 = scalar_lea.vmem %s0, %s245
      %p247 = scmp.lt.s32.totalorder %s17, 1
      %s248 = scalar_select %p247, %s17, 1
      %s249 = smul.addr %s248, 2
      %s250 = smul.addr %s249, 8
      %s251 = scalar_lea.vmem %s6, %s250
      %v252 = vld [vmem:[%s246] sm:$0xff]
      %v254 = vcombine.high %v252, %v252
      %256 = vxpose.xlu0.b32.start [1/16] %v252, 128
      %257 = vxpose.xlu0.b32.cont [2/16] 0.0, 128
      %258 = vxpose.xlu0.b32.cont [3/16] 0.0, 128
      %259 = vxpose.xlu0.b32.cont [4/16] 0.0, 128
      %260 = vxpose.xlu0.b32.cont [5/16] 0.0, 128
      %261 = vxpose.xlu0.b32.cont [6/16] 0.0, 128
      %262 = vxpose.xlu0.b32.cont [7/16] 0.0, 128
      %263 = vxpose.xlu0.b32.cont [8/16] 0.0, 128
      %264 = vxpose.xlu0.b32.cont [9/16] 0.0, 128
      %265 = vxpose.xlu0.b32.cont [10/16] 0.0, 128
      %266 = vxpose.xlu0.b32.cont [11/16] 0.0, 128
      %267 = vxpose.xlu0.b32.cont [12/16] 0.0, 128
      %268 = vxpose.xlu0.b32.cont [13/16] 0.0, 128
      %269 = vxpose.xlu0.b32.cont [14/16] 0.0, 128
      %270 = vxpose.xlu0.b32.cont [15/16] 0.0, 128
      %271 = vxpose.xlu0.b32.end [16/16] 0.0, 128
      %v272 = vpop.trf.xlu0
      %v273 = vpop.trf.xlu0
      %v274 = vpop.trf.xlu0
      %v275 = vpop.trf.xlu0
      %v276 = vpop.trf.xlu0
      %v277 = vpop.trf.xlu0
      %v278 = vpop.trf.xlu0
      %v279 = vpop.trf.xlu0
      %v280 = vpop.trf.xlu0
      %v281 = vpop.trf.xlu0
      %v282 = vpop.trf.xlu0
      %v283 = vpop.trf.xlu0
      %v284 = vpop.trf.xlu0
      %v285 = vpop.trf.xlu0
      %v286 = vpop.trf.xlu0
      %v287 = vpop.trf.xlu0
      %288 = vxpose.xlu0.b32.start [1/16] %v254, 128
      %289 = vxpose.xlu0.b32.cont [2/16] 0.0, 128
      %290 = vxpose.xlu0.b32.cont [3/16] 0.0, 128
      %291 = vxpose.xlu0.b32.cont [4/16] 0.0, 128
      %292 = vxpose.xlu0.b32.cont [5/16] 0.0, 128
      %293 = vxpose.xlu0.b32.cont [6/16] 0.0, 128
      %294 = vxpose.xlu0.b32.cont [7/16] 0.0, 128
      %295 = vxpose.xlu0.b32.cont [8/16] 0.0, 128
      %296 = vxpose.xlu0.b32.cont [9/16] 0.0, 128
      %297 = vxpose.xlu0.b32.cont [10/16] 0.0, 128
      %298 = vxpose.xlu0.b32.cont [11/16] 0.0, 128
      %299 = vxpose.xlu0.b32.cont [12/16] 0.0, 128
      %300 = vxpose.xlu0.b32.cont [13/16] 0.0, 128
      %301 = vxpose.xlu0.b32.cont [14/16] 0.0, 128
      %302 = vxpose.xlu0.b32.cont [15/16] 0.0, 128
      %303 = vxpose.xlu0.b32.end [16/16] 0.0, 128
      %v304 = vpop.trf.xlu0
      %v305 = vpop.trf.xlu0
      %v306 = vpop.trf.xlu0
      %v307 = vpop.trf.xlu0
      %v308 = vpop.trf.xlu0
      %v309 = vpop.trf.xlu0
      %v310 = vpop.trf.xlu0
      %v311 = vpop.trf.xlu0
      %v312 = vpop.trf.xlu0
      %v313 = vpop.trf.xlu0
      %v314 = vpop.trf.xlu0
      %v315 = vpop.trf.xlu0
      %v316 = vpop.trf.xlu0
      %v317 = vpop.trf.xlu0
      %v318 = vpop.trf.xlu0
      %v319 = vpop.trf.xlu0
      %vm320 = vcmask 31744
      %321 = vst.msk [vmem:[#allocation2] sm:$0xff] %vm320, 0.0
      %322 = vst.msk [vmem:[#allocation2 + $0x8] sm:$0xff] %vm320, 0.0
      %vm323 = vcmask 25600
      %324 = vst.msk [vmem:[#allocation2 + $0x10] sm:$0x3] %vm323, 0.0
      %325 = vst.msk [vmem:[#allocation2 + $0x18] sm:$0xff] %vm320, 0.0
      %326 = vst.msk [vmem:[#allocation2 + $0x20] sm:$0xff] %vm320, 0.0
      %327 = vst.msk [vmem:[#allocation2 + $0x28] sm:$0x3] %vm323, 0.0
      %328 = vst.msk [vmem:[#allocation2 + $0x30] sm:$0xff] %vm320, 0.0
      %329 = vst.msk [vmem:[#allocation2 + $0x38] sm:$0xff] %vm320, 0.0
      %330 = vst.msk [vmem:[#allocation2 + $0x40] sm:$0x3] %vm323, 0.0
      %331 = vst.msk [vmem:[#allocation2 + $0x48] sm:$0xff] %vm320, 0.0
      %332 = vst.msk [vmem:[#allocation2 + $0x50] sm:$0xff] %vm320, 0.0
      %333 = vst.msk [vmem:[#allocation2 + $0x58] sm:$0x3] %vm323, 0.0
      %334 = vst.msk [vmem:[#allocation2 + $0x60] sm:$0xff] %vm320, 0.0
      %335 = vst.msk [vmem:[#allocation2 + $0x68] sm:$0xff] %vm320, 0.0
      %336 = vst.msk [vmem:[#allocation2 + $0x70] sm:$0x3] %vm323, 0.0
      %337 = vst.msk [vmem:[#allocation2 + $0x78] sm:$0xff] %vm320, 0.0
      %338 = vst.msk [vmem:[#allocation2 + $0x80] sm:$0xff] %vm320, 0.0
      %339 = vst.msk [vmem:[#allocation2 + $0x88] sm:$0x3] %vm323, 0.0
      %340 = vst.msk [vmem:[#allocation2 + $0x90] sm:$0xff] %vm320, 0.0
      %341 = vst.msk [vmem:[#allocation2 + $0x98] sm:$0xff] %vm320, 0.0
      %342 = vst.msk [vmem:[#allocation2 + $0xa0] sm:$0x3] %vm323, 0.0
      %343 = vst.msk [vmem:[#allocation2 + $0xa8] sm:$0xff] %vm320, 0.0
      %344 = vst.msk [vmem:[#allocation2 + $0xb0] sm:$0xff] %vm320, 0.0
      %345 = vst.msk [vmem:[#allocation2 + $0xb8] sm:$0x3] %vm323, 0.0
      %346 = vst.msk [vmem:[#allocation2 + $0xc0] sm:$0xff] %vm320, 0.0
      %347 = vst.msk [vmem:[#allocation2 + $0xc8] sm:$0xff] %vm320, 0.0
      %348 = vst.msk [vmem:[#allocation2 + $0xd0] sm:$0x3] %vm323, 0.0
      %349 = vst.msk [vmem:[#allocation2 + $0xd8] sm:$0xff] %vm320, 0.0
      %350 = vst.msk [vmem:[#allocation2 + $0xe0] sm:$0xff] %vm320, 0.0
      %351 = vst.msk [vmem:[#allocation2 + $0xe8] sm:$0x3] %vm323, 0.0
      %352 = vst.msk [vmem:[#allocation2 + $0xf0] sm:$0xff] %vm320, 0.0
      %353 = vst.msk [vmem:[#allocation2 + $0xf8] sm:$0xff] %vm320, 0.0
      %354 = vst.msk [vmem:[#allocation2 + $0x100] sm:$0x3] %vm323, 0.0
      %355 = vst.msk [vmem:[#allocation2 + $0x108] sm:$0xff] %vm320, 0.0
      %356 = vst.msk [vmem:[#allocation2 + $0x110] sm:$0xff] %vm320, 0.0
      %357 = vst.msk [vmem:[#allocation2 + $0x118] sm:$0x3] %vm323, 0.0
      %358 = vst.msk [vmem:[#allocation2 + $0x120] sm:$0xff] %vm320, 0.0
      %359 = vst.msk [vmem:[#allocation2 + $0x128] sm:$0xff] %vm320, 0.0
      %360 = vst.msk [vmem:[#allocation2 + $0x130] sm:$0x3] %vm323, 0.0
      %361 = vst.msk [vmem:[#allocation2 + $0x138] sm:$0xff] %vm320, 0.0
      %362 = vst.msk [vmem:[#allocation2 + $0x140] sm:$0xff] %vm320, 0.0
      %363 = vst.msk [vmem:[#allocation2 + $0x148] sm:$0x3] %vm323, 0.0
      %364 = vst.msk [vmem:[#allocation2 + $0x150] sm:$0xff] %vm320, 0.0
      %365 = vst.msk [vmem:[#allocation2 + $0x158] sm:$0xff] %vm320, 0.0
      %366 = vst.msk [vmem:[#allocation2 + $0x160] sm:$0x3] %vm323, 0.0
      %367 = vst.msk [vmem:[#allocation2 + $0x168] sm:$0xff] %vm320, 0.0
      %368 = vst.msk [vmem:[#allocation2 + $0x170] sm:$0xff] %vm320, 0.0
      %369 = vst.msk [vmem:[#allocation2 + $0x178] sm:$0x3] %vm323, 0.0
      %370 = vst.msk [vmem:[#allocation2 + $0x180] sm:$0xff] %vm320, 0.0
      %371 = vst.msk [vmem:[#allocation2 + $0x188] sm:$0xff] %vm320, 0.0
      %372 = vst.msk [vmem:[#allocation2 + $0x190] sm:$0x3] %vm323, 0.0
      %373 = vst.msk [vmem:[#allocation2 + $0x198] sm:$0xff] %vm320, 0.0
      %374 = vst.msk [vmem:[#allocation2 + $0x1a0] sm:$0xff] %vm320, 0.0
      %375 = vst.msk [vmem:[#allocation2 + $0x1a8] sm:$0x3] %vm323, 0.0
      %s376 = scalar_lea.vmem [#allocation2], 24
      %377 = vst.msk [vmem:[%s376 + $0x1] sm:$0xff] %vm320, %v272
      %378 = vst.msk [vmem:[%s376 + $0x9] sm:$0xff] %vm320, %v273
      %379 = vst.msk [vmem:[%s376 + $0x19] sm:$0xff] %vm320, %v274
      %380 = vst.msk [vmem:[%s376 + $0x21] sm:$0xff] %vm320, %v275
      %381 = vst.msk [vmem:[%s376 + $0x31] sm:$0xff] %vm320, %v276
      %382 = vst.msk [vmem:[%s376 + $0x39] sm:$0xff] %vm320, %v277
      %383 = vst.msk [vmem:[%s376 + $0x49] sm:$0xff] %vm320, %v278
      %384 = vst.msk [vmem:[%s376 + $0x51] sm:$0xff] %vm320, %v279
      %385 = vst.msk [vmem:[%s376 + $0x61] sm:$0xff] %vm320, %v280
      %386 = vst.msk [vmem:[%s376 + $0x69] sm:$0xff] %vm320, %v281
      %387 = vst.msk [vmem:[%s376 + $0x79] sm:$0xff] %vm320, %v282
      %388 = vst.msk [vmem:[%s376 + $0x81] sm:$0xff] %vm320, %v283
      %389 = vst.msk [vmem:[%s376 + $0x91] sm:$0xff] %vm320, %v284
      %390 = vst.msk [vmem:[%s376 + $0x99] sm:$0xff] %vm320, %v285
      %391 = vst.msk [vmem:[%s376 + $0xa9] sm:$0xff] %vm320, %v286
      %392 = vst.msk [vmem:[%s376 + $0xb1] sm:$0xff] %vm320, %v287
      %393 = vst.msk [vmem:[%s376 + $0xc1] sm:$0xff] %vm320, %v304
      %394 = vst.msk [vmem:[%s376 + $0xc9] sm:$0xff] %vm320, %v305
      %395 = vst.msk [vmem:[%s376 + $0xd9] sm:$0xff] %vm320, %v306
      %396 = vst.msk [vmem:[%s376 + $0xe1] sm:$0xff] %vm320, %v307
      %397 = vst.msk [vmem:[%s376 + $0xf1] sm:$0xff] %vm320, %v308
      %398 = vst.msk [vmem:[%s376 + $0xf9] sm:$0xff] %vm320, %v309
      %399 = vst.msk [vmem:[%s376 + $0x109] sm:$0xff] %vm320, %v310
      %400 = vst.msk [vmem:[%s376 + $0x111] sm:$0xff] %vm320, %v311
      %401 = vst.msk [vmem:[%s376 + $0x121] sm:$0xff] %vm320, %v312
      %402 = vst.msk [vmem:[%s376 + $0x129] sm:$0xff] %vm320, %v313
      %403 = vst.msk [vmem:[%s376 + $0x139] sm:$0xff] %vm320, %v314
      %404 = vst.msk [vmem:[%s376 + $0x141] sm:$0xff] %vm320, %v315
      %405 = vst.msk [vmem:[%s376 + $0x151] sm:$0xff] %vm320, %v316
      %406 = vst.msk [vmem:[%s376 + $0x159] sm:$0xff] %vm320, %v317
      %407 = vst.msk [vmem:[%s376 + $0x169] sm:$0xff] %vm320, %v318
      %408 = vst.msk [vmem:[%s376 + $0x171] sm:$0xff] %vm320, %v319
      %v409 = vld [vmem:[#allocation2] sm:$0xff]
      %v410 = vld [vmem:[#allocation2 + $0x8] sm:$0xff]
      %v411 = vld [vmem:[#allocation2 + $0x18] sm:$0xff]
      %v412 = vld [vmem:[#allocation2 + $0x20] sm:$0xff]
      %v413 = vld [vmem:[#allocation2 + $0x30] sm:$0xff]
      %v414 = vld [vmem:[#allocation2 + $0x38] sm:$0xff]
      %v415 = vld [vmem:[#allocation2 + $0x48] sm:$0xff]
      %v416 = vld [vmem:[#allocation2 + $0x50] sm:$0xff]
      %v417 = vld [vmem:[#allocation2 + $0x60] sm:$0xff]
      %v418 = vld [vmem:[#allocation2 + $0x68] sm:$0xff]
      %v419 = vld [vmem:[#allocation2 + $0x78] sm:$0xff]
      %v420 = vld [vmem:[#allocation2 + $0x80] sm:$0xff]
      %v421 = vld [vmem:[#allocation2 + $0x90] sm:$0xff]
      %v422 = vld [vmem:[#allocation2 + $0x98] sm:$0xff]
      %v423 = vld [vmem:[#allocation2 + $0xa8] sm:$0xff]
      %v424 = vld [vmem:[#allocation2 + $0xb0] sm:$0xff]
      %v425 = vld [vmem:[#allocation2 + $0xc0] sm:$0xff]
      %v426 = vld [vmem:[#allocation2 + $0xc8] sm:$0xff]
      %v427 = vld [vmem:[#allocation2 + $0xd8] sm:$0xff]
      %v428 = vld [vmem:[#allocation2 + $0xe0] sm:$0xff]
      %v429 = vld [vmem:[#allocation2 + $0xf0] sm:$0xff]
      %v430 = vld [vmem:[#allocation2 + $0xf8] sm:$0xff]
      %v431 = vld [vmem:[#allocation2 + $0x108] sm:$0xff]
      %v432 = vld [vmem:[#allocation2 + $0x110] sm:$0xff]
      %v433 = vld [vmem:[#allocation2 + $0x120] sm:$0xff]
      %v434 = vld [vmem:[#allocation2 + $0x128] sm:$0xff]
      %v435 = vld [vmem:[#allocation2 + $0x138] sm:$0xff]
      %v436 = vld [vmem:[#allocation2 + $0x140] sm:$0xff]
      %v437 = vld [vmem:[#allocation2 + $0x150] sm:$0xff]
      %v438 = vld [vmem:[#allocation2 + $0x158] sm:$0xff]
      %v439 = vld [vmem:[#allocation2 + $0x168] sm:$0xff]
      %v440 = vld [vmem:[#allocation2 + $0x170] sm:$0xff]
      %v441 = vld [vmem:[#allocation2 + $0x1] sm:$0xff]
      %v442 = vld [vmem:[#allocation2 + $0x9] sm:$0xff]
      %v443 = vld [vmem:[#allocation2 + $0x19] sm:$0xff]
      %v444 = vld [vmem:[#allocation2 + $0x21] sm:$0xff]
      %v445 = vld [vmem:[#allocation2 + $0x31] sm:$0xff]
      %v446 = vld [vmem:[#allocation2 + $0x39] sm:$0xff]
      %v447 = vld [vmem:[#allocation2 + $0x49] sm:$0xff]
      %v448 = vld [vmem:[#allocation2 + $0x51] sm:$0xff]
      %v449 = vld [vmem:[#allocation2 + $0x61] sm:$0xff]
      %v450 = vld [vmem:[#allocation2 + $0x69] sm:$0xff]
      %v451 = vld [vmem:[#allocation2 + $0x79] sm:$0xff]
      %v452 = vld [vmem:[#allocation2 + $0x81] sm:$0xff]
      %v453 = vld [vmem:[#allocation2 + $0x91] sm:$0xff]
      %v454 = vld [vmem:[#allocation2 + $0x99] sm:$0xff]
      %v455 = vld [vmem:[#allocation2 + $0xa9] sm:$0xff]
      %v456 = vld [vmem:[#allocation2 + $0xb1] sm:$0xff]
      %v457 = vld [vmem:[#allocation2 + $0xc1] sm:$0xff]
      %v458 = vld [vmem:[#allocation2 + $0xc9] sm:$0xff]
      %v459 = vld [vmem:[#allocation2 + $0xd9] sm:$0xff]
      %v460 = vld [vmem:[#allocation2 + $0xe1] sm:$0xff]
      %v461 = vld [vmem:[#allocation2 + $0xf1] sm:$0xff]
      %v462 = vld [vmem:[#allocation2 + $0xf9] sm:$0xff]
      %v463 = vld [vmem:[#allocation2 + $0x109] sm:$0xff]
      %v464 = vld [vmem:[#allocation2 + $0x111] sm:$0xff]
      %v465 = vld [vmem:[#allocation2 + $0x121] sm:$0xff]
      %v466 = vld [vmem:[#allocation2 + $0x129] sm:$0xff]
      %v467 = vld [vmem:[#allocation2 + $0x139] sm:$0xff]
      %v468 = vld [vmem:[#allocation2 + $0x141] sm:$0xff]
      %v469 = vld [vmem:[#allocation2 + $0x151] sm:$0xff]
      %v470 = vld [vmem:[#allocation2 + $0x159] sm:$0xff]
      %v471 = vld [vmem:[#allocation2 + $0x169] sm:$0xff]
      %v472 = vld [vmem:[#allocation2 + $0x171] sm:$0xff]
      %v473 = vld [vmem:[#allocation2 + $0x2] sm:$0xff]
      %v474 = vld [vmem:[#allocation2 + $0xa] sm:$0xff]
      %v475 = vld [vmem:[#allocation2 + $0x1a] sm:$0xff]
      %v476 = vld [vmem:[#allocation2 + $0x22] sm:$0xff]
      %v477 = vld [vmem:[#allocation2 + $0x32] sm:$0xff]
      %v478 = vld [vmem:[#allocation2 + $0x3a] sm:$0xff]
      %v479 = vld [vmem:[#allocation2 + $0x4a] sm:$0xff]
      %v480 = vld [vmem:[#allocation2 + $0x52] sm:$0xff]
      %v481 = vld [vmem:[#allocation2 + $0x62] sm:$0xff]
      %v482 = vld [vmem:[#allocation2 + $0x6a] sm:$0xff]
      %v483 = vld [vmem:[#allocation2 + $0x7a] sm:$0xff]
      %v484 = vld [vmem:[#allocation2 + $0x82] sm:$0xff]
      %v485 = vld [vmem:[#allocation2 + $0x92] sm:$0xff]
      %v486 = vld [vmem:[#allocation2 + $0x9a] sm:$0xff]
      %v487 = vld [vmem:[#allocation2 + $0xaa] sm:$0xff]
      %v488 = vld [vmem:[#allocation2 + $0xb2] sm:$0xff]
      %v489 = vld [vmem:[#allocation2 + $0xc2] sm:$0xff]
      %v490 = vld [vmem:[#allocation2 + $0xca] sm:$0xff]
      %v491 = vld [vmem:[#allocation2 + $0xda] sm:$0xff]
      %v492 = vld [vmem:[#allocation2 + $0xe2] sm:$0xff]
      %v493 = vld [vmem:[#allocation2 + $0xf2] sm:$0xff]
      %v494 = vld [vmem:[#allocation2 + $0xfa] sm:$0xff]
      %v495 = vld [vmem:[#allocation2 + $0x10a] sm:$0xff]
      %v496 = vld [vmem:[#allocation2 + $0x112] sm:$0xff]
      %v497 = vld [vmem:[#allocation2 + $0x122] sm:$0xff]
      %v498 = vld [vmem:[#allocation2 + $0x12a] sm:$0xff]
      %v499 = vld [vmem:[#allocation2 + $0x13a] sm:$0xff]
      %v500 = vld [vmem:[#allocation2 + $0x142] sm:$0xff]
      %v501 = vld [vmem:[#allocation2 + $0x152] sm:$0xff]
      %v502 = vld [vmem:[#allocation2 + $0x15a] sm:$0xff]
      %v503 = vld [vmem:[#allocation2 + $0x16a] sm:$0xff]
      %v504 = vld [vmem:[#allocation2 + $0x172] sm:$0xff]
      %v505 = vld [vmem:[%s376] sm:$0xff]
      %v506 = vld [vmem:[%s376 + $0x8] sm:$0xff]
      %v507 = vld [vmem:[%s376 + $0x18] sm:$0xff]
      %v508 = vld [vmem:[%s376 + $0x20] sm:$0xff]
      %v509 = vld [vmem:[%s376 + $0x30] sm:$0xff]
      %v510 = vld [vmem:[%s376 + $0x38] sm:$0xff]
      %v511 = vld [vmem:[%s376 + $0x48] sm:$0xff]
      %v512 = vld [vmem:[%s376 + $0x50] sm:$0xff]
      %v513 = vld [vmem:[%s376 + $0x60] sm:$0xff]
      %v514 = vld [vmem:[%s376 + $0x68] sm:$0xff]
      %v515 = vld [vmem:[%s376 + $0x78] sm:$0xff]
      %v516 = vld [vmem:[%s376 + $0x80] sm:$0xff]
      %v517 = vld [vmem:[%s376 + $0x90] sm:$0xff]
      %v518 = vld [vmem:[%s376 + $0x98] sm:$0xff]
      %v519 = vld [vmem:[%s376 + $0xa8] sm:$0xff]
      %v520 = vld [vmem:[%s376 + $0xb0] sm:$0xff]
      %v521 = vld [vmem:[%s376 + $0xc0] sm:$0xff]
      %v522 = vld [vmem:[%s376 + $0xc8] sm:$0xff]
      %v523 = vld [vmem:[%s376 + $0xd8] sm:$0xff]
      %v524 = vld [vmem:[%s376 + $0xe0] sm:$0xff]
      %v525 = vld [vmem:[%s376 + $0xf0] sm:$0xff]
      %v526 = vld [vmem:[%s376 + $0xf8] sm:$0xff]
      %v527 = vld [vmem:[%s376 + $0x108] sm:$0xff]
      %v528 = vld [vmem:[%s376 + $0x110] sm:$0xff]
      %v529 = vld [vmem:[%s376 + $0x120] sm:$0xff]
      %v530 = vld [vmem:[%s376 + $0x128] sm:$0xff]
      %v531 = vld [vmem:[%s376 + $0x138] sm:$0xff]
      %v532 = vld [vmem:[%s376 + $0x140] sm:$0xff]
      %v533 = vld [vmem:[%s376 + $0x150] sm:$0xff]
      %v534 = vld [vmem:[%s376 + $0x158] sm:$0xff]
      %v535 = vld [vmem:[%s376 + $0x168] sm:$0xff]
      %v536 = vld [vmem:[%s376 + $0x170] sm:$0xff]
      %v537 = vld [vmem:[%s376 + $0x1] sm:$0xff]
      %v538 = vld [vmem:[%s376 + $0x9] sm:$0xff]
      %v539 = vld [vmem:[%s376 + $0x19] sm:$0xff]
      %v540 = vld [vmem:[%s376 + $0x21] sm:$0xff]
      %v541 = vld [vmem:[%s376 + $0x31] sm:$0xff]
      %v542 = vld [vmem:[%s376 + $0x39] sm:$0xff]
      %v543 = vld [vmem:[%s376 + $0x49] sm:$0xff]
      %v544 = vld [vmem:[%s376 + $0x51] sm:$0xff]
      %v545 = vld [vmem:[%s376 + $0x61] sm:$0xff]
      %v546 = vld [vmem:[%s376 + $0x69] sm:$0xff]
      %v547 = vld [vmem:[%s376 + $0x79] sm:$0xff]
      %v548 = vld [vmem:[%s376 + $0x81] sm:$0xff]
      %v549 = vld [vmem:[%s376 + $0x91] sm:$0xff]
      %v550 = vld [vmem:[%s376 + $0x99] sm:$0xff]
      %v551 = vld [vmem:[%s376 + $0xa9] sm:$0xff]
      %v552 = vld [vmem:[%s376 + $0xb1] sm:$0xff]
      %v553 = vld [vmem:[%s376 + $0xc1] sm:$0xff]
      %v554 = vld [vmem:[%s376 + $0xc9] sm:$0xff]
      %v555 = vld [vmem:[%s376 + $0xd9] sm:$0xff]
      %v556 = vld [vmem:[%s376 + $0xe1] sm:$0xff]
      %v557 = vld [vmem:[%s376 + $0xf1] sm:$0xff]
      %v558 = vld [vmem:[%s376 + $0xf9] sm:$0xff]
      %v559 = vld [vmem:[%s376 + $0x109] sm:$0xff]
      %v560 = vld [vmem:[%s376 + $0x111] sm:$0xff]
      %v561 = vld [vmem:[%s376 + $0x121] sm:$0xff]
      %v562 = vld [vmem:[%s376 + $0x129] sm:$0xff]
      %v563 = vld [vmem:[%s376 + $0x139] sm:$0xff]
      %v564 = vld [vmem:[%s376 + $0x141] sm:$0xff]
      %v565 = vld [vmem:[%s376 + $0x151] sm:$0xff]
      %v566 = vld [vmem:[%s376 + $0x159] sm:$0xff]
      %v567 = vld [vmem:[%s376 + $0x169] sm:$0xff]
      %v568 = vld [vmem:[%s376 + $0x171] sm:$0xff]
      %v569 = vld [vmem:[%s376 + $0x2] sm:$0xff]
      %v570 = vld [vmem:[%s376 + $0xa] sm:$0xff]
      %v571 = vld [vmem:[%s376 + $0x1a] sm:$0xff]
      %v572 = vld [vmem:[%s376 + $0x22] sm:$0xff]
      %v573 = vld [vmem:[%s376 + $0x32] sm:$0xff]
      %v574 = vld [vmem:[%s376 + $0x3a] sm:$0xff]
      %v575 = vld [vmem:[%s376 + $0x4a] sm:$0xff]
      %v576 = vld [vmem:[%s376 + $0x52] sm:$0xff]
      %v577 = vld [vmem:[%s376 + $0x62] sm:$0xff]
      %v578 = vld [vmem:[%s376 + $0x6a] sm:$0xff]
      %v579 = vld [vmem:[%s376 + $0x7a] sm:$0xff]
      %v580 = vld [vmem:[%s376 + $0x82] sm:$0xff]
      %v581 = vld [vmem:[%s376 + $0x92] sm:$0xff]
      %v582 = vld [vmem:[%s376 + $0x9a] sm:$0xff]
      %v583 = vld [vmem:[%s376 + $0xaa] sm:$0xff]
      %v584 = vld [vmem:[%s376 + $0xb2] sm:$0xff]
      %v585 = vld [vmem:[%s376 + $0xc2] sm:$0xff]
      %v586 = vld [vmem:[%s376 + $0xca] sm:$0xff]
      %v587 = vld [vmem:[%s376 + $0xda] sm:$0xff]
      %v588 = vld [vmem:[%s376 + $0xe2] sm:$0xff]
      %v589 = vld [vmem:[%s376 + $0xf2] sm:$0xff]
      %v590 = vld [vmem:[%s376 + $0xfa] sm:$0xff]
      %v591 = vld [vmem:[%s376 + $0x10a] sm:$0xff]
      %v592 = vld [vmem:[%s376 + $0x112] sm:$0xff]
      %v593 = vld [vmem:[%s376 + $0x122] sm:$0xff]
      %v594 = vld [vmem:[%s376 + $0x12a] sm:$0xff]
      %v595 = vld [vmem:[%s376 + $0x13a] sm:$0xff]
      %v596 = vld [vmem:[%s376 + $0x142] sm:$0xff]
      %v597 = vld [vmem:[%s376 + $0x152] sm:$0xff]
      %v598 = vld [vmem:[%s376 + $0x15a] sm:$0xff]
      %v599 = vld [vmem:[%s376 + $0x16a] sm:$0xff]
      %v600 = vld [vmem:[%s376 + $0x172] sm:$0xff]
      %s601 = scalar_lea.vmem [#allocation2], 48
      %v602 = vld [vmem:[%s601] sm:$0xff]
      %v603 = vld [vmem:[%s601 + $0x8] sm:$0xff]
      %v604 = vld [vmem:[%s601 + $0x18] sm:$0xff]
      %v605 = vld [vmem:[%s601 + $0x20] sm:$0xff]
      %v606 = vld [vmem:[%s601 + $0x30] sm:$0xff]
      %v607 = vld [vmem:[%s601 + $0x38] sm:$0xff]
      %v608 = vld [vmem:[%s601 + $0x48] sm:$0xff]
      %v609 = vld [vmem:[%s601 + $0x50] sm:$0xff]
      %v610 = vld [vmem:[%s601 + $0x60] sm:$0xff]
      %v611 = vld [vmem:[%s601 + $0x68] sm:$0xff]
      %v612 = vld [vmem:[%s601 + $0x78] sm:$0xff]
      %v613 = vld [vmem:[%s601 + $0x80] sm:$0xff]
      %v614 = vld [vmem:[%s601 + $0x90] sm:$0xff]
      %v615 = vld [vmem:[%s601 + $0x98] sm:$0xff]
      %v616 = vld [vmem:[%s601 + $0xa8] sm:$0xff]
      %v617 = vld [vmem:[%s601 + $0xb0] sm:$0xff]
      %v618 = vld [vmem:[%s601 + $0xc0] sm:$0xff]
      %v619 = vld [vmem:[%s601 + $0xc8] sm:$0xff]
      %v620 = vld [vmem:[%s601 + $0xd8] sm:$0xff]
      %v621 = vld [vmem:[%s601 + $0xe0] sm:$0xff]
      %v622 = vld [vmem:[%s601 + $0xf0] sm:$0xff]
      %v623 = vld [vmem:[%s601 + $0xf8] sm:$0xff]
      %v624 = vld [vmem:[%s601 + $0x108] sm:$0xff]
      %v625 = vld [vmem:[%s601 + $0x110] sm:$0xff]
      %v626 = vld [vmem:[%s601 + $0x120] sm:$0xff]
      %v627 = vld [vmem:[%s601 + $0x128] sm:$0xff]
      %v628 = vld [vmem:[%s601 + $0x138] sm:$0xff]
      %v629 = vld [vmem:[%s601 + $0x140] sm:$0xff]
      %v630 = vld [vmem:[%s601 + $0x150] sm:$0xff]
      %v631 = vld [vmem:[%s601 + $0x158] sm:$0xff]
      %v632 = vld [vmem:[%s601 + $0x168] sm:$0xff]
      %v633 = vld [vmem:[%s601 + $0x170] sm:$0xff]
      %v634 = vld [vmem:[%s601 + $0x1] sm:$0xff]
      %v635 = vld [vmem:[%s601 + $0x9] sm:$0xff]
      %v636 = vld [vmem:[%s601 + $0x19] sm:$0xff]
      %v637 = vld [vmem:[%s601 + $0x21] sm:$0xff]
      %v638 = vld [vmem:[%s601 + $0x31] sm:$0xff]
      %v639 = vld [vmem:[%s601 + $0x39] sm:$0xff]
      %v640 = vld [vmem:[%s601 + $0x49] sm:$0xff]
      %v641 = vld [vmem:[%s601 + $0x51] sm:$0xff]
      %v642 = vld [vmem:[%s601 + $0x61] sm:$0xff]
      %v643 = vld [vmem:[%s601 + $0x69] sm:$0xff]
      %v644 = vld [vmem:[%s601 + $0x79] sm:$0xff]
      %v645 = vld [vmem:[%s601 + $0x81] sm:$0xff]
      %v646 = vld [vmem:[%s601 + $0x91] sm:$0xff]
      %v647 = vld [vmem:[%s601 + $0x99] sm:$0xff]
      %v648 = vld [vmem:[%s601 + $0xa9] sm:$0xff]
      %v649 = vld [vmem:[%s601 + $0xb1] sm:$0xff]
      %v650 = vld [vmem:[%s601 + $0xc1] sm:$0xff]
      %v651 = vld [vmem:[%s601 + $0xc9] sm:$0xff]
      %v652 = vld [vmem:[%s601 + $0xd9] sm:$0xff]
      %v653 = vld [vmem:[%s601 + $0xe1] sm:$0xff]
      %v654 = vld [vmem:[%s601 + $0xf1] sm:$0xff]
      %v655 = vld [vmem:[%s601 + $0xf9] sm:$0xff]
      %v656 = vld [vmem:[%s601 + $0x109] sm:$0xff]
      %v657 = vld [vmem:[%s601 + $0x111] sm:$0xff]
      %v658 = vld [vmem:[%s601 + $0x121] sm:$0xff]
      %v659 = vld [vmem:[%s601 + $0x129] sm:$0xff]
      %v660 = vld [vmem:[%s601 + $0x139] sm:$0xff]
      %v661 = vld [vmem:[%s601 + $0x141] sm:$0xff]
      %v662 = vld [vmem:[%s601 + $0x151] sm:$0xff]
      %v663 = vld [vmem:[%s601 + $0x159] sm:$0xff]
      %v664 = vld [vmem:[%s601 + $0x169] sm:$0xff]
      %v665 = vld [vmem:[%s601 + $0x171] sm:$0xff]
      %v666 = vld [vmem:[%s601 + $0x2] sm:$0xff]
      %v667 = vld [vmem:[%s601 + $0xa] sm:$0xff]
      %v668 = vld [vmem:[%s601 + $0x1a] sm:$0xff]
      %v669 = vld [vmem:[%s601 + $0x22] sm:$0xff]
      %v670 = vld [vmem:[%s601 + $0x32] sm:$0xff]
      %v671 = vld [vmem:[%s601 + $0x3a] sm:$0xff]
      %v672 = vld [vmem:[%s601 + $0x4a] sm:$0xff]
      %v673 = vld [vmem:[%s601 + $0x52] sm:$0xff]
      %v674 = vld [vmem:[%s601 + $0x62] sm:$0xff]
      %v675 = vld [vmem:[%s601 + $0x6a] sm:$0xff]
      %v676 = vld [vmem:[%s601 + $0x7a] sm:$0xff]
      %v677 = vld [vmem:[%s601 + $0x82] sm:$0xff]
      %v678 = vld [vmem:[%s601 + $0x92] sm:$0xff]
      %v679 = vld [vmem:[%s601 + $0x9a] sm:$0xff]
      %v680 = vld [vmem:[%s601 + $0xaa] sm:$0xff]
      %v681 = vld [vmem:[%s601 + $0xb2] sm:$0xff]
      %v682 = vld [vmem:[%s601 + $0xc2] sm:$0xff]
      %v683 = vld [vmem:[%s601 + $0xca] sm:$0xff]
      %v684 = vld [vmem:[%s601 + $0xda] sm:$0xff]
      %v685 = vld [vmem:[%s601 + $0xe2] sm:$0xff]
      %v686 = vld [vmem:[%s601 + $0xf2] sm:$0xff]
      %v687 = vld [vmem:[%s601 + $0xfa] sm:$0xff]
      %v688 = vld [vmem:[%s601 + $0x10a] sm:$0xff]
      %v689 = vld [vmem:[%s601 + $0x112] sm:$0xff]
      %v690 = vld [vmem:[%s601 + $0x122] sm:$0xff]
      %v691 = vld [vmem:[%s601 + $0x12a] sm:$0xff]
      %v692 = vld [vmem:[%s601 + $0x13a] sm:$0xff]
      %v693 = vld [vmem:[%s601 + $0x142] sm:$0xff]
      %v694 = vld [vmem:[%s601 + $0x152] sm:$0xff]
      %v695 = vld [vmem:[%s601 + $0x15a] sm:$0xff]
      %v696 = vld [vmem:[%s601 + $0x16a] sm:$0xff]
      %v697 = vld [vmem:[%s601 + $0x172] sm:$0xff]
      %730 = vrot.lane.b32.xlu0 %v441, 4
      %v731 = vpop.permute.xlu0 %730
      %732 = vrot.lane.b32.xlu0 %v442, 4
      %v733 = vpop.permute.xlu0 %732
      %734 = vrot.lane.b32.xlu0 %v443, 4
      %v735 = vpop.permute.xlu0 %734
      %736 = vrot.lane.b32.xlu0 %v444, 4
      %v737 = vpop.permute.xlu0 %736
      %738 = vrot.lane.b32.xlu0 %v445, 4
      %v739 = vpop.permute.xlu0 %738
      %740 = vrot.lane.b32.xlu0 %v446, 4
      %v741 = vpop.permute.xlu0 %740
      %742 = vrot.lane.b32.xlu0 %v447, 4
      %v743 = vpop.permute.xlu0 %742
      %744 = vrot.lane.b32.xlu0 %v448, 4
      %v745 = vpop.permute.xlu0 %744
      %746 = vrot.lane.b32.xlu0 %v449, 4
      %v747 = vpop.permute.xlu0 %746
      %748 = vrot.lane.b32.xlu0 %v450, 4
      %v749 = vpop.permute.xlu0 %748
      %750 = vrot.lane.b32.xlu0 %v451, 4
      %v751 = vpop.permute.xlu0 %750
      %752 = vrot.lane.b32.xlu0 %v452, 4
      %v753 = vpop.permute.xlu0 %752
      %754 = vrot.lane.b32.xlu0 %v453, 4
      %v755 = vpop.permute.xlu0 %754
      %756 = vrot.lane.b32.xlu0 %v454, 4
      %v757 = vpop.permute.xlu0 %756
      %758 = vrot.lane.b32.xlu0 %v455, 4
      %v759 = vpop.permute.xlu0 %758
      %760 = vrot.lane.b32.xlu0 %v456, 4
      %v761 = vpop.permute.xlu0 %760
      %762 = vrot.lane.b32.xlu0 %v457, 4
      %v763 = vpop.permute.xlu0 %762
      %764 = vrot.lane.b32.xlu0 %v458, 4
      %v765 = vpop.permute.xlu0 %764
      %766 = vrot.lane.b32.xlu0 %v459, 4
      %v767 = vpop.permute.xlu0 %766
      %768 = vrot.lane.b32.xlu0 %v460, 4
      %v769 = vpop.permute.xlu0 %768
      %770 = vrot.lane.b32.xlu0 %v461, 4
      %v771 = vpop.permute.xlu0 %770
      %772 = vrot.lane.b32.xlu0 %v462, 4
      %v773 = vpop.permute.xlu0 %772
      %774 = vrot.lane.b32.xlu0 %v463, 4
      %v775 = vpop.permute.xlu0 %774
      %776 = vrot.lane.b32.xlu0 %v464, 4
      %v777 = vpop.permute.xlu0 %776
      %778 = vrot.lane.b32.xlu0 %v465, 4
      %v779 = vpop.permute.xlu0 %778
      %780 = vrot.lane.b32.xlu0 %v466, 4
      %v781 = vpop.permute.xlu0 %780
      %782 = vrot.lane.b32.xlu0 %v467, 4
      %v783 = vpop.permute.xlu0 %782
      %784 = vrot.lane.b32.xlu0 %v468, 4
      %v785 = vpop.permute.xlu0 %784
      %786 = vrot.lane.b32.xlu0 %v469, 4
      %v787 = vpop.permute.xlu0 %786
      %788 = vrot.lane.b32.xlu0 %v470, 4
      %v789 = vpop.permute.xlu0 %788
      %790 = vrot.lane.b32.xlu0 %v471, 4
      %v791 = vpop.permute.xlu0 %790
      %792 = vrot.lane.b32.xlu0 %v472, 4
      %v793 = vpop.permute.xlu0 %792
      %858 = vrot.lane.b32.xlu0 %v473, 8
      %v859 = vpop.permute.xlu0 %858
      %860 = vrot.lane.b32.xlu0 %v474, 8
      %v861 = vpop.permute.xlu0 %860
      %862 = vrot.lane.b32.xlu0 %v475, 8
      %v863 = vpop.permute.xlu0 %862
      %864 = vrot.lane.b32.xlu0 %v476, 8
      %v865 = vpop.permute.xlu0 %864
      %866 = vrot.lane.b32.xlu0 %v477, 8
      %v867 = vpop.permute.xlu0 %866
      %868 = vrot.lane.b32.xlu0 %v478, 8
      %v869 = vpop.permute.xlu0 %868
      %870 = vrot.lane.b32.xlu0 %v479, 8
      %v871 = vpop.permute.xlu0 %870
      %872 = vrot.lane.b32.xlu0 %v480, 8
      %v873 = vpop.permute.xlu0 %872
      %874 = vrot.lane.b32.xlu0 %v481, 8
      %v875 = vpop.permute.xlu0 %874
      %876 = vrot.lane.b32.xlu0 %v482, 8
      %v877 = vpop.permute.xlu0 %876
      %878 = vrot.lane.b32.xlu0 %v483, 8
      %v879 = vpop.permute.xlu0 %878
      %880 = vrot.lane.b32.xlu0 %v484, 8
      %v881 = vpop.permute.xlu0 %880
      %882 = vrot.lane.b32.xlu0 %v485, 8
      %v883 = vpop.permute.xlu0 %882
      %884 = vrot.lane.b32.xlu0 %v486, 8
      %v885 = vpop.permute.xlu0 %884
      %886 = vrot.lane.b32.xlu0 %v487, 8
      %v887 = vpop.permute.xlu0 %886
      %888 = vrot.lane.b32.xlu0 %v488, 8
      %v889 = vpop.permute.xlu0 %888
      %890 = vrot.lane.b32.xlu0 %v489, 8
      %v891 = vpop.permute.xlu0 %890
      %892 = vrot.lane.b32.xlu0 %v490, 8
      %v893 = vpop.permute.xlu0 %892
      %894 = vrot.lane.b32.xlu0 %v491, 8
      %v895 = vpop.permute.xlu0 %894
      %896 = vrot.lane.b32.xlu0 %v492, 8
      %v897 = vpop.permute.xlu0 %896
      %898 = vrot.lane.b32.xlu0 %v493, 8
      %v899 = vpop.permute.xlu0 %898
      %900 = vrot.lane.b32.xlu0 %v494, 8
      %v901 = vpop.permute.xlu0 %900
      %902 = vrot.lane.b32.xlu0 %v495, 8
      %v903 = vpop.permute.xlu0 %902
      %904 = vrot.lane.b32.xlu0 %v496, 8
      %v905 = vpop.permute.xlu0 %904
      %906 = vrot.lane.b32.xlu0 %v497, 8
      %v907 = vpop.permute.xlu0 %906
      %908 = vrot.lane.b32.xlu0 %v498, 8
      %v909 = vpop.permute.xlu0 %908
      %910 = vrot.lane.b32.xlu0 %v499, 8
      %v911 = vpop.permute.xlu0 %910
      %912 = vrot.lane.b32.xlu0 %v500, 8
      %v913 = vpop.permute.xlu0 %912
      %914 = vrot.lane.b32.xlu0 %v501, 8
      %v915 = vpop.permute.xlu0 %914
      %916 = vrot.lane.b32.xlu0 %v502, 8
      %v917 = vpop.permute.xlu0 %916
      %918 = vrot.lane.b32.xlu0 %v503, 8
      %v919 = vpop.permute.xlu0 %918
      %920 = vrot.lane.b32.xlu0 %v504, 8
      %v921 = vpop.permute.xlu0 %920
      %986 = vrot.lane.b32.xlu0 %v505, 12
      %v987 = vpop.permute.xlu0 %986
      %988 = vrot.lane.b32.xlu0 %v506, 12
      %v989 = vpop.permute.xlu0 %988
      %990 = vrot.lane.b32.xlu0 %v507, 12
      %v991 = vpop.permute.xlu0 %990
      %992 = vrot.lane.b32.xlu0 %v508, 12
      %v993 = vpop.permute.xlu0 %992
      %994 = vrot.lane.b32.xlu0 %v509, 12
      %v995 = vpop.permute.xlu0 %994
      %996 = vrot.lane.b32.xlu0 %v510, 12
      %v997 = vpop.permute.xlu0 %996
      %998 = vrot.lane.b32.xlu0 %v511, 12
      %v999 = vpop.permute.xlu0 %998
      %1000 = vrot.lane.b32.xlu0 %v512, 12
      %v1001 = vpop.permute.xlu0 %1000
      %1002 = vrot.lane.b32.xlu0 %v513, 12
      %v1003 = vpop.permute.xlu0 %1002
      %1004 = vrot.lane.b32.xlu0 %v514, 12
      %v1005 = vpop.permute.xlu0 %1004
      %1006 = vrot.lane.b32.xlu0 %v515, 12
      %v1007 = vpop.permute.xlu0 %1006
      %1008 = vrot.lane.b32.xlu0 %v516, 12
      %v1009 = vpop.permute.xlu0 %1008
      %1010 = vrot.lane.b32.xlu0 %v517, 12
      %v1011 = vpop.permute.xlu0 %1010
      %1012 = vrot.lane.b32.xlu0 %v518, 12
      %v1013 = vpop.permute.xlu0 %1012
      %1014 = vrot.lane.b32.xlu0 %v519, 12
      %v1015 = vpop.permute.xlu0 %1014
      %1016 = vrot.lane.b32.xlu0 %v520, 12
      %v1017 = vpop.permute.xlu0 %1016
      %1018 = vrot.lane.b32.xlu0 %v521, 12
      %v1019 = vpop.permute.xlu0 %1018
      %1020 = vrot.lane.b32.xlu0 %v522, 12
      %v1021 = vpop.permute.xlu0 %1020
      %1022 = vrot.lane.b32.xlu0 %v523, 12
      %v1023 = vpop.permute.xlu0 %1022
      %1024 = vrot.lane.b32.xlu0 %v524, 12
      %v1025 = vpop.permute.xlu0 %1024
      %1026 = vrot.lane.b32.xlu0 %v525, 12
      %v1027 = vpop.permute.xlu0 %1026
      %1028 = vrot.lane.b32.xlu0 %v526, 12
      %v1029 = vpop.permute.xlu0 %1028
      %1030 = vrot.lane.b32.xlu0 %v527, 12
      %v1031 = vpop.permute.xlu0 %1030
      %1032 = vrot.lane.b32.xlu0 %v528, 12
      %v1033 = vpop.permute.xlu0 %1032
      %1034 = vrot.lane.b32.xlu0 %v529, 12
      %v1035 = vpop.permute.xlu0 %1034
      %1036 = vrot.lane.b32.xlu0 %v530, 12
      %v1037 = vpop.permute.xlu0 %1036
      %1038 = vrot.lane.b32.xlu0 %v531, 12
      %v1039 = vpop.permute.xlu0 %1038
      %1040 = vrot.lane.b32.xlu0 %v532, 12
      %v1041 = vpop.permute.xlu0 %1040
      %1042 = vrot.lane.b32.xlu0 %v533, 12
      %v1043 = vpop.permute.xlu0 %1042
      %1044 = vrot.lane.b32.xlu0 %v534, 12
      %v1045 = vpop.permute.xlu0 %1044
      %1046 = vrot.lane.b32.xlu0 %v535, 12
      %v1047 = vpop.permute.xlu0 %1046
      %1048 = vrot.lane.b32.xlu0 %v536, 12
      %v1049 = vpop.permute.xlu0 %1048
      %1114 = vrot.lane.b32.xlu0 %v537, 16
      %v1115 = vpop.permute.xlu0 %1114
      %1116 = vrot.lane.b32.xlu0 %v538, 16
      %v1117 = vpop.permute.xlu0 %1116
      %1118 = vrot.lane.b32.xlu0 %v539, 16
      %v1119 = vpop.permute.xlu0 %1118
      %1120 = vrot.lane.b32.xlu0 %v540, 16
      %v1121 = vpop.permute.xlu0 %1120
      %1122 = vrot.lane.b32.xlu0 %v541, 16
      %v1123 = vpop.permute.xlu0 %1122
      %1124 = vrot.lane.b32.xlu0 %v542, 16
      %v1125 = vpop.permute.xlu0 %1124
      %1126 = vrot.lane.b32.xlu0 %v543, 16
      %v1127 = vpop.permute.xlu0 %1126
      %1128 = vrot.lane.b32.xlu0 %v544, 16
      %v1129 = vpop.permute.xlu0 %1128
      %1130 = vrot.lane.b32.xlu0 %v545, 16
      %v1131 = vpop.permute.xlu0 %1130
      %1132 = vrot.lane.b32.xlu0 %v546, 16
      %v1133 = vpop.permute.xlu0 %1132
      %1134 = vrot.lane.b32.xlu0 %v547, 16
      %v1135 = vpop.permute.xlu0 %1134
      %1136 = vrot.lane.b32.xlu0 %v548, 16
      %v1137 = vpop.permute.xlu0 %1136
      %1138 = vrot.lane.b32.xlu0 %v549, 16
      %v1139 = vpop.permute.xlu0 %1138
      %1140 = vrot.lane.b32.xlu0 %v550, 16
      %v1141 = vpop.permute.xlu0 %1140
      %1142 = vrot.lane.b32.xlu0 %v551, 16
      %v1143 = vpop.permute.xlu0 %1142
      %1144 = vrot.lane.b32.xlu0 %v552, 16
      %v1145 = vpop.permute.xlu0 %1144
      %1146 = vrot.lane.b32.xlu0 %v553, 16
      %v1147 = vpop.permute.xlu0 %1146
      %1148 = vrot.lane.b32.xlu0 %v554, 16
      %v1149 = vpop.permute.xlu0 %1148
      %1150 = vrot.lane.b32.xlu0 %v555, 16
      %v1151 = vpop.permute.xlu0 %1150
      %1152 = vrot.lane.b32.xlu0 %v556, 16
      %v1153 = vpop.permute.xlu0 %1152
      %1154 = vrot.lane.b32.xlu0 %v557, 16
      %v1155 = vpop.permute.xlu0 %1154
      %1156 = vrot.lane.b32.xlu0 %v558, 16
      %v1157 = vpop.permute.xlu0 %1156
      %1158 = vrot.lane.b32.xlu0 %v559, 16
      %v1159 = vpop.permute.xlu0 %1158
      %1160 = vrot.lane.b32.xlu0 %v560, 16
      %v1161 = vpop.permute.xlu0 %1160
      %1162 = vrot.lane.b32.xlu0 %v561, 16
      %v1163 = vpop.permute.xlu0 %1162
      %1164 = vrot.lane.b32.xlu0 %v562, 16
      %v1165 = vpop.permute.xlu0 %1164
      %1166 = vrot.lane.b32.xlu0 %v563, 16
      %v1167 = vpop.permute.xlu0 %1166
      %1168 = vrot.lane.b32.xlu0 %v564, 16
      %v1169 = vpop.permute.xlu0 %1168
      %1170 = vrot.lane.b32.xlu0 %v565, 16
      %v1171 = vpop.permute.xlu0 %1170
      %1172 = vrot.lane.b32.xlu0 %v566, 16
      %v1173 = vpop.permute.xlu0 %1172
      %1174 = vrot.lane.b32.xlu0 %v567, 16
      %v1175 = vpop.permute.xlu0 %1174
      %1176 = vrot.lane.b32.xlu0 %v568, 16
      %v1177 = vpop.permute.xlu0 %1176
      %1242 = vrot.lane.b32.xlu0 %v569, 20
      %v1243 = vpop.permute.xlu0 %1242
      %1244 = vrot.lane.b32.xlu0 %v570, 20
      %v1245 = vpop.permute.xlu0 %1244
      %1246 = vrot.lane.b32.xlu0 %v571, 20
      %v1247 = vpop.permute.xlu0 %1246
      %1248 = vrot.lane.b32.xlu0 %v572, 20
      %v1249 = vpop.permute.xlu0 %1248
      %1250 = vrot.lane.b32.xlu0 %v573, 20
      %v1251 = vpop.permute.xlu0 %1250
      %1252 = vrot.lane.b32.xlu0 %v574, 20
      %v1253 = vpop.permute.xlu0 %1252
      %1254 = vrot.lane.b32.xlu0 %v575, 20
      %v1255 = vpop.permute.xlu0 %1254
      %1256 = vrot.lane.b32.xlu0 %v576, 20
      %v1257 = vpop.permute.xlu0 %1256
      %1258 = vrot.lane.b32.xlu0 %v577, 20
      %v1259 = vpop.permute.xlu0 %1258
      %1260 = vrot.lane.b32.xlu0 %v578, 20
      %v1261 = vpop.permute.xlu0 %1260
      %1262 = vrot.lane.b32.xlu0 %v579, 20
      %v1263 = vpop.permute.xlu0 %1262
      %1264 = vrot.lane.b32.xlu0 %v580, 20
      %v1265 = vpop.permute.xlu0 %1264
      %1266 = vrot.lane.b32.xlu0 %v581, 20
      %v1267 = vpop.permute.xlu0 %1266
      %1268 = vrot.lane.b32.xlu0 %v582, 20
      %v1269 = vpop.permute.xlu0 %1268
      %1270 = vrot.lane.b32.xlu0 %v583, 20
      %v1271 = vpop.permute.xlu0 %1270
      %1272 = vrot.lane.b32.xlu0 %v584, 20
      %v1273 = vpop.permute.xlu0 %1272
      %1274 = vrot.lane.b32.xlu0 %v585, 20
      %v1275 = vpop.permute.xlu0 %1274
      %1276 = vrot.lane.b32.xlu0 %v586, 20
      %v1277 = vpop.permute.xlu0 %1276
      %1278 = vrot.lane.b32.xlu0 %v587, 20
      %v1279 = vpop.permute.xlu0 %1278
      %1280 = vrot.lane.b32.xlu0 %v588, 20
      %v1281 = vpop.permute.xlu0 %1280
      %1282 = vrot.lane.b32.xlu0 %v589, 20
      %v1283 = vpop.permute.xlu0 %1282
      %1284 = vrot.lane.b32.xlu0 %v590, 20
      %v1285 = vpop.permute.xlu0 %1284
      %1286 = vrot.lane.b32.xlu0 %v591, 20
      %v1287 = vpop.permute.xlu0 %1286
      %1288 = vrot.lane.b32.xlu0 %v592, 20
      %v1289 = vpop.permute.xlu0 %1288
      %1290 = vrot.lane.b32.xlu0 %v593, 20
      %v1291 = vpop.permute.xlu0 %1290
      %1292 = vrot.lane.b32.xlu0 %v594, 20
      %v1293 = vpop.permute.xlu0 %1292
      %1294 = vrot.lane.b32.xlu0 %v595, 20
      %v1295 = vpop.permute.xlu0 %1294
      %1296 = vrot.lane.b32.xlu0 %v596, 20
      %v1297 = vpop.permute.xlu0 %1296
      %1298 = vrot.lane.b32.xlu0 %v597, 20
      %v1299 = vpop.permute.xlu0 %1298
      %1300 = vrot.lane.b32.xlu0 %v598, 20
      %v1301 = vpop.permute.xlu0 %1300
      %1302 = vrot.lane.b32.xlu0 %v599, 20
      %v1303 = vpop.permute.xlu0 %1302
      %1304 = vrot.lane.b32.xlu0 %v600, 20
      %v1305 = vpop.permute.xlu0 %1304
      %1370 = vrot.lane.b32.xlu0 %v602, 24
      %v1371 = vpop.permute.xlu0 %1370
      %1372 = vrot.lane.b32.xlu0 %v603, 24
      %v1373 = vpop.permute.xlu0 %1372
      %1374 = vrot.lane.b32.xlu0 %v604, 24
      %v1375 = vpop.permute.xlu0 %1374
      %1376 = vrot.lane.b32.xlu0 %v605, 24
      %v1377 = vpop.permute.xlu0 %1376
      %1378 = vrot.lane.b32.xlu0 %v606, 24
      %v1379 = vpop.permute.xlu0 %1378
      %1380 = vrot.lane.b32.xlu0 %v607, 24
      %v1381 = vpop.permute.xlu0 %1380
      %1382 = vrot.lane.b32.xlu0 %v608, 24
      %v1383 = vpop.permute.xlu0 %1382
      %1384 = vrot.lane.b32.xlu0 %v609, 24
      %v1385 = vpop.permute.xlu0 %1384
      %1386 = vrot.lane.b32.xlu0 %v610, 24
      %v1387 = vpop.permute.xlu0 %1386
      %1388 = vrot.lane.b32.xlu0 %v611, 24
      %v1389 = vpop.permute.xlu0 %1388
      %1390 = vrot.lane.b32.xlu0 %v612, 24
      %v1391 = vpop.permute.xlu0 %1390
      %1392 = vrot.lane.b32.xlu0 %v613, 24
      %v1393 = vpop.permute.xlu0 %1392
      %1394 = vrot.lane.b32.xlu0 %v614, 24
      %v1395 = vpop.permute.xlu0 %1394
      %1396 = vrot.lane.b32.xlu0 %v615, 24
      %v1397 = vpop.permute.xlu0 %1396
      %1398 = vrot.lane.b32.xlu0 %v616, 24
      %v1399 = vpop.permute.xlu0 %1398
      %1400 = vrot.lane.b32.xlu0 %v617, 24
      %v1401 = vpop.permute.xlu0 %1400
      %1402 = vrot.lane.b32.xlu0 %v618, 24
      %v1403 = vpop.permute.xlu0 %1402
      %1404 = vrot.lane.b32.xlu0 %v619, 24
      %v1405 = vpop.permute.xlu0 %1404
      %1406 = vrot.lane.b32.xlu0 %v620, 24
      %v1407 = vpop.permute.xlu0 %1406
      %1408 = vrot.lane.b32.xlu0 %v621, 24
      %v1409 = vpop.permute.xlu0 %1408
      %1410 = vrot.lane.b32.xlu0 %v622, 24
      %v1411 = vpop.permute.xlu0 %1410
      %1412 = vrot.lane.b32.xlu0 %v623, 24
      %v1413 = vpop.permute.xlu0 %1412
      %1414 = vrot.lane.b32.xlu0 %v624, 24
      %v1415 = vpop.permute.xlu0 %1414
      %1416 = vrot.lane.b32.xlu0 %v625, 24
      %v1417 = vpop.permute.xlu0 %1416
      %1418 = vrot.lane.b32.xlu0 %v626, 24
      %v1419 = vpop.permute.xlu0 %1418
      %1420 = vrot.lane.b32.xlu0 %v627, 24
      %v1421 = vpop.permute.xlu0 %1420
      %1422 = vrot.lane.b32.xlu0 %v628, 24
      %v1423 = vpop.permute.xlu0 %1422
      %1424 = vrot.lane.b32.xlu0 %v629, 24
      %v1425 = vpop.permute.xlu0 %1424
      %1426 = vrot.lane.b32.xlu0 %v630, 24
      %v1427 = vpop.permute.xlu0 %1426
      %1428 = vrot.lane.b32.xlu0 %v631, 24
      %v1429 = vpop.permute.xlu0 %1428
      %1430 = vrot.lane.b32.xlu0 %v632, 24
      %v1431 = vpop.permute.xlu0 %1430
      %1432 = vrot.lane.b32.xlu0 %v633, 24
      %v1433 = vpop.permute.xlu0 %1432
      %1498 = vrot.lane.b32.xlu0 %v634, 28
      %v1499 = vpop.permute.xlu0 %1498
      %1500 = vrot.lane.b32.xlu0 %v635, 28
      %v1501 = vpop.permute.xlu0 %1500
      %1502 = vrot.lane.b32.xlu0 %v636, 28
      %v1503 = vpop.permute.xlu0 %1502
      %1504 = vrot.lane.b32.xlu0 %v637, 28
      %v1505 = vpop.permute.xlu0 %1504
      %1506 = vrot.lane.b32.xlu0 %v638, 28
      %v1507 = vpop.permute.xlu0 %1506
      %1508 = vrot.lane.b32.xlu0 %v639, 28
      %v1509 = vpop.permute.xlu0 %1508
      %1510 = vrot.lane.b32.xlu0 %v640, 28
      %v1511 = vpop.permute.xlu0 %1510
      %1512 = vrot.lane.b32.xlu0 %v641, 28
      %v1513 = vpop.permute.xlu0 %1512
      %1514 = vrot.lane.b32.xlu0 %v642, 28
      %v1515 = vpop.permute.xlu0 %1514
      %1516 = vrot.lane.b32.xlu0 %v643, 28
      %v1517 = vpop.permute.xlu0 %1516
      %1518 = vrot.lane.b32.xlu0 %v644, 28
      %v1519 = vpop.permute.xlu0 %1518
      %1520 = vrot.lane.b32.xlu0 %v645, 28
      %v1521 = vpop.permute.xlu0 %1520
      %1522 = vrot.lane.b32.xlu0 %v646, 28
      %v1523 = vpop.permute.xlu0 %1522
      %1524 = vrot.lane.b32.xlu0 %v647, 28
      %v1525 = vpop.permute.xlu0 %1524
      %1526 = vrot.lane.b32.xlu0 %v648, 28
      %v1527 = vpop.permute.xlu0 %1526
      %1528 = vrot.lane.b32.xlu0 %v649, 28
      %v1529 = vpop.permute.xlu0 %1528
      %1530 = vrot.lane.b32.xlu0 %v650, 28
      %v1531 = vpop.permute.xlu0 %1530
      %1532 = vrot.lane.b32.xlu0 %v651, 28
      %v1533 = vpop.permute.xlu0 %1532
      %1534 = vrot.lane.b32.xlu0 %v652, 28
      %v1535 = vpop.permute.xlu0 %1534
      %1536 = vrot.lane.b32.xlu0 %v653, 28
      %v1537 = vpop.permute.xlu0 %1536
      %1538 = vrot.lane.b32.xlu0 %v654, 28
      %v1539 = vpop.permute.xlu0 %1538
      %1540 = vrot.lane.b32.xlu0 %v655, 28
      %v1541 = vpop.permute.xlu0 %1540
      %1542 = vrot.lane.b32.xlu0 %v656, 28
      %v1543 = vpop.permute.xlu0 %1542
      %1544 = vrot.lane.b32.xlu0 %v657, 28
      %v1545 = vpop.permute.xlu0 %1544
      %1546 = vrot.lane.b32.xlu0 %v658, 28
      %v1547 = vpop.permute.xlu0 %1546
      %1548 = vrot.lane.b32.xlu0 %v659, 28
      %v1549 = vpop.permute.xlu0 %1548
      %1550 = vrot.lane.b32.xlu0 %v660, 28
      %v1551 = vpop.permute.xlu0 %1550
      %1552 = vrot.lane.b32.xlu0 %v661, 28
      %v1553 = vpop.permute.xlu0 %1552
      %1554 = vrot.lane.b32.xlu0 %v662, 28
      %v1555 = vpop.permute.xlu0 %1554
      %1556 = vrot.lane.b32.xlu0 %v663, 28
      %v1557 = vpop.permute.xlu0 %1556
      %1558 = vrot.lane.b32.xlu0 %v664, 28
      %v1559 = vpop.permute.xlu0 %1558
      %1560 = vrot.lane.b32.xlu0 %v665, 28
      %v1561 = vpop.permute.xlu0 %1560
      %1626 = vrot.lane.b32.xlu0 %v666, 32
      %v1627 = vpop.permute.xlu0 %1626
      %1628 = vrot.lane.b32.xlu0 %v667, 32
      %v1629 = vpop.permute.xlu0 %1628
      %1630 = vrot.lane.b32.xlu0 %v668, 32
      %v1631 = vpop.permute.xlu0 %1630
      %1632 = vrot.lane.b32.xlu0 %v669, 32
      %v1633 = vpop.permute.xlu0 %1632
      %1634 = vrot.lane.b32.xlu0 %v670, 32
      %v1635 = vpop.permute.xlu0 %1634
      %1636 = vrot.lane.b32.xlu0 %v671, 32
      %v1637 = vpop.permute.xlu0 %1636
      %1638 = vrot.lane.b32.xlu0 %v672, 32
      %v1639 = vpop.permute.xlu0 %1638
      %1640 = vrot.lane.b32.xlu0 %v673, 32
      %v1641 = vpop.permute.xlu0 %1640
      %1642 = vrot.lane.b32.xlu0 %v674, 32
      %v1643 = vpop.permute.xlu0 %1642
      %1644 = vrot.lane.b32.xlu0 %v675, 32
      %v1645 = vpop.permute.xlu0 %1644
      %1646 = vrot.lane.b32.xlu0 %v676, 32
      %v1647 = vpop.permute.xlu0 %1646
      %1648 = vrot.lane.b32.xlu0 %v677, 32
      %v1649 = vpop.permute.xlu0 %1648
      %1650 = vrot.lane.b32.xlu0 %v678, 32
      %v1651 = vpop.permute.xlu0 %1650
      %1652 = vrot.lane.b32.xlu0 %v679, 32
      %v1653 = vpop.permute.xlu0 %1652
      %1654 = vrot.lane.b32.xlu0 %v680, 32
      %v1655 = vpop.permute.xlu0 %1654
      %1656 = vrot.lane.b32.xlu0 %v681, 32
      %v1657 = vpop.permute.xlu0 %1656
      %1658 = vrot.lane.b32.xlu0 %v682, 32
      %v1659 = vpop.permute.xlu0 %1658
      %1660 = vrot.lane.b32.xlu0 %v683, 32
      %v1661 = vpop.permute.xlu0 %1660
      %1662 = vrot.lane.b32.xlu0 %v684, 32
      %v1663 = vpop.permute.xlu0 %1662
      %1664 = vrot.lane.b32.xlu0 %v685, 32
      %v1665 = vpop.permute.xlu0 %1664
      %1666 = vrot.lane.b32.xlu0 %v686, 32
      %v1667 = vpop.permute.xlu0 %1666
      %1668 = vrot.lane.b32.xlu0 %v687, 32
      %v1669 = vpop.permute.xlu0 %1668
      %1670 = vrot.lane.b32.xlu0 %v688, 32
      %v1671 = vpop.permute.xlu0 %1670
      %1672 = vrot.lane.b32.xlu0 %v689, 32
      %v1673 = vpop.permute.xlu0 %1672
      %1674 = vrot.lane.b32.xlu0 %v690, 32
      %v1675 = vpop.permute.xlu0 %1674
      %1676 = vrot.lane.b32.xlu0 %v691, 32
      %v1677 = vpop.permute.xlu0 %1676
      %1678 = vrot.lane.b32.xlu0 %v692, 32
      %v1679 = vpop.permute.xlu0 %1678
      %1680 = vrot.lane.b32.xlu0 %v693, 32
      %v1681 = vpop.permute.xlu0 %1680
      %1682 = vrot.lane.b32.xlu0 %v694, 32
      %v1683 = vpop.permute.xlu0 %1682
      %1684 = vrot.lane.b32.xlu0 %v695, 32
      %v1685 = vpop.permute.xlu0 %1684
      %1686 = vrot.lane.b32.xlu0 %v696, 32
      %v1687 = vpop.permute.xlu0 %1686
      %1688 = vrot.lane.b32.xlu0 %v697, 32
      %v1689 = vpop.permute.xlu0 %1688
      %v1722 = vsel %vm320, %v409, %v731
      %v1723 = vsel %vm320, %v410, %v733
      %v1724 = vsel %vm320, %v411, %v735
      %v1725 = vsel %vm320, %v412, %v737
      %v1726 = vsel %vm320, %v413, %v739
      %v1727 = vsel %vm320, %v414, %v741
      %v1728 = vsel %vm320, %v415, %v743
      %v1729 = vsel %vm320, %v416, %v745
      %v1730 = vsel %vm320, %v417, %v747
      %v1731 = vsel %vm320, %v418, %v749
      %v1732 = vsel %vm320, %v419, %v751
      %v1733 = vsel %vm320, %v420, %v753
      %v1734 = vsel %vm320, %v421, %v755
      %v1735 = vsel %vm320, %v422, %v757
      %v1736 = vsel %vm320, %v423, %v759
      %v1737 = vsel %vm320, %v424, %v761
      %v1738 = vsel %vm320, %v425, %v763
      %v1739 = vsel %vm320, %v426, %v765
      %v1740 = vsel %vm320, %v427, %v767
      %v1741 = vsel %vm320, %v428, %v769
      %v1742 = vsel %vm320, %v429, %v771
      %v1743 = vsel %vm320, %v430, %v773
      %v1744 = vsel %vm320, %v431, %v775
      %v1745 = vsel %vm320, %v432, %v777
      %v1746 = vsel %vm320, %v433, %v779
      %v1747 = vsel %vm320, %v434, %v781
      %v1748 = vsel %vm320, %v435, %v783
      %v1749 = vsel %vm320, %v436, %v785
      %v1750 = vsel %vm320, %v437, %v787
      %v1751 = vsel %vm320, %v438, %v789
      %v1752 = vsel %vm320, %v439, %v791
      %v1753 = vsel %vm320, %v440, %v793
      %vm1754 = vcmask 64512
      %v1755 = vsel %vm1754, %v1722, %v859
      %v1756 = vsel %vm1754, %v1723, %v861
      %v1757 = vsel %vm1754, %v1724, %v863
      %v1758 = vsel %vm1754, %v1725, %v865
      %v1759 = vsel %vm1754, %v1726, %v867
      %v1760 = vsel %vm1754, %v1727, %v869
      %v1761 = vsel %vm1754, %v1728, %v871
      %v1762 = vsel %vm1754, %v1729, %v873
      %v1763 = vsel %vm1754, %v1730, %v875
      %v1764 = vsel %vm1754, %v1731, %v877
      %v1765 = vsel %vm1754, %v1732, %v879
      %v1766 = vsel %vm1754, %v1733, %v881
      %v1767 = vsel %vm1754, %v1734, %v883
      %v1768 = vsel %vm1754, %v1735, %v885
      %v1769 = vsel %vm1754, %v1736, %v887
      %v1770 = vsel %vm1754, %v1737, %v889
      %v1771 = vsel %vm1754, %v1738, %v891
      %v1772 = vsel %vm1754, %v1739, %v893
      %v1773 = vsel %vm1754, %v1740, %v895
      %v1774 = vsel %vm1754, %v1741, %v897
      %v1775 = vsel %vm1754, %v1742, %v899
      %v1776 = vsel %vm1754, %v1743, %v901
      %v1777 = vsel %vm1754, %v1744, %v903
      %v1778 = vsel %vm1754, %v1745, %v905
      %v1779 = vsel %vm1754, %v1746, %v907
      %v1780 = vsel %vm1754, %v1747, %v909
      %v1781 = vsel %vm1754, %v1748, %v911
      %v1782 = vsel %vm1754, %v1749, %v913
      %v1783 = vsel %vm1754, %v1750, %v915
      %v1784 = vsel %vm1754, %v1751, %v917
      %v1785 = vsel %vm1754, %v1752, %v919
      %v1786 = vsel %vm1754, %v1753, %v921
      %vm1787 = vcmask 97280
      %v1788 = vsel %vm1787, %v1755, %v987
      %v1789 = vsel %vm1787, %v1756, %v989
      %v1790 = vsel %vm1787, %v1757, %v991
      %v1791 = vsel %vm1787, %v1758, %v993
      %v1792 = vsel %vm1787, %v1759, %v995
      %v1793 = vsel %vm1787, %v1760, %v997
      %v1794 = vsel %vm1787, %v1761, %v999
      %v1795 = vsel %vm1787, %v1762, %v1001
      %v1796 = vsel %vm1787, %v1763, %v1003
      %v1797 = vsel %vm1787, %v1764, %v1005
      %v1798 = vsel %vm1787, %v1765, %v1007
      %v1799 = vsel %vm1787, %v1766, %v1009
      %v1800 = vsel %vm1787, %v1767, %v1011
      %v1801 = vsel %vm1787, %v1768, %v1013
      %v1802 = vsel %vm1787, %v1769, %v1015
      %v1803 = vsel %vm1787, %v1770, %v1017
      %v1804 = vsel %vm1787, %v1771, %v1019
      %v1805 = vsel %vm1787, %v1772, %v1021
      %v1806 = vsel %vm1787, %v1773, %v1023
      %v1807 = vsel %vm1787, %v1774, %v1025
      %v1808 = vsel %vm1787, %v1775, %v1027
      %v1809 = vsel %vm1787, %v1776, %v1029
      %v1810 = vsel %vm1787, %v1777, %v1031
      %v1811 = vsel %vm1787, %v1778, %v1033
      %v1812 = vsel %vm1787, %v1779, %v1035
      %v1813 = vsel %vm1787, %v1780, %v1037
      %v1814 = vsel %vm1787, %v1781, %v1039
      %v1815 = vsel %vm1787, %v1782, %v1041
      %v1816 = vsel %vm1787, %v1783, %v1043
      %v1817 = vsel %vm1787, %v1784, %v1045
      %v1818 = vsel %vm1787, %v1785, %v1047
      %v1819 = vsel %vm1787, %v1786, %v1049
      %vm1820 = vcmask 130048
      %v1821 = vsel %vm1820, %v1788, %v1115
      %v1822 = vsel %vm1820, %v1789, %v1117
      %v1823 = vsel %vm1820, %v1790, %v1119
      %v1824 = vsel %vm1820, %v1791, %v1121
      %v1825 = vsel %vm1820, %v1792, %v1123
      %v1826 = vsel %vm1820, %v1793, %v1125
      %v1827 = vsel %vm1820, %v1794, %v1127
      %v1828 = vsel %vm1820, %v1795, %v1129
      %v1829 = vsel %vm1820, %v1796, %v1131
      %v1830 = vsel %vm1820, %v1797, %v1133
      %v1831 = vsel %vm1820, %v1798, %v1135
      %v1832 = vsel %vm1820, %v1799, %v1137
      %v1833 = vsel %vm1820, %v1800, %v1139
      %v1834 = vsel %vm1820, %v1801, %v1141
      %v1835 = vsel %vm1820, %v1802, %v1143
      %v1836 = vsel %vm1820, %v1803, %v1145
      %v1837 = vsel %vm1820, %v1804, %v1147
      %v1838 = vsel %vm1820, %v1805, %v1149
      %v1839 = vsel %vm1820, %v1806, %v1151
      %v1840 = vsel %vm1820, %v1807, %v1153
      %v1841 = vsel %vm1820, %v1808, %v1155
      %v1842 = vsel %vm1820, %v1809, %v1157
      %v1843 = vsel %vm1820, %v1810, %v1159
      %v1844 = vsel %vm1820, %v1811, %v1161
      %v1845 = vsel %vm1820, %v1812, %v1163
      %v1846 = vsel %vm1820, %v1813, %v1165
      %v1847 = vsel %vm1820, %v1814, %v1167
      %v1848 = vsel %vm1820, %v1815, %v1169
      %v1849 = vsel %vm1820, %v1816, %v1171
      %v1850 = vsel %vm1820, %v1817, %v1173
      %v1851 = vsel %vm1820, %v1818, %v1175
      %v1852 = vsel %vm1820, %v1819, %v1177
      %vm1853 = vcmask 162816
      %v1854 = vsel %vm1853, %v1821, %v1243
      %v1855 = vsel %vm1853, %v1822, %v1245
      %v1856 = vsel %vm1853, %v1823, %v1247
      %v1857 = vsel %vm1853, %v1824, %v1249
      %v1858 = vsel %vm1853, %v1825, %v1251
      %v1859 = vsel %vm1853, %v1826, %v1253
      %v1860 = vsel %vm1853, %v1827, %v1255
      %v1861 = vsel %vm1853, %v1828, %v1257
      %v1862 = vsel %vm1853, %v1829, %v1259
      %v1863 = vsel %vm1853, %v1830, %v1261
      %v1864 = vsel %vm1853, %v1831, %v1263
      %v1865 = vsel %vm1853, %v1832, %v1265
      %v1866 = vsel %vm1853, %v1833, %v1267
      %v1867 = vsel %vm1853, %v1834, %v1269
      %v1868 = vsel %vm1853, %v1835, %v1271
      %v1869 = vsel %vm1853, %v1836, %v1273
      %v1870 = vsel %vm1853, %v1837, %v1275
      %v1871 = vsel %vm1853, %v1838, %v1277
      %v1872 = vsel %vm1853, %v1839, %v1279
      %v1873 = vsel %vm1853, %v1840, %v1281
      %v1874 = vsel %vm1853, %v1841, %v1283
      %v1875 = vsel %vm1853, %v1842, %v1285
      %v1876 = vsel %vm1853, %v1843, %v1287
      %v1877 = vsel %vm1853, %v1844, %v1289
      %v1878 = vsel %vm1853, %v1845, %v1291
      %v1879 = vsel %vm1853, %v1846, %v1293
      %v1880 = vsel %vm1853, %v1847, %v1295
      %v1881 = vsel %vm1853, %v1848, %v1297
      %v1882 = vsel %vm1853, %v1849, %v1299
      %v1883 = vsel %vm1853, %v1850, %v1301
      %v1884 = vsel %vm1853, %v1851, %v1303
      %v1885 = vsel %vm1853, %v1852, %v1305
      %vm1886 = vcmask 195584
      %v1887 = vsel %vm1886, %v1854, %v1371
      %v1888 = vsel %vm1886, %v1855, %v1373
      %v1889 = vsel %vm1886, %v1856, %v1375
      %v1890 = vsel %vm1886, %v1857, %v1377
      %v1891 = vsel %vm1886, %v1858, %v1379
      %v1892 = vsel %vm1886, %v1859, %v1381
      %v1893 = vsel %vm1886, %v1860, %v1383
      %v1894 = vsel %vm1886, %v1861, %v1385
      %v1895 = vsel %vm1886, %v1862, %v1387
      %v1896 = vsel %vm1886, %v1863, %v1389
      %v1897 = vsel %vm1886, %v1864, %v1391
      %v1898 = vsel %vm1886, %v1865, %v1393
      %v1899 = vsel %vm1886, %v1866, %v1395
      %v1900 = vsel %vm1886, %v1867, %v1397
      %v1901 = vsel %vm1886, %v1868, %v1399
      %v1902 = vsel %vm1886, %v1869, %v1401
      %v1903 = vsel %vm1886, %v1870, %v1403
      %v1904 = vsel %vm1886, %v1871, %v1405
      %v1905 = vsel %vm1886, %v1872, %v1407
      %v1906 = vsel %vm1886, %v1873, %v1409
      %v1907 = vsel %vm1886, %v1874, %v1411
      %v1908 = vsel %vm1886, %v1875, %v1413
      %v1909 = vsel %vm1886, %v1876, %v1415
      %v1910 = vsel %vm1886, %v1877, %v1417
      %v1911 = vsel %vm1886, %v1878, %v1419
      %v1912 = vsel %vm1886, %v1879, %v1421
      %v1913 = vsel %vm1886, %v1880, %v1423
      %v1914 = vsel %vm1886, %v1881, %v1425
      %v1915 = vsel %vm1886, %v1882, %v1427
      %v1916 = vsel %vm1886, %v1883, %v1429
      %v1917 = vsel %vm1886, %v1884, %v1431
      %v1918 = vsel %vm1886, %v1885, %v1433
      %vm1919 = vcmask 228352
      %v1920 = vsel %vm1919, %v1887, %v1499
      %v1921 = vsel %vm1919, %v1888, %v1501
      %v1922 = vsel %vm1919, %v1889, %v1503
      %v1923 = vsel %vm1919, %v1890, %v1505
      %v1924 = vsel %vm1919, %v1891, %v1507
      %v1925 = vsel %vm1919, %v1892, %v1509
      %v1926 = vsel %vm1919, %v1893, %v1511
      %v1927 = vsel %vm1919, %v1894, %v1513
      %v1928 = vsel %vm1919, %v1895, %v1515
      %v1929 = vsel %vm1919, %v1896, %v1517
      %v1930 = vsel %vm1919, %v1897, %v1519
      %v1931 = vsel %vm1919, %v1898, %v1521
      %v1932 = vsel %vm1919, %v1899, %v1523
      %v1933 = vsel %vm1919, %v1900, %v1525
      %v1934 = vsel %vm1919, %v1901, %v1527
      %v1935 = vsel %vm1919, %v1902, %v1529
      %v1936 = vsel %vm1919, %v1903, %v1531
      %v1937 = vsel %vm1919, %v1904, %v1533
      %v1938 = vsel %vm1919, %v1905, %v1535
      %v1939 = vsel %vm1919, %v1906, %v1537
      %v1940 = vsel %vm1919, %v1907, %v1539
      %v1941 = vsel %vm1919, %v1908, %v1541
      %v1942 = vsel %vm1919, %v1909, %v1543
      %v1943 = vsel %vm1919, %v1910, %v1545
      %v1944 = vsel %vm1919, %v1911, %v1547
      %v1945 = vsel %vm1919, %v1912, %v1549
      %v1946 = vsel %vm1919, %v1913, %v1551
      %v1947 = vsel %vm1919, %v1914, %v1553
      %v1948 = vsel %vm1919, %v1915, %v1555
      %v1949 = vsel %vm1919, %v1916, %v1557
      %v1950 = vsel %vm1919, %v1917, %v1559
      %v1951 = vsel %vm1919, %v1918, %v1561
      %vm1952 = vcmask 261120
      %v1953 = vsel %vm1952, %v1920, %v1627
      %v1954 = vsel %vm1952, %v1921, %v1629
      %v1955 = vsel %vm1952, %v1922, %v1631
      %v1956 = vsel %vm1952, %v1923, %v1633
      %v1957 = vsel %vm1952, %v1924, %v1635
      %v1958 = vsel %vm1952, %v1925, %v1637
      %v1959 = vsel %vm1952, %v1926, %v1639
      %v1960 = vsel %vm1952, %v1927, %v1641
      %v1961 = vsel %vm1952, %v1928, %v1643
      %v1962 = vsel %vm1952, %v1929, %v1645
      %v1963 = vsel %vm1952, %v1930, %v1647
      %v1964 = vsel %vm1952, %v1931, %v1649
      %v1965 = vsel %vm1952, %v1932, %v1651
      %v1966 = vsel %vm1952, %v1933, %v1653
      %v1967 = vsel %vm1952, %v1934, %v1655
      %v1968 = vsel %vm1952, %v1935, %v1657
      %v1969 = vsel %vm1952, %v1936, %v1659
      %v1970 = vsel %vm1952, %v1937, %v1661
      %v1971 = vsel %vm1952, %v1938, %v1663
      %v1972 = vsel %vm1952, %v1939, %v1665
      %v1973 = vsel %vm1952, %v1940, %v1667
      %v1974 = vsel %vm1952, %v1941, %v1669
      %v1975 = vsel %vm1952, %v1942, %v1671
      %v1976 = vsel %vm1952, %v1943, %v1673
      %v1977 = vsel %vm1952, %v1944, %v1675
      %v1978 = vsel %vm1952, %v1945, %v1677
      %v1979 = vsel %vm1952, %v1946, %v1679
      %v1980 = vsel %vm1952, %v1947, %v1681
      %v1981 = vsel %vm1952, %v1948, %v1683
      %v1982 = vsel %vm1952, %v1949, %v1685
      %v1983 = vsel %vm1952, %v1950, %v1687
      %v1984 = vsel %vm1952, %v1951, %v1689
      %v1985 = vld [vmem:[%s1] sm:$0xff]
      %v1986 = vld [vmem:[%s1 + $0x8] sm:$0xff]
      %v1987 = vld [vmem:[%s1 + $0x10] sm:$0xff]
      %v1988 = vld [vmem:[%s1 + $0x18] sm:$0xff]
      %v1989 = vld [vmem:[%s1 + $0x20] sm:$0xf]
      %v1990 = vld [vmem:[%s2] sm:$0x1]
      %v1992 = vlaneseq
      %v1993 = vshrl.u32 %v1992, 7
      %v1994 = vsub.s32 0, %v1993
      %v1995 = vrot.slane %v1990, %v1994
      %vm1997 = vcmask 293888
      %v1999 = vsel %vm1997, %v1953, 0
      %v2002 = vsel %vm1997, %v1954, 0
      %v2005 = vsel %vm1997, %v1955, 0
      %v2008 = vsel %vm1997, %v1956, 0
      %v2011 = vsel %vm1997, %v1957, 0
      %v2014 = vsel %vm1997, %v1958, 0
      %v2017 = vsel %vm1997, %v1959, 0
      %v2020 = vsel %vm1997, %v1960, 0
      %v2023 = vsel %vm1997, %v1961, 0
      %v2026 = vsel %vm1997, %v1962, 0
      %v2029 = vsel %vm1997, %v1963, 0
      %v2032 = vsel %vm1997, %v1964, 0
      %v2035 = vsel %vm1997, %v1965, 0
      %v2038 = vsel %vm1997, %v1966, 0
      %v2041 = vsel %vm1997, %v1967, 0
      %v2044 = vsel %vm1997, %v1968, 0
      %v2047 = vsel %vm1997, %v1969, 0
      %v2050 = vsel %vm1997, %v1970, 0
      %v2053 = vsel %vm1997, %v1971, 0
      %v2056 = vsel %vm1997, %v1972, 0
      %v2059 = vsel %vm1997, %v1973, 0
      %v2062 = vsel %vm1997, %v1974, 0
      %v2065 = vsel %vm1997, %v1975, 0
      %v2068 = vsel %vm1997, %v1976, 0
      %v2071 = vsel %vm1997, %v1977, 0
      %v2074 = vsel %vm1997, %v1978, 0
      %v2077 = vsel %vm1997, %v1979, 0
      %v2080 = vsel %vm1997, %v1980, 0
      %v2083 = vsel %vm1997, %v1981, 0
      %v2086 = vsel %vm1997, %v1982, 0
      %v2089 = vsel %vm1997, %v1983, 0
      %v2092 = vsel %vm1997, %v1984, 0
      %vm2094 = vcmask 1043456
      %v2096 = vsel %vm2094, %v1989, 0
      %2098 = vmatprep.subr.mxu0 0.0
      %2099 = vmatpush1.msra.mxu0 %v1985
      %2100 = vmatprep.subr.mxu0 0.0
      %2101 = vmatpush1.msra.mxu0 %v1986
      %2102 = vmatprep.subr.mxu0 0.0
      %2103 = vmatpush1.msra.mxu0 %v1987
      %2104 = vmatprep.subr.mxu0 0.0
      %2105 = vmatpush1.msra.mxu0 %v1988
      %2106 = vmatprep.subr.mxu0 0.0
      %2107 = vmatpush1.msra.mxu0 %v2096
      %2108 = vmatprep.subr.mxu0 0.0
      %2109 = vmatpush1.msra.mxu0 0.0
      %2110 = vmatprep.subr.mxu0 0.0
      %2111 = vmatpush1.msra.mxu0 0.0
      %2112 = vmatprep.subr.mxu0 0.0
      %2113 = vmatpush1.msra.mxu0 0.0
      %2114 = vmatprep.subr.mxu0 0.0
      %2115 = vmatpush1.msra.mxu0 0.0
      %2116 = vmatprep.subr.mxu0 0.0
      %2117 = vmatpush1.msra.mxu0 0.0
      %2118 = vmatprep.subr.mxu0 0.0
      %2119 = vmatpush1.msra.mxu0 0.0
      %2120 = vmatprep.subr.mxu0 0.0
      %2121 = vmatpush1.msra.mxu0 0.0
      %2122 = vmatprep.subr.mxu0 0.0
      %2123 = vmatpush1.msra.mxu0 0.0
      %2124 = vmatprep.subr.mxu0 0.0
      %2125 = vmatpush1.msra.mxu0 0.0
      %2126 = vmatprep.subr.mxu0 0.0
      %2127 = vmatpush1.msra.mxu0 0.0
      %2128 = vmatprep.subr.mxu0 0.0
      %2129 = vmatpush1.msra.mxu0 0.0
      %2130 = vmatprep.subr.mxu0 0.0
      %2131 = vmatpush1.msra.mxu0 0.0
      %2132 = vmatprep.subr.mxu0 0.0
      %2133 = vmatpush1.msra.mxu0 0.0
      %2134 = vmatprep.subr.mxu0 0.0
      %2135 = vmatpush1.msra.mxu0 0.0
      %2136 = vmatprep.subr.mxu0 0.0
      %2137 = vmatpush1.msra.mxu0 0.0
      %2138 = vmatprep.subr.mxu0 0.0
      %2139 = vmatpush1.msra.mxu0 0.0
      %2140 = vmatprep.subr.mxu0 0.0
      %2141 = vmatpush1.msra.mxu0 0.0
      %2142 = vmatprep.subr.mxu0 0.0
      %2143 = vmatpush1.msra.mxu0 0.0
      %2144 = vmatprep.subr.mxu0 0.0
      %2145 = vmatpush1.msra.mxu0 0.0
      %2146 = vmatprep.subr.mxu0 0.0
      %2147 = vmatpush1.msra.mxu0 0.0
      %2148 = vmatprep.subr.mxu0 0.0
      %2149 = vmatpush1.msra.mxu0 0.0
      %2150 = vmatprep.subr.mxu0 0.0
      %2151 = vmatpush1.msra.mxu0 0.0
      %2152 = vmatprep.subr.mxu0 0.0
      %2153 = vmatpush1.msra.mxu0 0.0
      %2154 = vmatprep.subr.mxu0 0.0
      %2155 = vmatpush1.msra.mxu0 0.0
      %2156 = vmatprep.subr.mxu0 0.0
      %2157 = vmatpush1.msra.mxu0 0.0
      %2158 = vmatprep.subr.mxu0 0.0
      %2159 = vmatpush1.msra.mxu0 0.0
      %2160 = vmatprep.subr.mxu0 0.0
      %2161 = vmatpush1.msra.mxu0 0.0
      %2162 = vmatprep.mubr.f32.mxu0 0.0
      %2163 = vmatmul.mubr.f32.gmra.mrb[0].mxu0 %v1999
      %v2164 = vpop.f32.mrb[0].mxu0
      %v2165 = vadd.f32 %v1995, %v2164
      %v2166 = vpop.f32.mrb[0].mxu0
      %2167 = vmatprep.mubr.f32.mxu0 0.0
      %2168 = vmatmul.mubr.f32.gmra.mrb[0].mxu0 %v2002
      %v2169 = vpop.f32.mrb[0].mxu0
      %v2170 = vadd.f32 %v1995, %v2169
      %v2171 = vpop.f32.mrb[0].mxu0
      %2172 = vmatprep.mubr.f32.mxu0 0.0
      %2173 = vmatmul.mubr.f32.gmra.mrb[0].mxu0 %v2005
      %v2174 = vpop.f32.mrb[0].mxu0
      %v2175 = vadd.f32 %v1995, %v2174
      %v2176 = vpop.f32.mrb[0].mxu0
      %2177 = vmatprep.mubr.f32.mxu0 0.0
      %2178 = vmatmul.mubr.f32.gmra.mrb[0].mxu0 %v2008
      %v2179 = vpop.f32.mrb[0].mxu0
      %v2180 = vadd.f32 %v1995, %v2179
      %v2181 = vpop.f32.mrb[0].mxu0
      %2182 = vmatprep.mubr.f32.mxu0 0.0
      %2183 = vmatmul.mubr.f32.gmra.mrb[0].mxu0 %v2011
      %v2184 = vpop.f32.mrb[0].mxu0
      %v2185 = vadd.f32 %v1995, %v2184
      %v2186 = vpop.f32.mrb[0].mxu0
      %2187 = vmatprep.mubr.f32.mxu0 0.0
      %2188 = vmatmul.mubr.f32.gmra.mrb[0].mxu0 %v2014
      %v2189 = vpop.f32.mrb[0].mxu0
      %v2190 = vadd.f32 %v1995, %v2189
      %v2191 = vpop.f32.mrb[0].mxu0
      %2192 = vmatprep.mubr.f32.mxu0 0.0
      %2193 = vmatmul.mubr.f32.gmra.mrb[0].mxu0 %v2017
      %v2194 = vpop.f32.mrb[0].mxu0
      %v2195 = vadd.f32 %v1995, %v2194
      %v2196 = vpop.f32.mrb[0].mxu0
      %2197 = vmatprep.mubr.f32.mxu0 0.0
      %2198 = vmatmul.mubr.f32.gmra.mrb[0].mxu0 %v2020
      %v2199 = vpop.f32.mrb[0].mxu0
      %v2200 = vadd.f32 %v1995, %v2199
      %v2201 = vpop.f32.mrb[0].mxu0
      %2202 = vmatprep.mubr.f32.mxu0 0.0
      %2203 = vmatmul.mubr.f32.gmra.mrb[0].mxu0 %v2023
      %v2204 = vpop.f32.mrb[0].mxu0
      %v2205 = vadd.f32 %v1995, %v2204
      %v2206 = vpop.f32.mrb[0].mxu0
      %2207 = vmatprep.mubr.f32.mxu0 0.0
      %2208 = vmatmul.mubr.f32.gmra.mrb[0].mxu0 %v2026
      %v2209 = vpop.f32.mrb[0].mxu0
      %v2210 = vadd.f32 %v1995, %v2209
      %v2211 = vpop.f32.mrb[0].mxu0
      %2212 = vmatprep.mubr.f32.mxu0 0.0
      %2213 = vmatmul.mubr.f32.gmra.mrb[0].mxu0 %v2029
      %v2214 = vpop.f32.mrb[0].mxu0
      %v2215 = vadd.f32 %v1995, %v2214
      %v2216 = vpop.f32.mrb[0].mxu0
      %2217 = vmatprep.mubr.f32.mxu0 0.0
      %2218 = vmatmul.mubr.f32.gmra.mrb[0].mxu0 %v2032
      %v2219 = vpop.f32.mrb[0].mxu0
      %v2220 = vadd.f32 %v1995, %v2219
      %v2221 = vpop.f32.mrb[0].mxu0
      %2222 = vmatprep.mubr.f32.mxu0 0.0
      %2223 = vmatmul.mubr.f32.gmra.mrb[0].mxu0 %v2035
      %v2224 = vpop.f32.mrb[0].mxu0
      %v2225 = vadd.f32 %v1995, %v2224
      %v2226 = vpop.f32.mrb[0].mxu0
      %2227 = vmatprep.mubr.f32.mxu0 0.0
      %2228 = vmatmul.mubr.f32.gmra.mrb[0].mxu0 %v2038
      %v2229 = vpop.f32.mrb[0].mxu0
      %v2230 = vadd.f32 %v1995, %v2229
      %v2231 = vpop.f32.mrb[0].mxu0
      %2232 = vmatprep.mubr.f32.mxu0 0.0
      %2233 = vmatmul.mubr.f32.gmra.mrb[0].mxu0 %v2041
      %v2234 = vpop.f32.mrb[0].mxu0
      %v2235 = vadd.f32 %v1995, %v2234
      %v2236 = vpop.f32.mrb[0].mxu0
      %2237 = vmatprep.mubr.f32.mxu0 0.0
      %2238 = vmatmul.mubr.f32.gmra.mrb[0].mxu0 %v2044
      %v2239 = vpop.f32.mrb[0].mxu0
      %v2240 = vadd.f32 %v1995, %v2239
      %v2241 = vpop.f32.mrb[0].mxu0
      %2242 = vmatprep.mubr.f32.mxu0 0.0
      %2243 = vmatmul.mubr.f32.gmra.mrb[0].mxu0 %v2047
      %v2244 = vpop.f32.mrb[0].mxu0
      %v2245 = vadd.f32 %v1995, %v2244
      %v2246 = vpop.f32.mrb[0].mxu0
      %2247 = vmatprep.mubr.f32.mxu0 0.0
      %2248 = vmatmul.mubr.f32.gmra.mrb[0].mxu0 %v2050
      %v2249 = vpop.f32.mrb[0].mxu0
      %v2250 = vadd.f32 %v1995, %v2249
      %v2251 = vpop.f32.mrb[0].mxu0
      %2252 = vmatprep.mubr.f32.mxu0 0.0
      %2253 = vmatmul.mubr.f32.gmra.mrb[0].mxu0 %v2053
      %v2254 = vpop.f32.mrb[0].mxu0
      %v2255 = vadd.f32 %v1995, %v2254
      %v2256 = vpop.f32.mrb[0].mxu0
      %2257 = vmatprep.mubr.f32.mxu0 0.0
      %2258 = vmatmul.mubr.f32.gmra.mrb[0].mxu0 %v2056
      %v2259 = vpop.f32.mrb[0].mxu0
      %v2260 = vadd.f32 %v1995, %v2259
      %v2261 = vpop.f32.mrb[0].mxu0
      %2262 = vmatprep.mubr.f32.mxu0 0.0
      %2263 = vmatmul.mubr.f32.gmra.mrb[0].mxu0 %v2059
      %v2264 = vpop.f32.mrb[0].mxu0
      %v2265 = vadd.f32 %v1995, %v2264
      %v2266 = vpop.f32.mrb[0].mxu0
      %2267 = vmatprep.mubr.f32.mxu0 0.0
      %2268 = vmatmul.mubr.f32.gmra.mrb[0].mxu0 %v2062
      %v2269 = vpop.f32.mrb[0].mxu0
      %v2270 = vadd.f32 %v1995, %v2269
      %v2271 = vpop.f32.mrb[0].mxu0
      %2272 = vmatprep.mubr.f32.mxu0 0.0
      %2273 = vmatmul.mubr.f32.gmra.mrb[0].mxu0 %v2065
      %v2274 = vpop.f32.mrb[0].mxu0
      %v2275 = vadd.f32 %v1995, %v2274
      %v2276 = vpop.f32.mrb[0].mxu0
      %2277 = vmatprep.mubr.f32.mxu0 0.0
      %2278 = vmatmul.mubr.f32.gmra.mrb[0].mxu0 %v2068
      %v2279 = vpop.f32.mrb[0].mxu0
      %v2280 = vadd.f32 %v1995, %v2279
      %v2281 = vpop.f32.mrb[0].mxu0
      %2282 = vmatprep.mubr.f32.mxu0 0.0
      %2283 = vmatmul.mubr.f32.gmra.mrb[0].mxu0 %v2071
      %v2284 = vpop.f32.mrb[0].mxu0
      %v2285 = vadd.f32 %v1995, %v2284
      %v2286 = vpop.f32.mrb[0].mxu0
      %2287 = vmatprep.mubr.f32.mxu0 0.0
      %2288 = vmatmul.mubr.f32.gmra.mrb[0].mxu0 %v2074
      %v2289 = vpop.f32.mrb[0].mxu0
      %v2290 = vadd.f32 %v1995, %v2289
      %v2291 = vpop.f32.mrb[0].mxu0
      %2292 = vmatprep.mubr.f32.mxu0 0.0
      %2293 = vmatmul.mubr.f32.gmra.mrb[0].mxu0 %v2077
      %v2294 = vpop.f32.mrb[0].mxu0
      %v2295 = vadd.f32 %v1995, %v2294
      %v2296 = vpop.f32.mrb[0].mxu0
      %2297 = vmatprep.mubr.f32.mxu0 0.0
      %2298 = vmatmul.mubr.f32.gmra.mrb[0].mxu0 %v2080
      %v2299 = vpop.f32.mrb[0].mxu0
      %v2300 = vadd.f32 %v1995, %v2299
      %v2301 = vpop.f32.mrb[0].mxu0
      %2302 = vmatprep.mubr.f32.mxu0 0.0
      %2303 = vmatmul.mubr.f32.gmra.mrb[0].mxu0 %v2083
      %v2304 = vpop.f32.mrb[0].mxu0
      %v2305 = vadd.f32 %v1995, %v2304
      %v2306 = vpop.f32.mrb[0].mxu0
      %2307 = vmatprep.mubr.f32.mxu0 0.0
      %2308 = vmatmul.mubr.f32.gmra.mrb[0].mxu0 %v2086
      %v2309 = vpop.f32.mrb[0].mxu0
      %v2310 = vadd.f32 %v1995, %v2309
      %v2311 = vpop.f32.mrb[0].mxu0
      %2312 = vmatprep.mubr.f32.mxu0 0.0
      %2313 = vmatmul.mubr.f32.gmra.mrb[0].mxu0 %v2089
      %v2314 = vpop.f32.mrb[0].mxu0
      %v2315 = vadd.f32 %v1995, %v2314
      %v2316 = vpop.f32.mrb[0].mxu0
      %2317 = vmatprep.mubr.f32.mxu0 0.0
      %2318 = vmatmul.mubr.f32.gmra.mrb[0].mxu0 %v2092
      %v2319 = vpop.f32.mrb[0].mxu0
      %v2320 = vadd.f32 %v1995, %v2319
      %v2321 = vpop.f32.mrb[0].mxu0
      %2322 = vdwg.mxu0
      %v2323 = vmax.f32 %v2165, 0.0
      %v2324 = vmax.f32 %v2170, 0.0
      %v2325 = vmax.f32 %v2175, 0.0
      %v2326 = vmax.f32 %v2180, 0.0
      %v2327 = vmax.f32 %v2185, 0.0
      %v2328 = vmax.f32 %v2190, 0.0
      %v2329 = vmax.f32 %v2195, 0.0
      %v2330 = vmax.f32 %v2200, 0.0
      %v2331 = vmax.f32 %v2205, 0.0
      %v2332 = vmax.f32 %v2210, 0.0
      %v2333 = vmax.f32 %v2215, 0.0
      %v2334 = vmax.f32 %v2220, 0.0
      %v2335 = vmax.f32 %v2225, 0.0
      %v2336 = vmax.f32 %v2230, 0.0
      %v2337 = vmax.f32 %v2235, 0.0
      %v2338 = vmax.f32 %v2240, 0.0
      %v2339 = vmax.f32 %v2245, 0.0
      %v2340 = vmax.f32 %v2250, 0.0
      %v2341 = vmax.f32 %v2255, 0.0
      %v2342 = vmax.f32 %v2260, 0.0
      %v2343 = vmax.f32 %v2265, 0.0
      %v2344 = vmax.f32 %v2270, 0.0
      %v2345 = vmax.f32 %v2275, 0.0
      %v2346 = vmax.f32 %v2280, 0.0
      %v2347 = vmax.f32 %v2285, 0.0
      %v2348 = vmax.f32 %v2290, 0.0
      %v2349 = vmax.f32 %v2295, 0.0
      %v2350 = vmax.f32 %v2300, 0.0
      %v2351 = vmax.f32 %v2305, 0.0
      %v2352 = vmax.f32 %v2310, 0.0
      %v2353 = vmax.f32 %v2315, 0.0
      %v2354 = vmax.f32 %v2320, 0.0
      %2355 = vst.msk [vmem:[#allocation3] sm:$0xff] %vm1754, 0.0
      %2356 = vst.msk [vmem:[#allocation3 + $0x8] sm:$0xff] %vm1754, 0.0
      %vm2357 = vcmask 58368
      %2358 = vst.msk [vmem:[#allocation3 + $0x10] sm:$0x3] %vm2357, 0.0
      %2359 = vst.msk [vmem:[#allocation3 + $0x18] sm:$0xff] %vm1754, 0.0
      %2360 = vst.msk [vmem:[#allocation3 + $0x20] sm:$0xff] %vm1754, 0.0
      %2361 = vst.msk [vmem:[#allocation3 + $0x28] sm:$0x3] %vm2357, 0.0
      %2362 = vst.msk [vmem:[#allocation3 + $0x30] sm:$0xff] %vm1754, 0.0
      %2363 = vst.msk [vmem:[#allocation3 + $0x38] sm:$0xff] %vm1754, 0.0
      %2364 = vst.msk [vmem:[#allocation3 + $0x40] sm:$0x3] %vm2357, 0.0
      %2365 = vst.msk [vmem:[#allocation3 + $0x48] sm:$0xff] %vm1754, 0.0
      %2366 = vst.msk [vmem:[#allocation3 + $0x50] sm:$0xff] %vm1754, 0.0
      %2367 = vst.msk [vmem:[#allocation3 + $0x58] sm:$0x3] %vm2357, 0.0
      %2368 = vst.msk [vmem:[#allocation3 + $0x60] sm:$0xff] %vm1754, 0.0
      %2369 = vst.msk [vmem:[#allocation3 + $0x68] sm:$0xff] %vm1754, 0.0
      %2370 = vst.msk [vmem:[#allocation3 + $0x70] sm:$0x3] %vm2357, 0.0
      %2371 = vst.msk [vmem:[#allocation3 + $0x78] sm:$0xff] %vm1754, 0.0
      %2372 = vst.msk [vmem:[#allocation3 + $0x80] sm:$0xff] %vm1754, 0.0
      %2373 = vst.msk [vmem:[#allocation3 + $0x88] sm:$0x3] %vm2357, 0.0
      %2374 = vst.msk [vmem:[#allocation3 + $0x90] sm:$0xff] %vm1754, 0.0
      %2375 = vst.msk [vmem:[#allocation3 + $0x98] sm:$0xff] %vm1754, 0.0
      %2376 = vst.msk [vmem:[#allocation3 + $0xa0] sm:$0x3] %vm2357, 0.0
      %2377 = vst.msk [vmem:[#allocation3 + $0xa8] sm:$0xff] %vm1754, 0.0
      %2378 = vst.msk [vmem:[#allocation3 + $0xb0] sm:$0xff] %vm1754, 0.0
      %2379 = vst.msk [vmem:[#allocation3 + $0xb8] sm:$0x3] %vm2357, 0.0
      %2380 = vst.msk [vmem:[#allocation3 + $0xc0] sm:$0xff] %vm1754, 0.0
      %2381 = vst.msk [vmem:[#allocation3 + $0xc8] sm:$0xff] %vm1754, 0.0
      %2382 = vst.msk [vmem:[#allocation3 + $0xd0] sm:$0x3] %vm2357, 0.0
      %2383 = vst.msk [vmem:[#allocation3 + $0xd8] sm:$0xff] %vm1754, 0.0
      %2384 = vst.msk [vmem:[#allocation3 + $0xe0] sm:$0xff] %vm1754, 0.0
      %2385 = vst.msk [vmem:[#allocation3 + $0xe8] sm:$0x3] %vm2357, 0.0
      %2386 = vst.msk [vmem:[#allocation3 + $0xf0] sm:$0xff] %vm1754, 0.0
      %2387 = vst.msk [vmem:[#allocation3 + $0xf8] sm:$0xff] %vm1754, 0.0
      %2388 = vst.msk [vmem:[#allocation3 + $0x100] sm:$0x3] %vm2357, 0.0
      %2389 = vst.msk [vmem:[#allocation3 + $0x108] sm:$0xff] %vm1754, 0.0
      %2390 = vst.msk [vmem:[#allocation3 + $0x110] sm:$0xff] %vm1754, 0.0
      %2391 = vst.msk [vmem:[#allocation3 + $0x118] sm:$0x3] %vm2357, 0.0
      %2392 = vst.msk [vmem:[#allocation3 + $0x120] sm:$0xff] %vm1754, 0.0
      %2393 = vst.msk [vmem:[#allocation3 + $0x128] sm:$0xff] %vm1754, 0.0
      %2394 = vst.msk [vmem:[#allocation3 + $0x130] sm:$0x3] %vm2357, 0.0
      %2395 = vst.msk [vmem:[#allocation3 + $0x138] sm:$0xff] %vm1754, 0.0
      %2396 = vst.msk [vmem:[#allocation3 + $0x140] sm:$0xff] %vm1754, 0.0
      %2397 = vst.msk [vmem:[#allocation3 + $0x148] sm:$0x3] %vm2357, 0.0
      %2398 = vst.msk [vmem:[#allocation3 + $0x150] sm:$0xff] %vm1754, 0.0
      %2399 = vst.msk [vmem:[#allocation3 + $0x158] sm:$0xff] %vm1754, 0.0
      %2400 = vst.msk [vmem:[#allocation3 + $0x160] sm:$0x3] %vm2357, 0.0
      %2401 = vst.msk [vmem:[#allocation3 + $0x168] sm:$0xff] %vm1754, 0.0
      %2402 = vst.msk [vmem:[#allocation3 + $0x170] sm:$0xff] %vm1754, 0.0
      %2403 = vst.msk [vmem:[#allocation3 + $0x178] sm:$0x3] %vm2357, 0.0
      %2404 = vst.msk [vmem:[#allocation3 + $0x180] sm:$0xff] %vm1754, 0.0
      %2405 = vst.msk [vmem:[#allocation3 + $0x188] sm:$0xff] %vm1754, 0.0
      %2406 = vst.msk [vmem:[#allocation3 + $0x190] sm:$0x3] %vm2357, 0.0
      %2407 = vst.msk [vmem:[#allocation3 + $0x198] sm:$0xff] %vm1754, 0.0
      %2408 = vst.msk [vmem:[#allocation3 + $0x1a0] sm:$0xff] %vm1754, 0.0
      %2409 = vst.msk [vmem:[#allocation3 + $0x1a8] sm:$0x3] %vm2357, 0.0
      %s2410 = scalar_lea.vmem [#allocation3], 24
      %2411 = vst.msk [vmem:[%s2410 + $0x1] sm:$0xff] %vm1754, %v2323
      %2412 = vst.msk [vmem:[%s2410 + $0x9] sm:$0xff] %vm1754, %v2324
      %2413 = vst.msk [vmem:[%s2410 + $0x19] sm:$0xff] %vm1754, %v2325
      %2414 = vst.msk [vmem:[%s2410 + $0x21] sm:$0xff] %vm1754, %v2326
      %2415 = vst.msk [vmem:[%s2410 + $0x31] sm:$0xff] %vm1754, %v2327
      %2416 = vst.msk [vmem:[%s2410 + $0x39] sm:$0xff] %vm1754, %v2328
      %2417 = vst.msk [vmem:[%s2410 + $0x49] sm:$0xff] %vm1754, %v2329
      %2418 = vst.msk [vmem:[%s2410 + $0x51] sm:$0xff] %vm1754, %v2330
      %2419 = vst.msk [vmem:[%s2410 + $0x61] sm:$0xff] %vm1754, %v2331
      %2420 = vst.msk [vmem:[%s2410 + $0x69] sm:$0xff] %vm1754, %v2332
      %2421 = vst.msk [vmem:[%s2410 + $0x79] sm:$0xff] %vm1754, %v2333
      %2422 = vst.msk [vmem:[%s2410 + $0x81] sm:$0xff] %vm1754, %v2334
      %2423 = vst.msk [vmem:[%s2410 + $0x91] sm:$0xff] %vm1754, %v2335
      %2424 = vst.msk [vmem:[%s2410 + $0x99] sm:$0xff] %vm1754, %v2336
      %2425 = vst.msk [vmem:[%s2410 + $0xa9] sm:$0xff] %vm1754, %v2337
      %2426 = vst.msk [vmem:[%s2410 + $0xb1] sm:$0xff] %vm1754, %v2338
      %2427 = vst.msk [vmem:[%s2410 + $0xc1] sm:$0xff] %vm1754, %v2339
      %2428 = vst.msk [vmem:[%s2410 + $0xc9] sm:$0xff] %vm1754, %v2340
      %2429 = vst.msk [vmem:[%s2410 + $0xd9] sm:$0xff] %vm1754, %v2341
      %2430 = vst.msk [vmem:[%s2410 + $0xe1] sm:$0xff] %vm1754, %v2342
      %2431 = vst.msk [vmem:[%s2410 + $0xf1] sm:$0xff] %vm1754, %v2343
      %2432 = vst.msk [vmem:[%s2410 + $0xf9] sm:$0xff] %vm1754, %v2344
      %2433 = vst.msk [vmem:[%s2410 + $0x109] sm:$0xff] %vm1754, %v2345
      %2434 = vst.msk [vmem:[%s2410 + $0x111] sm:$0xff] %vm1754, %v2346
      %2435 = vst.msk [vmem:[%s2410 + $0x121] sm:$0xff] %vm1754, %v2347
      %2436 = vst.msk [vmem:[%s2410 + $0x129] sm:$0xff] %vm1754, %v2348
      %2437 = vst.msk [vmem:[%s2410 + $0x139] sm:$0xff] %vm1754, %v2349
      %2438 = vst.msk [vmem:[%s2410 + $0x141] sm:$0xff] %vm1754, %v2350
      %2439 = vst.msk [vmem:[%s2410 + $0x151] sm:$0xff] %vm1754, %v2351
      %2440 = vst.msk [vmem:[%s2410 + $0x159] sm:$0xff] %vm1754, %v2352
      %2441 = vst.msk [vmem:[%s2410 + $0x169] sm:$0xff] %vm1754, %v2353
      %2442 = vst.msk [vmem:[%s2410 + $0x171] sm:$0xff] %vm1754, %v2354
      %v2443 = vld [vmem:[#allocation3] sm:$0xff]
      %v2444 = vld [vmem:[#allocation3 + $0x8] sm:$0xff]
      %v2445 = vld [vmem:[#allocation3 + $0x18] sm:$0xff]
      %v2446 = vld [vmem:[#allocation3 + $0x20] sm:$0xff]
      %v2447 = vld [vmem:[#allocation3 + $0x30] sm:$0xff]
      %v2448 = vld [vmem:[#allocation3 + $0x38] sm:$0xff]
      %v2449 = vld [vmem:[#allocation3 + $0x48] sm:$0xff]
      %v2450 = vld [vmem:[#allocation3 + $0x50] sm:$0xff]
      %v2451 = vld [vmem:[#allocation3 + $0x60] sm:$0xff]
      %v2452 = vld [vmem:[#allocation3 + $0x68] sm:$0xff]
      %v2453 = vld [vmem:[#allocation3 + $0x78] sm:$0xff]
      %v2454 = vld [vmem:[#allocation3 + $0x80] sm:$0xff]
      %v2455 = vld [vmem:[#allocation3 + $0x90] sm:$0xff]
      %v2456 = vld [vmem:[#allocation3 + $0x98] sm:$0xff]
      %v2457 = vld [vmem:[#allocation3 + $0xa8] sm:$0xff]
      %v2458 = vld [vmem:[#allocation3 + $0xb0] sm:$0xff]
      %v2459 = vld [vmem:[#allocation3 + $0xc0] sm:$0xff]
      %v2460 = vld [vmem:[#allocation3 + $0xc8] sm:$0xff]
      %v2461 = vld [vmem:[#allocation3 + $0xd8] sm:$0xff]
      %v2462 = vld [vmem:[#allocation3 + $0xe0] sm:$0xff]
      %v2463 = vld [vmem:[#allocation3 + $0xf0] sm:$0xff]
      %v2464 = vld [vmem:[#allocation3 + $0xf8] sm:$0xff]
      %v2465 = vld [vmem:[#allocation3 + $0x108] sm:$0xff]
      %v2466 = vld [vmem:[#allocation3 + $0x110] sm:$0xff]
      %v2467 = vld [vmem:[#allocation3 + $0x120] sm:$0xff]
      %v2468 = vld [vmem:[#allocation3 + $0x128] sm:$0xff]
      %v2469 = vld [vmem:[#allocation3 + $0x138] sm:$0xff]
      %v2470 = vld [vmem:[#allocation3 + $0x140] sm:$0xff]
      %v2471 = vld [vmem:[#allocation3 + $0x150] sm:$0xff]
      %v2472 = vld [vmem:[#allocation3 + $0x158] sm:$0xff]
      %v2473 = vld [vmem:[#allocation3 + $0x168] sm:$0xff]
      %v2474 = vld [vmem:[#allocation3 + $0x170] sm:$0xff]
      %v2475 = vld [vmem:[#allocation3 + $0x1] sm:$0xff]
      %v2476 = vld [vmem:[#allocation3 + $0x9] sm:$0xff]
      %v2477 = vld [vmem:[#allocation3 + $0x19] sm:$0xff]
      %v2478 = vld [vmem:[#allocation3 + $0x21] sm:$0xff]
      %v2479 = vld [vmem:[#allocation3 + $0x31] sm:$0xff]
      %v2480 = vld [vmem:[#allocation3 + $0x39] sm:$0xff]
      %v2481 = vld [vmem:[#allocation3 + $0x49] sm:$0xff]
      %v2482 = vld [vmem:[#allocation3 + $0x51] sm:$0xff]
      %v2483 = vld [vmem:[#allocation3 + $0x61] sm:$0xff]
      %v2484 = vld [vmem:[#allocation3 + $0x69] sm:$0xff]
      %v2485 = vld [vmem:[#allocation3 + $0x79] sm:$0xff]
      %v2486 = vld [vmem:[#allocation3 + $0x81] sm:$0xff]
      %v2487 = vld [vmem:[#allocation3 + $0x91] sm:$0xff]
      %v2488 = vld [vmem:[#allocation3 + $0x99] sm:$0xff]
      %v2489 = vld [vmem:[#allocation3 + $0xa9] sm:$0xff]
      %v2490 = vld [vmem:[#allocation3 + $0xb1] sm:$0xff]
      %v2491 = vld [vmem:[#allocation3 + $0xc1] sm:$0xff]
      %v2492 = vld [vmem:[#allocation3 + $0xc9] sm:$0xff]
      %v2493 = vld [vmem:[#allocation3 + $0xd9] sm:$0xff]
      %v2494 = vld [vmem:[#allocation3 + $0xe1] sm:$0xff]
      %v2495 = vld [vmem:[#allocation3 + $0xf1] sm:$0xff]
      %v2496 = vld [vmem:[#allocation3 + $0xf9] sm:$0xff]
      %v2497 = vld [vmem:[#allocation3 + $0x109] sm:$0xff]
      %v2498 = vld [vmem:[#allocation3 + $0x111] sm:$0xff]
      %v2499 = vld [vmem:[#allocation3 + $0x121] sm:$0xff]
      %v2500 = vld [vmem:[#allocation3 + $0x129] sm:$0xff]
      %v2501 = vld [vmem:[#allocation3 + $0x139] sm:$0xff]
      %v2502 = vld [vmem:[#allocation3 + $0x141] sm:$0xff]
      %v2503 = vld [vmem:[#allocation3 + $0x151] sm:$0xff]
      %v2504 = vld [vmem:[#allocation3 + $0x159] sm:$0xff]
      %v2505 = vld [vmem:[#allocation3 + $0x169] sm:$0xff]
      %v2506 = vld [vmem:[#allocation3 + $0x171] sm:$0xff]
      %v2507 = vld [vmem:[#allocation3 + $0x2] sm:$0xff]
      %v2508 = vld [vmem:[#allocation3 + $0xa] sm:$0xff]
      %v2509 = vld [vmem:[#allocation3 + $0x1a] sm:$0xff]
      %v2510 = vld [vmem:[#allocation3 + $0x22] sm:$0xff]
      %v2511 = vld [vmem:[#allocation3 + $0x32] sm:$0xff]
      %v2512 = vld [vmem:[#allocation3 + $0x3a] sm:$0xff]
      %v2513 = vld [vmem:[#allocation3 + $0x4a] sm:$0xff]
      %v2514 = vld [vmem:[#allocation3 + $0x52] sm:$0xff]
      %v2515 = vld [vmem:[#allocation3 + $0x62] sm:$0xff]
      %v2516 = vld [vmem:[#allocation3 + $0x6a] sm:$0xff]
      %v2517 = vld [vmem:[#allocation3 + $0x7a] sm:$0xff]
      %v2518 = vld [vmem:[#allocation3 + $0x82] sm:$0xff]
      %v2519 = vld [vmem:[#allocation3 + $0x92] sm:$0xff]
      %v2520 = vld [vmem:[#allocation3 + $0x9a] sm:$0xff]
      %v2521 = vld [vmem:[#allocation3 + $0xaa] sm:$0xff]
      %v2522 = vld [vmem:[#allocation3 + $0xb2] sm:$0xff]
      %v2523 = vld [vmem:[#allocation3 + $0xc2] sm:$0xff]
      %v2524 = vld [vmem:[#allocation3 + $0xca] sm:$0xff]
      %v2525 = vld [vmem:[#allocation3 + $0xda] sm:$0xff]
      %v2526 = vld [vmem:[#allocation3 + $0xe2] sm:$0xff]
      %v2527 = vld [vmem:[#allocation3 + $0xf2] sm:$0xff]
      %v2528 = vld [vmem:[#allocation3 + $0xfa] sm:$0xff]
      %v2529 = vld [vmem:[#allocation3 + $0x10a] sm:$0xff]
      %v2530 = vld [vmem:[#allocation3 + $0x112] sm:$0xff]
      %v2531 = vld [vmem:[#allocation3 + $0x122] sm:$0xff]
      %v2532 = vld [vmem:[#allocation3 + $0x12a] sm:$0xff]
      %v2533 = vld [vmem:[#allocation3 + $0x13a] sm:$0xff]
      %v2534 = vld [vmem:[#allocation3 + $0x142] sm:$0xff]
      %v2535 = vld [vmem:[#allocation3 + $0x152] sm:$0xff]
      %v2536 = vld [vmem:[#allocation3 + $0x15a] sm:$0xff]
      %v2537 = vld [vmem:[#allocation3 + $0x16a] sm:$0xff]
      %v2538 = vld [vmem:[#allocation3 + $0x172] sm:$0xff]
      %v2539 = vld [vmem:[%s2410] sm:$0xff]
      %v2540 = vld [vmem:[%s2410 + $0x8] sm:$0xff]
      %v2541 = vld [vmem:[%s2410 + $0x18] sm:$0xff]
      %v2542 = vld [vmem:[%s2410 + $0x20] sm:$0xff]
      %v2543 = vld [vmem:[%s2410 + $0x30] sm:$0xff]
      %v2544 = vld [vmem:[%s2410 + $0x38] sm:$0xff]
      %v2545 = vld [vmem:[%s2410 + $0x48] sm:$0xff]
      %v2546 = vld [vmem:[%s2410 + $0x50] sm:$0xff]
      %v2547 = vld [vmem:[%s2410 + $0x60] sm:$0xff]
      %v2548 = vld [vmem:[%s2410 + $0x68] sm:$0xff]
      %v2549 = vld [vmem:[%s2410 + $0x78] sm:$0xff]
      %v2550 = vld [vmem:[%s2410 + $0x80] sm:$0xff]
      %v2551 = vld [vmem:[%s2410 + $0x90] sm:$0xff]
      %v2552 = vld [vmem:[%s2410 + $0x98] sm:$0xff]
      %v2553 = vld [vmem:[%s2410 + $0xa8] sm:$0xff]
      %v2554 = vld [vmem:[%s2410 + $0xb0] sm:$0xff]
      %v2555 = vld [vmem:[%s2410 + $0xc0] sm:$0xff]
      %v2556 = vld [vmem:[%s2410 + $0xc8] sm:$0xff]
      %v2557 = vld [vmem:[%s2410 + $0xd8] sm:$0xff]
      %v2558 = vld [vmem:[%s2410 + $0xe0] sm:$0xff]
      %v2559 = vld [vmem:[%s2410 + $0xf0] sm:$0xff]
      %v2560 = vld [vmem:[%s2410 + $0xf8] sm:$0xff]
      %v2561 = vld [vmem:[%s2410 + $0x108] sm:$0xff]
      %v2562 = vld [vmem:[%s2410 + $0x110] sm:$0xff]
      %v2563 = vld [vmem:[%s2410 + $0x120] sm:$0xff]
      %v2564 = vld [vmem:[%s2410 + $0x128] sm:$0xff]
      %v2565 = vld [vmem:[%s2410 + $0x138] sm:$0xff]
      %v2566 = vld [vmem:[%s2410 + $0x140] sm:$0xff]
      %v2567 = vld [vmem:[%s2410 + $0x150] sm:$0xff]
      %v2568 = vld [vmem:[%s2410 + $0x158] sm:$0xff]
      %v2569 = vld [vmem:[%s2410 + $0x168] sm:$0xff]
      %v2570 = vld [vmem:[%s2410 + $0x170] sm:$0xff]
      %v2571 = vld [vmem:[%s2410 + $0x1] sm:$0xff]
      %v2572 = vld [vmem:[%s2410 + $0x9] sm:$0xff]
      %v2573 = vld [vmem:[%s2410 + $0x19] sm:$0xff]
      %v2574 = vld [vmem:[%s2410 + $0x21] sm:$0xff]
      %v2575 = vld [vmem:[%s2410 + $0x31] sm:$0xff]
      %v2576 = vld [vmem:[%s2410 + $0x39] sm:$0xff]
      %v2577 = vld [vmem:[%s2410 + $0x49] sm:$0xff]
      %v2578 = vld [vmem:[%s2410 + $0x51] sm:$0xff]
      %v2579 = vld [vmem:[%s2410 + $0x61] sm:$0xff]
      %v2580 = vld [vmem:[%s2410 + $0x69] sm:$0xff]
      %v2581 = vld [vmem:[%s2410 + $0x79] sm:$0xff]
      %v2582 = vld [vmem:[%s2410 + $0x81] sm:$0xff]
      %v2583 = vld [vmem:[%s2410 + $0x91] sm:$0xff]
      %v2584 = vld [vmem:[%s2410 + $0x99] sm:$0xff]
      %v2585 = vld [vmem:[%s2410 + $0xa9] sm:$0xff]
      %v2586 = vld [vmem:[%s2410 + $0xb1] sm:$0xff]
      %v2587 = vld [vmem:[%s2410 + $0xc1] sm:$0xff]
      %v2588 = vld [vmem:[%s2410 + $0xc9] sm:$0xff]
      %v2589 = vld [vmem:[%s2410 + $0xd9] sm:$0xff]
      %v2590 = vld [vmem:[%s2410 + $0xe1] sm:$0xff]
      %v2591 = vld [vmem:[%s2410 + $0xf1] sm:$0xff]
      %v2592 = vld [vmem:[%s2410 + $0xf9] sm:$0xff]
      %v2593 = vld [vmem:[%s2410 + $0x109] sm:$0xff]
      %v2594 = vld [vmem:[%s2410 + $0x111] sm:$0xff]
      %v2595 = vld [vmem:[%s2410 + $0x121] sm:$0xff]
      %v2596 = vld [vmem:[%s2410 + $0x129] sm:$0xff]
      %v2597 = vld [vmem:[%s2410 + $0x139] sm:$0xff]
      %v2598 = vld [vmem:[%s2410 + $0x141] sm:$0xff]
      %v2599 = vld [vmem:[%s2410 + $0x151] sm:$0xff]
      %v2600 = vld [vmem:[%s2410 + $0x159] sm:$0xff]
      %v2601 = vld [vmem:[%s2410 + $0x169] sm:$0xff]
      %v2602 = vld [vmem:[%s2410 + $0x171] sm:$0xff]
      %v2603 = vld [vmem:[%s2410 + $0x2] sm:$0xff]
      %v2604 = vld [vmem:[%s2410 + $0xa] sm:$0xff]
      %v2605 = vld [vmem:[%s2410 + $0x1a] sm:$0xff]
      %v2606 = vld [vmem:[%s2410 + $0x22] sm:$0xff]
      %v2607 = vld [vmem:[%s2410 + $0x32] sm:$0xff]
      %v2608 = vld [vmem:[%s2410 + $0x3a] sm:$0xff]
      %v2609 = vld [vmem:[%s2410 + $0x4a] sm:$0xff]
      %v2610 = vld [vmem:[%s2410 + $0x52] sm:$0xff]
      %v2611 = vld [vmem:[%s2410 + $0x62] sm:$0xff]
      %v2612 = vld [vmem:[%s2410 + $0x6a] sm:$0xff]
      %v2613 = vld [vmem:[%s2410 + $0x7a] sm:$0xff]
      %v2614 = vld [vmem:[%s2410 + $0x82] sm:$0xff]
      %v2615 = vld [vmem:[%s2410 + $0x92] sm:$0xff]
      %v2616 = vld [vmem:[%s2410 + $0x9a] sm:$0xff]
      %v2617 = vld [vmem:[%s2410 + $0xaa] sm:$0xff]
      %v2618 = vld [vmem:[%s2410 + $0xb2] sm:$0xff]
      %v2619 = vld [vmem:[%s2410 + $0xc2] sm:$0xff]
      %v2620 = vld [vmem:[%s2410 + $0xca] sm:$0xff]
      %v2621 = vld [vmem:[%s2410 + $0xda] sm:$0xff]
      %v2622 = vld [vmem:[%s2410 + $0xe2] sm:$0xff]
      %v2623 = vld [vmem:[%s2410 + $0xf2] sm:$0xff]
      %v2624 = vld [vmem:[%s2410 + $0xfa] sm:$0xff]
      %v2625 = vld [vmem:[%s2410 + $0x10a] sm:$0xff]
      %v2626 = vld [vmem:[%s2410 + $0x112] sm:$0xff]
      %v2627 = vld [vmem:[%s2410 + $0x122] sm:$0xff]
      %v2628 = vld [vmem:[%s2410 + $0x12a] sm:$0xff]
      %v2629 = vld [vmem:[%s2410 + $0x13a] sm:$0xff]
      %v2630 = vld [vmem:[%s2410 + $0x142] sm:$0xff]
      %v2631 = vld [vmem:[%s2410 + $0x152] sm:$0xff]
      %v2632 = vld [vmem:[%s2410 + $0x15a] sm:$0xff]
      %v2633 = vld [vmem:[%s2410 + $0x16a] sm:$0xff]
      %v2634 = vld [vmem:[%s2410 + $0x172] sm:$0xff]
      %s2635 = scalar_lea.vmem [#allocation3], 48
      %v2636 = vld [vmem:[%s2635] sm:$0xff]
      %v2637 = vld [vmem:[%s2635 + $0x8] sm:$0xff]
      %v2638 = vld [vmem:[%s2635 + $0x18] sm:$0xff]
      %v2639 = vld [vmem:[%s2635 + $0x20] sm:$0xff]
      %v2640 = vld [vmem:[%s2635 + $0x30] sm:$0xff]
      %v2641 = vld [vmem:[%s2635 + $0x38] sm:$0xff]
      %v2642 = vld [vmem:[%s2635 + $0x48] sm:$0xff]
      %v2643 = vld [vmem:[%s2635 + $0x50] sm:$0xff]
      %v2644 = vld [vmem:[%s2635 + $0x60] sm:$0xff]
      %v2645 = vld [vmem:[%s2635 + $0x68] sm:$0xff]
      %v2646 = vld [vmem:[%s2635 + $0x78] sm:$0xff]
      %v2647 = vld [vmem:[%s2635 + $0x80] sm:$0xff]
      %v2648 = vld [vmem:[%s2635 + $0x90] sm:$0xff]
      %v2649 = vld [vmem:[%s2635 + $0x98] sm:$0xff]
      %v2650 = vld [vmem:[%s2635 + $0xa8] sm:$0xff]
      %v2651 = vld [vmem:[%s2635 + $0xb0] sm:$0xff]
      %v2652 = vld [vmem:[%s2635 + $0xc0] sm:$0xff]
      %v2653 = vld [vmem:[%s2635 + $0xc8] sm:$0xff]
      %v2654 = vld [vmem:[%s2635 + $0xd8] sm:$0xff]
      %v2655 = vld [vmem:[%s2635 + $0xe0] sm:$0xff]
      %v2656 = vld [vmem:[%s2635 + $0xf0] sm:$0xff]
      %v2657 = vld [vmem:[%s2635 + $0xf8] sm:$0xff]
      %v2658 = vld [vmem:[%s2635 + $0x108] sm:$0xff]
      %v2659 = vld [vmem:[%s2635 + $0x110] sm:$0xff]
      %v2660 = vld [vmem:[%s2635 + $0x120] sm:$0xff]
      %v2661 = vld [vmem:[%s2635 + $0x128] sm:$0xff]
      %v2662 = vld [vmem:[%s2635 + $0x138] sm:$0xff]
      %v2663 = vld [vmem:[%s2635 + $0x140] sm:$0xff]
      %v2664 = vld [vmem:[%s2635 + $0x150] sm:$0xff]
      %v2665 = vld [vmem:[%s2635 + $0x158] sm:$0xff]
      %v2666 = vld [vmem:[%s2635 + $0x168] sm:$0xff]
      %v2667 = vld [vmem:[%s2635 + $0x170] sm:$0xff]
      %v2668 = vld [vmem:[%s2635 + $0x1] sm:$0xff]
      %v2669 = vld [vmem:[%s2635 + $0x9] sm:$0xff]
      %v2670 = vld [vmem:[%s2635 + $0x19] sm:$0xff]
      %v2671 = vld [vmem:[%s2635 + $0x21] sm:$0xff]
      %v2672 = vld [vmem:[%s2635 + $0x31] sm:$0xff]
      %v2673 = vld [vmem:[%s2635 + $0x39] sm:$0xff]
      %v2674 = vld [vmem:[%s2635 + $0x49] sm:$0xff]
      %v2675 = vld [vmem:[%s2635 + $0x51] sm:$0xff]
      %v2676 = vld [vmem:[%s2635 + $0x61] sm:$0xff]
      %v2677 = vld [vmem:[%s2635 + $0x69] sm:$0xff]
      %v2678 = vld [vmem:[%s2635 + $0x79] sm:$0xff]
      %v2679 = vld [vmem:[%s2635 + $0x81] sm:$0xff]
      %v2680 = vld [vmem:[%s2635 + $0x91] sm:$0xff]
      %v2681 = vld [vmem:[%s2635 + $0x99] sm:$0xff]
      %v2682 = vld [vmem:[%s2635 + $0xa9] sm:$0xff]
      %v2683 = vld [vmem:[%s2635 + $0xb1] sm:$0xff]
      %v2684 = vld [vmem:[%s2635 + $0xc1] sm:$0xff]
      %v2685 = vld [vmem:[%s2635 + $0xc9] sm:$0xff]
      %v2686 = vld [vmem:[%s2635 + $0xd9] sm:$0xff]
      %v2687 = vld [vmem:[%s2635 + $0xe1] sm:$0xff]
      %v2688 = vld [vmem:[%s2635 + $0xf1] sm:$0xff]
      %v2689 = vld [vmem:[%s2635 + $0xf9] sm:$0xff]
      %v2690 = vld [vmem:[%s2635 + $0x109] sm:$0xff]
      %v2691 = vld [vmem:[%s2635 + $0x111] sm:$0xff]
      %v2692 = vld [vmem:[%s2635 + $0x121] sm:$0xff]
      %v2693 = vld [vmem:[%s2635 + $0x129] sm:$0xff]
      %v2694 = vld [vmem:[%s2635 + $0x139] sm:$0xff]
      %v2695 = vld [vmem:[%s2635 + $0x141] sm:$0xff]
      %v2696 = vld [vmem:[%s2635 + $0x151] sm:$0xff]
      %v2697 = vld [vmem:[%s2635 + $0x159] sm:$0xff]
      %v2698 = vld [vmem:[%s2635 + $0x169] sm:$0xff]
      %v2699 = vld [vmem:[%s2635 + $0x171] sm:$0xff]
      %v2700 = vld [vmem:[%s2635 + $0x2] sm:$0xff]
      %v2701 = vld [vmem:[%s2635 + $0xa] sm:$0xff]
      %v2702 = vld [vmem:[%s2635 + $0x1a] sm:$0xff]
      %v2703 = vld [vmem:[%s2635 + $0x22] sm:$0xff]
      %v2704 = vld [vmem:[%s2635 + $0x32] sm:$0xff]
      %v2705 = vld [vmem:[%s2635 + $0x3a] sm:$0xff]
      %v2706 = vld [vmem:[%s2635 + $0x4a] sm:$0xff]
      %v2707 = vld [vmem:[%s2635 + $0x52] sm:$0xff]
      %v2708 = vld [vmem:[%s2635 + $0x62] sm:$0xff]
      %v2709 = vld [vmem:[%s2635 + $0x6a] sm:$0xff]
      %v2710 = vld [vmem:[%s2635 + $0x7a] sm:$0xff]
      %v2711 = vld [vmem:[%s2635 + $0x82] sm:$0xff]
      %v2712 = vld [vmem:[%s2635 + $0x92] sm:$0xff]
      %v2713 = vld [vmem:[%s2635 + $0x9a] sm:$0xff]
      %v2714 = vld [vmem:[%s2635 + $0xaa] sm:$0xff]
      %v2715 = vld [vmem:[%s2635 + $0xb2] sm:$0xff]
      %v2716 = vld [vmem:[%s2635 + $0xc2] sm:$0xff]
      %v2717 = vld [vmem:[%s2635 + $0xca] sm:$0xff]
      %v2718 = vld [vmem:[%s2635 + $0xda] sm:$0xff]
      %v2719 = vld [vmem:[%s2635 + $0xe2] sm:$0xff]
      %v2720 = vld [vmem:[%s2635 + $0xf2] sm:$0xff]
      %v2721 = vld [vmem:[%s2635 + $0xfa] sm:$0xff]
      %v2722 = vld [vmem:[%s2635 + $0x10a] sm:$0xff]
      %v2723 = vld [vmem:[%s2635 + $0x112] sm:$0xff]
      %v2724 = vld [vmem:[%s2635 + $0x122] sm:$0xff]
      %v2725 = vld [vmem:[%s2635 + $0x12a] sm:$0xff]
      %v2726 = vld [vmem:[%s2635 + $0x13a] sm:$0xff]
      %v2727 = vld [vmem:[%s2635 + $0x142] sm:$0xff]
      %v2728 = vld [vmem:[%s2635 + $0x152] sm:$0xff]
      %v2729 = vld [vmem:[%s2635 + $0x15a] sm:$0xff]
      %v2730 = vld [vmem:[%s2635 + $0x16a] sm:$0xff]
      %v2731 = vld [vmem:[%s2635 + $0x172] sm:$0xff]
      %2764 = vrot.lane.b32.xlu0 %v2475, 8
      %v2765 = vpop.permute.xlu0 %2764
      %2766 = vrot.lane.b32.xlu0 %v2476, 8
      %v2767 = vpop.permute.xlu0 %2766
      %2768 = vrot.lane.b32.xlu0 %v2477, 8
      %v2769 = vpop.permute.xlu0 %2768
      %2770 = vrot.lane.b32.xlu0 %v2478, 8
      %v2771 = vpop.permute.xlu0 %2770
      %2772 = vrot.lane.b32.xlu0 %v2479, 8
      %v2773 = vpop.permute.xlu0 %2772
      %2774 = vrot.lane.b32.xlu0 %v2480, 8
      %v2775 = vpop.permute.xlu0 %2774
      %2776 = vrot.lane.b32.xlu0 %v2481, 8
      %v2777 = vpop.permute.xlu0 %2776
      %2778 = vrot.lane.b32.xlu0 %v2482, 8
      %v2779 = vpop.permute.xlu0 %2778
      %2780 = vrot.lane.b32.xlu0 %v2483, 8
      %v2781 = vpop.permute.xlu0 %2780
      %2782 = vrot.lane.b32.xlu0 %v2484, 8
      %v2783 = vpop.permute.xlu0 %2782
      %2784 = vrot.lane.b32.xlu0 %v2485, 8
      %v2785 = vpop.permute.xlu0 %2784
      %2786 = vrot.lane.b32.xlu0 %v2486, 8
      %v2787 = vpop.permute.xlu0 %2786
      %2788 = vrot.lane.b32.xlu0 %v2487, 8
      %v2789 = vpop.permute.xlu0 %2788
      %2790 = vrot.lane.b32.xlu0 %v2488, 8
      %v2791 = vpop.permute.xlu0 %2790
      %2792 = vrot.lane.b32.xlu0 %v2489, 8
      %v2793 = vpop.permute.xlu0 %2792
      %2794 = vrot.lane.b32.xlu0 %v2490, 8
      %v2795 = vpop.permute.xlu0 %2794
      %2796 = vrot.lane.b32.xlu0 %v2491, 8
      %v2797 = vpop.permute.xlu0 %2796
      %2798 = vrot.lane.b32.xlu0 %v2492, 8
      %v2799 = vpop.permute.xlu0 %2798
      %2800 = vrot.lane.b32.xlu0 %v2493, 8
      %v2801 = vpop.permute.xlu0 %2800
      %2802 = vrot.lane.b32.xlu0 %v2494, 8
      %v2803 = vpop.permute.xlu0 %2802
      %2804 = vrot.lane.b32.xlu0 %v2495, 8
      %v2805 = vpop.permute.xlu0 %2804
      %2806 = vrot.lane.b32.xlu0 %v2496, 8
      %v2807 = vpop.permute.xlu0 %2806
      %2808 = vrot.lane.b32.xlu0 %v2497, 8
      %v2809 = vpop.permute.xlu0 %2808
      %2810 = vrot.lane.b32.xlu0 %v2498, 8
      %v2811 = vpop.permute.xlu0 %2810
      %2812 = vrot.lane.b32.xlu0 %v2499, 8
      %v2813 = vpop.permute.xlu0 %2812
      %2814 = vrot.lane.b32.xlu0 %v2500, 8
      %v2815 = vpop.permute.xlu0 %2814
      %2816 = vrot.lane.b32.xlu0 %v2501, 8
      %v2817 = vpop.permute.xlu0 %2816
      %2818 = vrot.lane.b32.xlu0 %v2502, 8
      %v2819 = vpop.permute.xlu0 %2818
      %2820 = vrot.lane.b32.xlu0 %v2503, 8
      %v2821 = vpop.permute.xlu0 %2820
      %2822 = vrot.lane.b32.xlu0 %v2504, 8
      %v2823 = vpop.permute.xlu0 %2822
      %2824 = vrot.lane.b32.xlu0 %v2505, 8
      %v2825 = vpop.permute.xlu0 %2824
      %2826 = vrot.lane.b32.xlu0 %v2506, 8
      %v2827 = vpop.permute.xlu0 %2826
      %2892 = vrot.lane.b32.xlu0 %v2507, 16
      %v2893 = vpop.permute.xlu0 %2892
      %2894 = vrot.lane.b32.xlu0 %v2508, 16
      %v2895 = vpop.permute.xlu0 %2894
      %2896 = vrot.lane.b32.xlu0 %v2509, 16
      %v2897 = vpop.permute.xlu0 %2896
      %2898 = vrot.lane.b32.xlu0 %v2510, 16
      %v2899 = vpop.permute.xlu0 %2898
      %2900 = vrot.lane.b32.xlu0 %v2511, 16
      %v2901 = vpop.permute.xlu0 %2900
      %2902 = vrot.lane.b32.xlu0 %v2512, 16
      %v2903 = vpop.permute.xlu0 %2902
      %2904 = vrot.lane.b32.xlu0 %v2513, 16
      %v2905 = vpop.permute.xlu0 %2904
      %2906 = vrot.lane.b32.xlu0 %v2514, 16
      %v2907 = vpop.permute.xlu0 %2906
      %2908 = vrot.lane.b32.xlu0 %v2515, 16
      %v2909 = vpop.permute.xlu0 %2908
      %2910 = vrot.lane.b32.xlu0 %v2516, 16
      %v2911 = vpop.permute.xlu0 %2910
      %2912 = vrot.lane.b32.xlu0 %v2517, 16
      %v2913 = vpop.permute.xlu0 %2912
      %2914 = vrot.lane.b32.xlu0 %v2518, 16
      %v2915 = vpop.permute.xlu0 %2914
      %2916 = vrot.lane.b32.xlu0 %v2519, 16
      %v2917 = vpop.permute.xlu0 %2916
      %2918 = vrot.lane.b32.xlu0 %v2520, 16
      %v2919 = vpop.permute.xlu0 %2918
      %2920 = vrot.lane.b32.xlu0 %v2521, 16
      %v2921 = vpop.permute.xlu0 %2920
      %2922 = vrot.lane.b32.xlu0 %v2522, 16
      %v2923 = vpop.permute.xlu0 %2922
      %2924 = vrot.lane.b32.xlu0 %v2523, 16
      %v2925 = vpop.permute.xlu0 %2924
      %2926 = vrot.lane.b32.xlu0 %v2524, 16
      %v2927 = vpop.permute.xlu0 %2926
      %2928 = vrot.lane.b32.xlu0 %v2525, 16
      %v2929 = vpop.permute.xlu0 %2928
      %2930 = vrot.lane.b32.xlu0 %v2526, 16
      %v2931 = vpop.permute.xlu0 %2930
      %2932 = vrot.lane.b32.xlu0 %v2527, 16
      %v2933 = vpop.permute.xlu0 %2932
      %2934 = vrot.lane.b32.xlu0 %v2528, 16
      %v2935 = vpop.permute.xlu0 %2934
      %2936 = vrot.lane.b32.xlu0 %v2529, 16
      %v2937 = vpop.permute.xlu0 %2936
      %2938 = vrot.lane.b32.xlu0 %v2530, 16
      %v2939 = vpop.permute.xlu0 %2938
      %2940 = vrot.lane.b32.xlu0 %v2531, 16
      %v2941 = vpop.permute.xlu0 %2940
      %2942 = vrot.lane.b32.xlu0 %v2532, 16
      %v2943 = vpop.permute.xlu0 %2942
      %2944 = vrot.lane.b32.xlu0 %v2533, 16
      %v2945 = vpop.permute.xlu0 %2944
      %2946 = vrot.lane.b32.xlu0 %v2534, 16
      %v2947 = vpop.permute.xlu0 %2946
      %2948 = vrot.lane.b32.xlu0 %v2535, 16
      %v2949 = vpop.permute.xlu0 %2948
      %2950 = vrot.lane.b32.xlu0 %v2536, 16
      %v2951 = vpop.permute.xlu0 %2950
      %2952 = vrot.lane.b32.xlu0 %v2537, 16
      %v2953 = vpop.permute.xlu0 %2952
      %2954 = vrot.lane.b32.xlu0 %v2538, 16
      %v2955 = vpop.permute.xlu0 %2954
      %3020 = vrot.lane.b32.xlu0 %v2539, 24
      %v3021 = vpop.permute.xlu0 %3020
      %3022 = vrot.lane.b32.xlu0 %v2540, 24
      %v3023 = vpop.permute.xlu0 %3022
      %3024 = vrot.lane.b32.xlu0 %v2541, 24
      %v3025 = vpop.permute.xlu0 %3024
      %3026 = vrot.lane.b32.xlu0 %v2542, 24
      %v3027 = vpop.permute.xlu0 %3026
      %3028 = vrot.lane.b32.xlu0 %v2543, 24
      %v3029 = vpop.permute.xlu0 %3028
      %3030 = vrot.lane.b32.xlu0 %v2544, 24
      %v3031 = vpop.permute.xlu0 %3030
      %3032 = vrot.lane.b32.xlu0 %v2545, 24
      %v3033 = vpop.permute.xlu0 %3032
      %3034 = vrot.lane.b32.xlu0 %v2546, 24
      %v3035 = vpop.permute.xlu0 %3034
      %3036 = vrot.lane.b32.xlu0 %v2547, 24
      %v3037 = vpop.permute.xlu0 %3036
      %3038 = vrot.lane.b32.xlu0 %v2548, 24
      %v3039 = vpop.permute.xlu0 %3038
      %3040 = vrot.lane.b32.xlu0 %v2549, 24
      %v3041 = vpop.permute.xlu0 %3040
      %3042 = vrot.lane.b32.xlu0 %v2550, 24
      %v3043 = vpop.permute.xlu0 %3042
      %3044 = vrot.lane.b32.xlu0 %v2551, 24
      %v3045 = vpop.permute.xlu0 %3044
      %3046 = vrot.lane.b32.xlu0 %v2552, 24
      %v3047 = vpop.permute.xlu0 %3046
      %3048 = vrot.lane.b32.xlu0 %v2553, 24
      %v3049 = vpop.permute.xlu0 %3048
      %3050 = vrot.lane.b32.xlu0 %v2554, 24
      %v3051 = vpop.permute.xlu0 %3050
      %3052 = vrot.lane.b32.xlu0 %v2555, 24
      %v3053 = vpop.permute.xlu0 %3052
      %3054 = vrot.lane.b32.xlu0 %v2556, 24
      %v3055 = vpop.permute.xlu0 %3054
      %3056 = vrot.lane.b32.xlu0 %v2557, 24
      %v3057 = vpop.permute.xlu0 %3056
      %3058 = vrot.lane.b32.xlu0 %v2558, 24
      %v3059 = vpop.permute.xlu0 %3058
      %3060 = vrot.lane.b32.xlu0 %v2559, 24
      %v3061 = vpop.permute.xlu0 %3060
      %3062 = vrot.lane.b32.xlu0 %v2560, 24
      %v3063 = vpop.permute.xlu0 %3062
      %3064 = vrot.lane.b32.xlu0 %v2561, 24
      %v3065 = vpop.permute.xlu0 %3064
      %3066 = vrot.lane.b32.xlu0 %v2562, 24
      %v3067 = vpop.permute.xlu0 %3066
      %3068 = vrot.lane.b32.xlu0 %v2563, 24
      %v3069 = vpop.permute.xlu0 %3068
      %3070 = vrot.lane.b32.xlu0 %v2564, 24
      %v3071 = vpop.permute.xlu0 %3070
      %3072 = vrot.lane.b32.xlu0 %v2565, 24
      %v3073 = vpop.permute.xlu0 %3072
      %3074 = vrot.lane.b32.xlu0 %v2566, 24
      %v3075 = vpop.permute.xlu0 %3074
      %3076 = vrot.lane.b32.xlu0 %v2567, 24
      %v3077 = vpop.permute.xlu0 %3076
      %3078 = vrot.lane.b32.xlu0 %v2568, 24
      %v3079 = vpop.permute.xlu0 %3078
      %3080 = vrot.lane.b32.xlu0 %v2569, 24
      %v3081 = vpop.permute.xlu0 %3080
      %3082 = vrot.lane.b32.xlu0 %v2570, 24
      %v3083 = vpop.permute.xlu0 %3082
      %3148 = vrot.lane.b32.xlu0 %v2571, 32
      %v3149 = vpop.permute.xlu0 %3148
      %3150 = vrot.lane.b32.xlu0 %v2572, 32
      %v3151 = vpop.permute.xlu0 %3150
      %3152 = vrot.lane.b32.xlu0 %v2573, 32
      %v3153 = vpop.permute.xlu0 %3152
      %3154 = vrot.lane.b32.xlu0 %v2574, 32
      %v3155 = vpop.permute.xlu0 %3154
      %3156 = vrot.lane.b32.xlu0 %v2575, 32
      %v3157 = vpop.permute.xlu0 %3156
      %3158 = vrot.lane.b32.xlu0 %v2576, 32
      %v3159 = vpop.permute.xlu0 %3158
      %3160 = vrot.lane.b32.xlu0 %v2577, 32
      %v3161 = vpop.permute.xlu0 %3160
      %3162 = vrot.lane.b32.xlu0 %v2578, 32
      %v3163 = vpop.permute.xlu0 %3162
      %3164 = vrot.lane.b32.xlu0 %v2579, 32
      %v3165 = vpop.permute.xlu0 %3164
      %3166 = vrot.lane.b32.xlu0 %v2580, 32
      %v3167 = vpop.permute.xlu0 %3166
      %3168 = vrot.lane.b32.xlu0 %v2581, 32
      %v3169 = vpop.permute.xlu0 %3168
      %3170 = vrot.lane.b32.xlu0 %v2582, 32
      %v3171 = vpop.permute.xlu0 %3170
      %3172 = vrot.lane.b32.xlu0 %v2583, 32
      %v3173 = vpop.permute.xlu0 %3172
      %3174 = vrot.lane.b32.xlu0 %v2584, 32
      %v3175 = vpop.permute.xlu0 %3174
      %3176 = vrot.lane.b32.xlu0 %v2585, 32
      %v3177 = vpop.permute.xlu0 %3176
      %3178 = vrot.lane.b32.xlu0 %v2586, 32
      %v3179 = vpop.permute.xlu0 %3178
      %3180 = vrot.lane.b32.xlu0 %v2587, 32
      %v3181 = vpop.permute.xlu0 %3180
      %3182 = vrot.lane.b32.xlu0 %v2588, 32
      %v3183 = vpop.permute.xlu0 %3182
      %3184 = vrot.lane.b32.xlu0 %v2589, 32
      %v3185 = vpop.permute.xlu0 %3184
      %3186 = vrot.lane.b32.xlu0 %v2590, 32
      %v3187 = vpop.permute.xlu0 %3186
      %3188 = vrot.lane.b32.xlu0 %v2591, 32
      %v3189 = vpop.permute.xlu0 %3188
      %3190 = vrot.lane.b32.xlu0 %v2592, 32
      %v3191 = vpop.permute.xlu0 %3190
      %3192 = vrot.lane.b32.xlu0 %v2593, 32
      %v3193 = vpop.permute.xlu0 %3192
      %3194 = vrot.lane.b32.xlu0 %v2594, 32
      %v3195 = vpop.permute.xlu0 %3194
      %3196 = vrot.lane.b32.xlu0 %v2595, 32
      %v3197 = vpop.permute.xlu0 %3196
      %3198 = vrot.lane.b32.xlu0 %v2596, 32
      %v3199 = vpop.permute.xlu0 %3198
      %3200 = vrot.lane.b32.xlu0 %v2597, 32
      %v3201 = vpop.permute.xlu0 %3200
      %3202 = vrot.lane.b32.xlu0 %v2598, 32
      %v3203 = vpop.permute.xlu0 %3202
      %3204 = vrot.lane.b32.xlu0 %v2599, 32
      %v3205 = vpop.permute.xlu0 %3204
      %3206 = vrot.lane.b32.xlu0 %v2600, 32
      %v3207 = vpop.permute.xlu0 %3206
      %3208 = vrot.lane.b32.xlu0 %v2601, 32
      %v3209 = vpop.permute.xlu0 %3208
      %3210 = vrot.lane.b32.xlu0 %v2602, 32
      %v3211 = vpop.permute.xlu0 %3210
      %3276 = vrot.lane.b32.xlu0 %v2603, 40
      %v3277 = vpop.permute.xlu0 %3276
      %3278 = vrot.lane.b32.xlu0 %v2604, 40
      %v3279 = vpop.permute.xlu0 %3278
      %3280 = vrot.lane.b32.xlu0 %v2605, 40
      %v3281 = vpop.permute.xlu0 %3280
      %3282 = vrot.lane.b32.xlu0 %v2606, 40
      %v3283 = vpop.permute.xlu0 %3282
      %3284 = vrot.lane.b32.xlu0 %v2607, 40
      %v3285 = vpop.permute.xlu0 %3284
      %3286 = vrot.lane.b32.xlu0 %v2608, 40
      %v3287 = vpop.permute.xlu0 %3286
      %3288 = vrot.lane.b32.xlu0 %v2609, 40
      %v3289 = vpop.permute.xlu0 %3288
      %3290 = vrot.lane.b32.xlu0 %v2610, 40
      %v3291 = vpop.permute.xlu0 %3290
      %3292 = vrot.lane.b32.xlu0 %v2611, 40
      %v3293 = vpop.permute.xlu0 %3292
      %3294 = vrot.lane.b32.xlu0 %v2612, 40
      %v3295 = vpop.permute.xlu0 %3294
      %3296 = vrot.lane.b32.xlu0 %v2613, 40
      %v3297 = vpop.permute.xlu0 %3296
      %3298 = vrot.lane.b32.xlu0 %v2614, 40
      %v3299 = vpop.permute.xlu0 %3298
      %3300 = vrot.lane.b32.xlu0 %v2615, 40
      %v3301 = vpop.permute.xlu0 %3300
      %3302 = vrot.lane.b32.xlu0 %v2616, 40
      %v3303 = vpop.permute.xlu0 %3302
      %3304 = vrot.lane.b32.xlu0 %v2617, 40
      %v3305 = vpop.permute.xlu0 %3304
      %3306 = vrot.lane.b32.xlu0 %v2618, 40
      %v3307 = vpop.permute.xlu0 %3306
      %3308 = vrot.lane.b32.xlu0 %v2619, 40
      %v3309 = vpop.permute.xlu0 %3308
      %3310 = vrot.lane.b32.xlu0 %v2620, 40
      %v3311 = vpop.permute.xlu0 %3310
      %3312 = vrot.lane.b32.xlu0 %v2621, 40
      %v3313 = vpop.permute.xlu0 %3312
      %3314 = vrot.lane.b32.xlu0 %v2622, 40
      %v3315 = vpop.permute.xlu0 %3314
      %3316 = vrot.lane.b32.xlu0 %v2623, 40
      %v3317 = vpop.permute.xlu0 %3316
      %3318 = vrot.lane.b32.xlu0 %v2624, 40
      %v3319 = vpop.permute.xlu0 %3318
      %3320 = vrot.lane.b32.xlu0 %v2625, 40
      %v3321 = vpop.permute.xlu0 %3320
      %3322 = vrot.lane.b32.xlu0 %v2626, 40
      %v3323 = vpop.permute.xlu0 %3322
      %3324 = vrot.lane.b32.xlu0 %v2627, 40
      %v3325 = vpop.permute.xlu0 %3324
      %3326 = vrot.lane.b32.xlu0 %v2628, 40
      %v3327 = vpop.permute.xlu0 %3326
      %3328 = vrot.lane.b32.xlu0 %v2629, 40
      %v3329 = vpop.permute.xlu0 %3328
      %3330 = vrot.lane.b32.xlu0 %v2630, 40
      %v3331 = vpop.permute.xlu0 %3330
      %3332 = vrot.lane.b32.xlu0 %v2631, 40
      %v3333 = vpop.permute.xlu0 %3332
      %3334 = vrot.lane.b32.xlu0 %v2632, 40
      %v3335 = vpop.permute.xlu0 %3334
      %3336 = vrot.lane.b32.xlu0 %v2633, 40
      %v3337 = vpop.permute.xlu0 %3336
      %3338 = vrot.lane.b32.xlu0 %v2634, 40
      %v3339 = vpop.permute.xlu0 %3338
      %3404 = vrot.lane.b32.xlu0 %v2636, 48
      %v3405 = vpop.permute.xlu0 %3404
      %3406 = vrot.lane.b32.xlu0 %v2637, 48
      %v3407 = vpop.permute.xlu0 %3406
      %3408 = vrot.lane.b32.xlu0 %v2638, 48
      %v3409 = vpop.permute.xlu0 %3408
      %3410 = vrot.lane.b32.xlu0 %v2639, 48
      %v3411 = vpop.permute.xlu0 %3410
      %3412 = vrot.lane.b32.xlu0 %v2640, 48
      %v3413 = vpop.permute.xlu0 %3412
      %3414 = vrot.lane.b32.xlu0 %v2641, 48
      %v3415 = vpop.permute.xlu0 %3414
      %3416 = vrot.lane.b32.xlu0 %v2642, 48
      %v3417 = vpop.permute.xlu0 %3416
      %3418 = vrot.lane.b32.xlu0 %v2643, 48
      %v3419 = vpop.permute.xlu0 %3418
      %3420 = vrot.lane.b32.xlu0 %v2644, 48
      %v3421 = vpop.permute.xlu0 %3420
      %3422 = vrot.lane.b32.xlu0 %v2645, 48
      %v3423 = vpop.permute.xlu0 %3422
      %3424 = vrot.lane.b32.xlu0 %v2646, 48
      %v3425 = vpop.permute.xlu0 %3424
      %3426 = vrot.lane.b32.xlu0 %v2647, 48
      %v3427 = vpop.permute.xlu0 %3426
      %3428 = vrot.lane.b32.xlu0 %v2648, 48
      %v3429 = vpop.permute.xlu0 %3428
      %3430 = vrot.lane.b32.xlu0 %v2649, 48
      %v3431 = vpop.permute.xlu0 %3430
      %3432 = vrot.lane.b32.xlu0 %v2650, 48
      %v3433 = vpop.permute.xlu0 %3432
      %3434 = vrot.lane.b32.xlu0 %v2651, 48
      %v3435 = vpop.permute.xlu0 %3434
      %3436 = vrot.lane.b32.xlu0 %v2652, 48
      %v3437 = vpop.permute.xlu0 %3436
      %3438 = vrot.lane.b32.xlu0 %v2653, 48
      %v3439 = vpop.permute.xlu0 %3438
      %3440 = vrot.lane.b32.xlu0 %v2654, 48
      %v3441 = vpop.permute.xlu0 %3440
      %3442 = vrot.lane.b32.xlu0 %v2655, 48
      %v3443 = vpop.permute.xlu0 %3442
      %3444 = vrot.lane.b32.xlu0 %v2656, 48
      %v3445 = vpop.permute.xlu0 %3444
      %3446 = vrot.lane.b32.xlu0 %v2657, 48
      %v3447 = vpop.permute.xlu0 %3446
      %3448 = vrot.lane.b32.xlu0 %v2658, 48
      %v3449 = vpop.permute.xlu0 %3448
      %3450 = vrot.lane.b32.xlu0 %v2659, 48
      %v3451 = vpop.permute.xlu0 %3450
      %3452 = vrot.lane.b32.xlu0 %v2660, 48
      %v3453 = vpop.permute.xlu0 %3452
      %3454 = vrot.lane.b32.xlu0 %v2661, 48
      %v3455 = vpop.permute.xlu0 %3454
      %3456 = vrot.lane.b32.xlu0 %v2662, 48
      %v3457 = vpop.permute.xlu0 %3456
      %3458 = vrot.lane.b32.xlu0 %v2663, 48
      %v3459 = vpop.permute.xlu0 %3458
      %3460 = vrot.lane.b32.xlu0 %v2664, 48
      %v3461 = vpop.permute.xlu0 %3460
      %3462 = vrot.lane.b32.xlu0 %v2665, 48
      %v3463 = vpop.permute.xlu0 %3462
      %3464 = vrot.lane.b32.xlu0 %v2666, 48
      %v3465 = vpop.permute.xlu0 %3464
      %3466 = vrot.lane.b32.xlu0 %v2667, 48
      %v3467 = vpop.permute.xlu0 %3466
      %3532 = vrot.lane.b32.xlu0 %v2668, 56
      %v3533 = vpop.permute.xlu0 %3532
      %3534 = vrot.lane.b32.xlu0 %v2669, 56
      %v3535 = vpop.permute.xlu0 %3534
      %3536 = vrot.lane.b32.xlu0 %v2670, 56
      %v3537 = vpop.permute.xlu0 %3536
      %3538 = vrot.lane.b32.xlu0 %v2671, 56
      %v3539 = vpop.permute.xlu0 %3538
      %3540 = vrot.lane.b32.xlu0 %v2672, 56
      %v3541 = vpop.permute.xlu0 %3540
      %3542 = vrot.lane.b32.xlu0 %v2673, 56
      %v3543 = vpop.permute.xlu0 %3542
      %3544 = vrot.lane.b32.xlu0 %v2674, 56
      %v3545 = vpop.permute.xlu0 %3544
      %3546 = vrot.lane.b32.xlu0 %v2675, 56
      %v3547 = vpop.permute.xlu0 %3546
      %3548 = vrot.lane.b32.xlu0 %v2676, 56
      %v3549 = vpop.permute.xlu0 %3548
      %3550 = vrot.lane.b32.xlu0 %v2677, 56
      %v3551 = vpop.permute.xlu0 %3550
      %3552 = vrot.lane.b32.xlu0 %v2678, 56
      %v3553 = vpop.permute.xlu0 %3552
      %3554 = vrot.lane.b32.xlu0 %v2679, 56
      %v3555 = vpop.permute.xlu0 %3554
      %3556 = vrot.lane.b32.xlu0 %v2680, 56
      %v3557 = vpop.permute.xlu0 %3556
      %3558 = vrot.lane.b32.xlu0 %v2681, 56
      %v3559 = vpop.permute.xlu0 %3558
      %3560 = vrot.lane.b32.xlu0 %v2682, 56
      %v3561 = vpop.permute.xlu0 %3560
      %3562 = vrot.lane.b32.xlu0 %v2683, 56
      %v3563 = vpop.permute.xlu0 %3562
      %3564 = vrot.lane.b32.xlu0 %v2684, 56
      %v3565 = vpop.permute.xlu0 %3564
      %3566 = vrot.lane.b32.xlu0 %v2685, 56
      %v3567 = vpop.permute.xlu0 %3566
      %3568 = vrot.lane.b32.xlu0 %v2686, 56
      %v3569 = vpop.permute.xlu0 %3568
      %3570 = vrot.lane.b32.xlu0 %v2687, 56
      %v3571 = vpop.permute.xlu0 %3570
      %3572 = vrot.lane.b32.xlu0 %v2688, 56
      %v3573 = vpop.permute.xlu0 %3572
      %3574 = vrot.lane.b32.xlu0 %v2689, 56
      %v3575 = vpop.permute.xlu0 %3574
      %3576 = vrot.lane.b32.xlu0 %v2690, 56
      %v3577 = vpop.permute.xlu0 %3576
      %3578 = vrot.lane.b32.xlu0 %v2691, 56
      %v3579 = vpop.permute.xlu0 %3578
      %3580 = vrot.lane.b32.xlu0 %v2692, 56
      %v3581 = vpop.permute.xlu0 %3580
      %3582 = vrot.lane.b32.xlu0 %v2693, 56
      %v3583 = vpop.permute.xlu0 %3582
      %3584 = vrot.lane.b32.xlu0 %v2694, 56
      %v3585 = vpop.permute.xlu0 %3584
      %3586 = vrot.lane.b32.xlu0 %v2695, 56
      %v3587 = vpop.permute.xlu0 %3586
      %3588 = vrot.lane.b32.xlu0 %v2696, 56
      %v3589 = vpop.permute.xlu0 %3588
      %3590 = vrot.lane.b32.xlu0 %v2697, 56
      %v3591 = vpop.permute.xlu0 %3590
      %3592 = vrot.lane.b32.xlu0 %v2698, 56
      %v3593 = vpop.permute.xlu0 %3592
      %3594 = vrot.lane.b32.xlu0 %v2699, 56
      %v3595 = vpop.permute.xlu0 %3594
      %3660 = vrot.lane.b32.xlu0 %v2700, 64
      %v3661 = vpop.permute.xlu0 %3660
      %3662 = vrot.lane.b32.xlu0 %v2701, 64
      %v3663 = vpop.permute.xlu0 %3662
      %3664 = vrot.lane.b32.xlu0 %v2702, 64
      %v3665 = vpop.permute.xlu0 %3664
      %3666 = vrot.lane.b32.xlu0 %v2703, 64
      %v3667 = vpop.permute.xlu0 %3666
      %3668 = vrot.lane.b32.xlu0 %v2704, 64
      %v3669 = vpop.permute.xlu0 %3668
      %3670 = vrot.lane.b32.xlu0 %v2705, 64
      %v3671 = vpop.permute.xlu0 %3670
      %3672 = vrot.lane.b32.xlu0 %v2706, 64
      %v3673 = vpop.permute.xlu0 %3672
      %3674 = vrot.lane.b32.xlu0 %v2707, 64
      %v3675 = vpop.permute.xlu0 %3674
      %3676 = vrot.lane.b32.xlu0 %v2708, 64
      %v3677 = vpop.permute.xlu0 %3676
      %3678 = vrot.lane.b32.xlu0 %v2709, 64
      %v3679 = vpop.permute.xlu0 %3678
      %3680 = vrot.lane.b32.xlu0 %v2710, 64
      %v3681 = vpop.permute.xlu0 %3680
      %3682 = vrot.lane.b32.xlu0 %v2711, 64
      %v3683 = vpop.permute.xlu0 %3682
      %3684 = vrot.lane.b32.xlu0 %v2712, 64
      %v3685 = vpop.permute.xlu0 %3684
      %3686 = vrot.lane.b32.xlu0 %v2713, 64
      %v3687 = vpop.permute.xlu0 %3686
      %3688 = vrot.lane.b32.xlu0 %v2714, 64
      %v3689 = vpop.permute.xlu0 %3688
      %3690 = vrot.lane.b32.xlu0 %v2715, 64
      %v3691 = vpop.permute.xlu0 %3690
      %3692 = vrot.lane.b32.xlu0 %v2716, 64
      %v3693 = vpop.permute.xlu0 %3692
      %3694 = vrot.lane.b32.xlu0 %v2717, 64
      %v3695 = vpop.permute.xlu0 %3694
      %3696 = vrot.lane.b32.xlu0 %v2718, 64
      %v3697 = vpop.permute.xlu0 %3696
      %3698 = vrot.lane.b32.xlu0 %v2719, 64
      %v3699 = vpop.permute.xlu0 %3698
      %3700 = vrot.lane.b32.xlu0 %v2720, 64
      %v3701 = vpop.permute.xlu0 %3700
      %3702 = vrot.lane.b32.xlu0 %v2721, 64
      %v3703 = vpop.permute.xlu0 %3702
      %3704 = vrot.lane.b32.xlu0 %v2722, 64
      %v3705 = vpop.permute.xlu0 %3704
      %3706 = vrot.lane.b32.xlu0 %v2723, 64
      %v3707 = vpop.permute.xlu0 %3706
      %3708 = vrot.lane.b32.xlu0 %v2724, 64
      %v3709 = vpop.permute.xlu0 %3708
      %3710 = vrot.lane.b32.xlu0 %v2725, 64
      %v3711 = vpop.permute.xlu0 %3710
      %3712 = vrot.lane.b32.xlu0 %v2726, 64
      %v3713 = vpop.permute.xlu0 %3712
      %3714 = vrot.lane.b32.xlu0 %v2727, 64
      %v3715 = vpop.permute.xlu0 %3714
      %3716 = vrot.lane.b32.xlu0 %v2728, 64
      %v3717 = vpop.permute.xlu0 %3716
      %3718 = vrot.lane.b32.xlu0 %v2729, 64
      %v3719 = vpop.permute.xlu0 %3718
      %3720 = vrot.lane.b32.xlu0 %v2730, 64
      %v3721 = vpop.permute.xlu0 %3720
      %3722 = vrot.lane.b32.xlu0 %v2731, 64
      %v3723 = vpop.permute.xlu0 %3722
      %v3756 = vsel %vm1754, %v2443, %v2765
      %v3757 = vsel %vm1754, %v2444, %v2767
      %v3758 = vsel %vm1754, %v2445, %v2769
      %v3759 = vsel %vm1754, %v2446, %v2771
      %v3760 = vsel %vm1754, %v2447, %v2773
      %v3761 = vsel %vm1754, %v2448, %v2775
      %v3762 = vsel %vm1754, %v2449, %v2777
      %v3763 = vsel %vm1754, %v2450, %v2779
      %v3764 = vsel %vm1754, %v2451, %v2781
      %v3765 = vsel %vm1754, %v2452, %v2783
      %v3766 = vsel %vm1754, %v2453, %v2785
      %v3767 = vsel %vm1754, %v2454, %v2787
      %v3768 = vsel %vm1754, %v2455, %v2789
      %v3769 = vsel %vm1754, %v2456, %v2791
      %v3770 = vsel %vm1754, %v2457, %v2793
      %v3771 = vsel %vm1754, %v2458, %v2795
      %v3772 = vsel %vm1754, %v2459, %v2797
      %v3773 = vsel %vm1754, %v2460, %v2799
      %v3774 = vsel %vm1754, %v2461, %v2801
      %v3775 = vsel %vm1754, %v2462, %v2803
      %v3776 = vsel %vm1754, %v2463, %v2805
      %v3777 = vsel %vm1754, %v2464, %v2807
      %v3778 = vsel %vm1754, %v2465, %v2809
      %v3779 = vsel %vm1754, %v2466, %v2811
      %v3780 = vsel %vm1754, %v2467, %v2813
      %v3781 = vsel %vm1754, %v2468, %v2815
      %v3782 = vsel %vm1754, %v2469, %v2817
      %v3783 = vsel %vm1754, %v2470, %v2819
      %v3784 = vsel %vm1754, %v2471, %v2821
      %v3785 = vsel %vm1754, %v2472, %v2823
      %v3786 = vsel %vm1754, %v2473, %v2825
      %v3787 = vsel %vm1754, %v2474, %v2827
      %v3788 = vsel %vm1820, %v3756, %v2893
      %v3789 = vsel %vm1820, %v3757, %v2895
      %v3790 = vsel %vm1820, %v3758, %v2897
      %v3791 = vsel %vm1820, %v3759, %v2899
      %v3792 = vsel %vm1820, %v3760, %v2901
      %v3793 = vsel %vm1820, %v3761, %v2903
      %v3794 = vsel %vm1820, %v3762, %v2905
      %v3795 = vsel %vm1820, %v3763, %v2907
      %v3796 = vsel %vm1820, %v3764, %v2909
      %v3797 = vsel %vm1820, %v3765, %v2911
      %v3798 = vsel %vm1820, %v3766, %v2913
      %v3799 = vsel %vm1820, %v3767, %v2915
      %v3800 = vsel %vm1820, %v3768, %v2917
      %v3801 = vsel %vm1820, %v3769, %v2919
      %v3802 = vsel %vm1820, %v3770, %v2921
      %v3803 = vsel %vm1820, %v3771, %v2923
      %v3804 = vsel %vm1820, %v3772, %v2925
      %v3805 = vsel %vm1820, %v3773, %v2927
      %v3806 = vsel %vm1820, %v3774, %v2929
      %v3807 = vsel %vm1820, %v3775, %v2931
      %v3808 = vsel %vm1820, %v3776, %v2933
      %v3809 = vsel %vm1820, %v3777, %v2935
      %v3810 = vsel %vm1820, %v3778, %v2937
      %v3811 = vsel %vm1820, %v3779, %v2939
      %v3812 = vsel %vm1820, %v3780, %v2941
      %v3813 = vsel %vm1820, %v3781, %v2943
      %v3814 = vsel %vm1820, %v3782, %v2945
      %v3815 = vsel %vm1820, %v3783, %v2947
      %v3816 = vsel %vm1820, %v3784, %v2949
      %v3817 = vsel %vm1820, %v3785, %v2951
      %v3818 = vsel %vm1820, %v3786, %v2953
      %v3819 = vsel %vm1820, %v3787, %v2955
      %v3820 = vsel %vm1886, %v3788, %v3021
      %v3821 = vsel %vm1886, %v3789, %v3023
      %v3822 = vsel %vm1886, %v3790, %v3025
      %v3823 = vsel %vm1886, %v3791, %v3027
      %v3824 = vsel %vm1886, %v3792, %v3029
      %v3825 = vsel %vm1886, %v3793, %v3031
      %v3826 = vsel %vm1886, %v3794, %v3033
      %v3827 = vsel %vm1886, %v3795, %v3035
      %v3828 = vsel %vm1886, %v3796, %v3037
      %v3829 = vsel %vm1886, %v3797, %v3039
      %v3830 = vsel %vm1886, %v3798, %v3041
      %v3831 = vsel %vm1886, %v3799, %v3043
      %v3832 = vsel %vm1886, %v3800, %v3045
      %v3833 = vsel %vm1886, %v3801, %v3047
      %v3834 = vsel %vm1886, %v3802, %v3049
      %v3835 = vsel %vm1886, %v3803, %v3051
      %v3836 = vsel %vm1886, %v3804, %v3053
      %v3837 = vsel %vm1886, %v3805, %v3055
      %v3838 = vsel %vm1886, %v3806, %v3057
      %v3839 = vsel %vm1886, %v3807, %v3059
      %v3840 = vsel %vm1886, %v3808, %v3061
      %v3841 = vsel %vm1886, %v3809, %v3063
      %v3842 = vsel %vm1886, %v3810, %v3065
      %v3843 = vsel %vm1886, %v3811, %v3067
      %v3844 = vsel %vm1886, %v3812, %v3069
      %v3845 = vsel %vm1886, %v3813, %v3071
      %v3846 = vsel %vm1886, %v3814, %v3073
      %v3847 = vsel %vm1886, %v3815, %v3075
      %v3848 = vsel %vm1886, %v3816, %v3077
      %v3849 = vsel %vm1886, %v3817, %v3079
      %v3850 = vsel %vm1886, %v3818, %v3081
      %v3851 = vsel %vm1886, %v3819, %v3083
      %v3852 = vsel %vm1952, %v3820, %v3149
      %v3853 = vsel %vm1952, %v3821, %v3151
      %v3854 = vsel %vm1952, %v3822, %v3153
      %v3855 = vsel %vm1952, %v3823, %v3155
      %v3856 = vsel %vm1952, %v3824, %v3157
      %v3857 = vsel %vm1952, %v3825, %v3159
      %v3858 = vsel %vm1952, %v3826, %v3161
      %v3859 = vsel %vm1952, %v3827, %v3163
      %v3860 = vsel %vm1952, %v3828, %v3165
      %v3861 = vsel %vm1952, %v3829, %v3167
      %v3862 = vsel %vm1952, %v3830, %v3169
      %v3863 = vsel %vm1952, %v3831, %v3171
      %v3864 = vsel %vm1952, %v3832, %v3173
      %v3865 = vsel %vm1952, %v3833, %v3175
      %v3866 = vsel %vm1952, %v3834, %v3177
      %v3867 = vsel %vm1952, %v3835, %v3179
      %v3868 = vsel %vm1952, %v3836, %v3181
      %v3869 = vsel %vm1952, %v3837, %v3183
      %v3870 = vsel %vm1952, %v3838, %v3185
      %v3871 = vsel %vm1952, %v3839, %v3187
      %v3872 = vsel %vm1952, %v3840, %v3189
      %v3873 = vsel %vm1952, %v3841, %v3191
      %v3874 = vsel %vm1952, %v3842, %v3193
      %v3875 = vsel %vm1952, %v3843, %v3195
      %v3876 = vsel %vm1952, %v3844, %v3197
      %v3877 = vsel %vm1952, %v3845, %v3199
      %v3878 = vsel %vm1952, %v3846, %v3201
      %v3879 = vsel %vm1952, %v3847, %v3203
      %v3880 = vsel %vm1952, %v3848, %v3205
      %v3881 = vsel %vm1952, %v3849, %v3207
      %v3882 = vsel %vm1952, %v3850, %v3209
      %v3883 = vsel %vm1952, %v3851, %v3211
      %vm3884 = vcmask 326656
      %v3885 = vsel %vm3884, %v3852, %v3277
      %v3886 = vsel %vm3884, %v3853, %v3279
      %v3887 = vsel %vm3884, %v3854, %v3281
      %v3888 = vsel %vm3884, %v3855, %v3283
      %v3889 = vsel %vm3884, %v3856, %v3285
      %v3890 = vsel %vm3884, %v3857, %v3287
      %v3891 = vsel %vm3884, %v3858, %v3289
      %v3892 = vsel %vm3884, %v3859, %v3291
      %v3893 = vsel %vm3884, %v3860, %v3293
      %v3894 = vsel %vm3884, %v3861, %v3295
      %v3895 = vsel %vm3884, %v3862, %v3297
      %v3896 = vsel %vm3884, %v3863, %v3299
      %v3897 = vsel %vm3884, %v3864, %v3301
      %v3898 = vsel %vm3884, %v3865, %v3303
      %v3899 = vsel %vm3884, %v3866, %v3305
      %v3900 = vsel %vm3884, %v3867, %v3307
      %v3901 = vsel %vm3884, %v3868, %v3309
      %v3902 = vsel %vm3884, %v3869, %v3311
      %v3903 = vsel %vm3884, %v3870, %v3313
      %v3904 = vsel %vm3884, %v3871, %v3315
      %v3905 = vsel %vm3884, %v3872, %v3317
      %v3906 = vsel %vm3884, %v3873, %v3319
      %v3907 = vsel %vm3884, %v3874, %v3321
      %v3908 = vsel %vm3884, %v3875, %v3323
      %v3909 = vsel %vm3884, %v3876, %v3325
      %v3910 = vsel %vm3884, %v3877, %v3327
      %v3911 = vsel %vm3884, %v3878, %v3329
      %v3912 = vsel %vm3884, %v3879, %v3331
      %v3913 = vsel %vm3884, %v3880, %v3333
      %v3914 = vsel %vm3884, %v3881, %v3335
      %v3915 = vsel %vm3884, %v3882, %v3337
      %v3916 = vsel %vm3884, %v3883, %v3339
      %vm3917 = vcmask 392192
      %v3918 = vsel %vm3917, %v3885, %v3405
      %v3919 = vsel %vm3917, %v3886, %v3407
      %v3920 = vsel %vm3917, %v3887, %v3409
      %v3921 = vsel %vm3917, %v3888, %v3411
      %v3922 = vsel %vm3917, %v3889, %v3413
      %v3923 = vsel %vm3917, %v3890, %v3415
      %v3924 = vsel %vm3917, %v3891, %v3417
      %v3925 = vsel %vm3917, %v3892, %v3419
      %v3926 = vsel %vm3917, %v3893, %v3421
      %v3927 = vsel %vm3917, %v3894, %v3423
      %v3928 = vsel %vm3917, %v3895, %v3425
      %v3929 = vsel %vm3917, %v3896, %v3427
      %v3930 = vsel %vm3917, %v3897, %v3429
      %v3931 = vsel %vm3917, %v3898, %v3431
      %v3932 = vsel %vm3917, %v3899, %v3433
      %v3933 = vsel %vm3917, %v3900, %v3435
      %v3934 = vsel %vm3917, %v3901, %v3437
      %v3935 = vsel %vm3917, %v3902, %v3439
      %v3936 = vsel %vm3917, %v3903, %v3441
      %v3937 = vsel %vm3917, %v3904, %v3443
      %v3938 = vsel %vm3917, %v3905, %v3445
      %v3939 = vsel %vm3917, %v3906, %v3447
      %v3940 = vsel %vm3917, %v3907, %v3449
      %v3941 = vsel %vm3917, %v3908, %v3451
      %v3942 = vsel %vm3917, %v3909, %v3453
      %v3943 = vsel %vm3917, %v3910, %v3455
      %v3944 = vsel %vm3917, %v3911, %v3457
      %v3945 = vsel %vm3917, %v3912, %v3459
      %v3946 = vsel %vm3917, %v3913, %v3461
      %v3947 = vsel %vm3917, %v3914, %v3463
      %v3948 = vsel %vm3917, %v3915, %v3465
      %v3949 = vsel %vm3917, %v3916, %v3467
      %vm3950 = vcmask 457728
      %v3951 = vsel %vm3950, %v3918, %v3533
      %v3952 = vsel %vm3950, %v3919, %v3535
      %v3953 = vsel %vm3950, %v3920, %v3537
      %v3954 = vsel %vm3950, %v3921, %v3539
      %v3955 = vsel %vm3950, %v3922, %v3541
      %v3956 = vsel %vm3950, %v3923, %v3543
      %v3957 = vsel %vm3950, %v3924, %v3545
      %v3958 = vsel %vm3950, %v3925, %v3547
      %v3959 = vsel %vm3950, %v3926, %v3549
      %v3960 = vsel %vm3950, %v3927, %v3551
      %v3961 = vsel %vm3950, %v3928, %v3553
      %v3962 = vsel %vm3950, %v3929, %v3555
      %v3963 = vsel %vm3950, %v3930, %v3557
      %v3964 = vsel %vm3950, %v3931, %v3559
      %v3965 = vsel %vm3950, %v3932, %v3561
      %v3966 = vsel %vm3950, %v3933, %v3563
      %v3967 = vsel %vm3950, %v3934, %v3565
      %v3968 = vsel %vm3950, %v3935, %v3567
      %v3969 = vsel %vm3950, %v3936, %v3569
      %v3970 = vsel %vm3950, %v3937, %v3571
      %v3971 = vsel %vm3950, %v3938, %v3573
      %v3972 = vsel %vm3950, %v3939, %v3575
      %v3973 = vsel %vm3950, %v3940, %v3577
      %v3974 = vsel %vm3950, %v3941, %v3579
      %v3975 = vsel %vm3950, %v3942, %v3581
      %v3976 = vsel %vm3950, %v3943, %v3583
      %v3977 = vsel %vm3950, %v3944, %v3585
      %v3978 = vsel %vm3950, %v3945, %v3587
      %v3979 = vsel %vm3950, %v3946, %v3589
      %v3980 = vsel %vm3950, %v3947, %v3591
      %v3981 = vsel %vm3950, %v3948, %v3593
      %v3982 = vsel %vm3950, %v3949, %v3595
      %vm3983 = vcmask 523264
      %v3984 = vsel %vm3983, %v3951, %v3661
      %v3985 = vsel %vm3983, %v3952, %v3663
      %v3986 = vsel %vm3983, %v3953, %v3665
      %v3987 = vsel %vm3983, %v3954, %v3667
      %v3988 = vsel %vm3983, %v3955, %v3669
      %v3989 = vsel %vm3983, %v3956, %v3671
      %v3990 = vsel %vm3983, %v3957, %v3673
      %v3991 = vsel %vm3983, %v3958, %v3675
      %v3992 = vsel %vm3983, %v3959, %v3677
      %v3993 = vsel %vm3983, %v3960, %v3679
      %v3994 = vsel %vm3983, %v3961, %v3681
      %v3995 = vsel %vm3983, %v3962, %v3683
      %v3996 = vsel %vm3983, %v3963, %v3685
      %v3997 = vsel %vm3983, %v3964, %v3687
      %v3998 = vsel %vm3983, %v3965, %v3689
      %v3999 = vsel %vm3983, %v3966, %v3691
      %v4000 = vsel %vm3983, %v3967, %v3693
      %v4001 = vsel %vm3983, %v3968, %v3695
      %v4002 = vsel %vm3983, %v3969, %v3697
      %v4003 = vsel %vm3983, %v3970, %v3699
      %v4004 = vsel %vm3983, %v3971, %v3701
      %v4005 = vsel %vm3983, %v3972, %v3703
      %v4006 = vsel %vm3983, %v3973, %v3705
      %v4007 = vsel %vm3983, %v3974, %v3707
      %v4008 = vsel %vm3983, %v3975, %v3709
      %v4009 = vsel %vm3983, %v3976, %v3711
      %v4010 = vsel %vm3983, %v3977, %v3713
      %v4011 = vsel %vm3983, %v3978, %v3715
      %v4012 = vsel %vm3983, %v3979, %v3717
      %v4013 = vsel %vm3983, %v3980, %v3719
      %v4014 = vsel %vm3983, %v3981, %v3721
      %v4015 = vsel %vm3983, %v3982, %v3723
      %v4016 = vld [vmem:[%s3] sm:$0xff]
      %v4017 = vld [vmem:[%s4] sm:$0xff]
      %4019 = vset.pattern.permute.xlu0 0
      %4020 = vperm.xlu0 %4019, %v4017
      %v4021 = vpop.permute.xlu0 %4020
      %vm4023 = vcmask 588800
      %v4025 = vsel %vm4023, %v4016, 0
      %v4028 = vsel %vm4023, %v3984, 0
      %v4031 = vsel %vm4023, %v3985, 0
      %v4034 = vsel %vm4023, %v3986, 0
      %v4037 = vsel %vm4023, %v3987, 0
      %v4040 = vsel %vm4023, %v3988, 0
      %v4043 = vsel %vm4023, %v3989, 0
      %v4046 = vsel %vm4023, %v3990, 0
      %v4049 = vsel %vm4023, %v3991, 0
      %v4052 = vsel %vm4023, %v3992, 0
      %v4055 = vsel %vm4023, %v3993, 0
      %v4058 = vsel %vm4023, %v3994, 0
      %v4061 = vsel %vm4023, %v3995, 0
      %v4064 = vsel %vm4023, %v3996, 0
      %v4067 = vsel %vm4023, %v3997, 0
      %v4070 = vsel %vm4023, %v3998, 0
      %v4073 = vsel %vm4023, %v3999, 0
      %v4076 = vsel %vm4023, %v4000, 0
      %v4079 = vsel %vm4023, %v4001, 0
      %v4082 = vsel %vm4023, %v4002, 0
      %v4085 = vsel %vm4023, %v4003, 0
      %v4088 = vsel %vm4023, %v4004, 0
      %v4091 = vsel %vm4023, %v4005, 0
      %v4094 = vsel %vm4023, %v4006, 0
      %v4097 = vsel %vm4023, %v4007, 0
      %v4100 = vsel %vm4023, %v4008, 0
      %v4103 = vsel %vm4023, %v4009, 0
      %v4106 = vsel %vm4023, %v4010, 0
      %v4109 = vsel %vm4023, %v4011, 0
      %v4112 = vsel %vm4023, %v4012, 0
      %v4115 = vsel %vm4023, %v4013, 0
      %v4118 = vsel %vm4023, %v4014, 0
      %v4121 = vsel %vm4023, %v4015, 0
      %4123 = vmatprep.subr.mxu0 0.0
      %4124 = vmatpush1.xpose.msra.mxu0 %v4028
      %4125 = vmatprep.subr.mxu0 0.0
      %4126 = vmatpush1.xpose.msra.mxu0 %v4031
      %4127 = vmatprep.subr.mxu0 0.0
      %4128 = vmatpush1.xpose.msra.mxu0 %v4034
      %4129 = vmatprep.subr.mxu0 0.0
      %4130 = vmatpush1.xpose.msra.mxu0 %v4037
      %4131 = vmatprep.subr.mxu0 0.0
      %4132 = vmatpush1.xpose.msra.mxu0 %v4040
      %4133 = vmatprep.subr.mxu0 0.0
      %4134 = vmatpush1.xpose.msra.mxu0 %v4043
      %4135 = vmatprep.subr.mxu0 0.0
      %4136 = vmatpush1.xpose.msra.mxu0 %v4046
      %4137 = vmatprep.subr.mxu0 0.0
      %4138 = vmatpush1.xpose.msra.mxu0 %v4049
      %4139 = vmatprep.subr.mxu0 0.0
      %4140 = vmatpush1.xpose.msra.mxu0 %v4052
      %4141 = vmatprep.subr.mxu0 0.0
      %4142 = vmatpush1.xpose.msra.mxu0 %v4055
      %4143 = vmatprep.subr.mxu0 0.0
      %4144 = vmatpush1.xpose.msra.mxu0 %v4058
      %4145 = vmatprep.subr.mxu0 0.0
      %4146 = vmatpush1.xpose.msra.mxu0 %v4061
      %4147 = vmatprep.subr.mxu0 0.0
      %4148 = vmatpush1.xpose.msra.mxu0 %v4064
      %4149 = vmatprep.subr.mxu0 0.0
      %4150 = vmatpush1.xpose.msra.mxu0 %v4067
      %4151 = vmatprep.subr.mxu0 0.0
      %4152 = vmatpush1.xpose.msra.mxu0 %v4070
      %4153 = vmatprep.subr.mxu0 0.0
      %4154 = vmatpush1.xpose.msra.mxu0 %v4073
      %4155 = vmatprep.subr.mxu0 0.0
      %4156 = vmatpush1.xpose.msra.mxu0 %v4076
      %4157 = vmatprep.subr.mxu0 0.0
      %4158 = vmatpush1.xpose.msra.mxu0 %v4079
      %4159 = vmatprep.subr.mxu0 0.0
      %4160 = vmatpush1.xpose.msra.mxu0 %v4082
      %4161 = vmatprep.subr.mxu0 0.0
      %4162 = vmatpush1.xpose.msra.mxu0 %v4085
      %4163 = vmatprep.subr.mxu0 0.0
      %4164 = vmatpush1.xpose.msra.mxu0 %v4088
      %4165 = vmatprep.subr.mxu0 0.0
      %4166 = vmatpush1.xpose.msra.mxu0 %v4091
      %4167 = vmatprep.subr.mxu0 0.0
      %4168 = vmatpush1.xpose.msra.mxu0 %v4094
      %4169 = vmatprep.subr.mxu0 0.0
      %4170 = vmatpush1.xpose.msra.mxu0 %v4097
      %4171 = vmatprep.subr.mxu0 0.0
      %4172 = vmatpush1.xpose.msra.mxu0 %v4100
      %4173 = vmatprep.subr.mxu0 0.0
      %4174 = vmatpush1.xpose.msra.mxu0 %v4103
      %4175 = vmatprep.subr.mxu0 0.0
      %4176 = vmatpush1.xpose.msra.mxu0 %v4106
      %4177 = vmatprep.subr.mxu0 0.0
      %4178 = vmatpush1.xpose.msra.mxu0 %v4109
      %4179 = vmatprep.subr.mxu0 0.0
      %4180 = vmatpush1.xpose.msra.mxu0 %v4112
      %4181 = vmatprep.subr.mxu0 0.0
      %4182 = vmatpush1.xpose.msra.mxu0 %v4115
      %4183 = vmatprep.subr.mxu0 0.0
      %4184 = vmatpush1.xpose.msra.mxu0 %v4118
      %4185 = vmatprep.subr.mxu0 0.0
      %4186 = vmatpush1.xpose.msra.mxu0 %v4121
      %4187 = vmatprep.mubr.f32.mxu0 0.0
      %4188 = vmatmul.mubr.f32.gmra.mrb[0].mxu0 %v4025
      %v4189 = vpop.f32.mrb[0].mxu0
      %v4190 = vadd.f32 %v4021, %v4189
      %v4191 = vpop.f32.mrb[0].mxu0
      %v4192 = vadd.f32 %v4021, %v4191
      %4193 = vdwg.mxu0
      %v4194 = vld [vmem:[%s5] sm:$0xff]
      %v4196 = vsel %vm320, %v4194, 0
      %v4198 = vsel %vm2094, %v252, 0
      %v4200 = vsel %vm2094, %v254, 0
      %4202 = vmatprep.subr.mxu0 %v4200
      %4203 = vmatpush1.msra.mxu0 %v4198
      %4204 = vmatprep.subr.mxu0 0.0
      %4205 = vmatpush1.msra.mxu0 0.0
      %4206 = vmatprep.subr.mxu0 0.0
      %4207 = vmatpush1.msra.mxu0 0.0
      %4208 = vmatprep.subr.mxu0 0.0
      %4209 = vmatpush1.msra.mxu0 0.0
      %4210 = vmatprep.subr.mxu0 0.0
      %4211 = vmatpush1.msra.mxu0 0.0
      %4212 = vmatprep.subr.mxu0 0.0
      %4213 = vmatpush1.msra.mxu0 0.0
      %4214 = vmatprep.subr.mxu0 0.0
      %4215 = vmatpush1.msra.mxu0 0.0
      %4216 = vmatprep.subr.mxu0 0.0
      %4217 = vmatpush1.msra.mxu0 0.0
      %4218 = vmatprep.subr.mxu0 0.0
      %4219 = vmatpush1.msra.mxu0 0.0
      %4220 = vmatprep.subr.mxu0 0.0
      %4221 = vmatpush1.msra.mxu0 0.0
      %4222 = vmatprep.subr.mxu0 0.0
      %4223 = vmatpush1.msra.mxu0 0.0
      %4224 = vmatprep.subr.mxu0 0.0
      %4225 = vmatpush1.msra.mxu0 0.0
      %4226 = vmatprep.subr.mxu0 0.0
      %4227 = vmatpush1.msra.mxu0 0.0
      %4228 = vmatprep.subr.mxu0 0.0
      %4229 = vmatpush1.msra.mxu0 0.0
      %4230 = vmatprep.subr.mxu0 0.0
      %4231 = vmatpush1.msra.mxu0 0.0
      %4232 = vmatprep.subr.mxu0 0.0
      %4233 = vmatpush1.msra.mxu0 0.0
      %4234 = vmatprep.subr.mxu0 0.0
      %4235 = vmatpush1.msra.mxu0 0.0
      %4236 = vmatprep.subr.mxu0 0.0
      %4237 = vmatpush1.msra.mxu0 0.0
      %4238 = vmatprep.subr.mxu0 0.0
      %4239 = vmatpush1.msra.mxu0 0.0
      %4240 = vmatprep.subr.mxu0 0.0
      %4241 = vmatpush1.msra.mxu0 0.0
      %4242 = vmatprep.subr.mxu0 0.0
      %4243 = vmatpush1.msra.mxu0 0.0
      %4244 = vmatprep.subr.mxu0 0.0
      %4245 = vmatpush1.msra.mxu0 0.0
      %4246 = vmatprep.subr.mxu0 0.0
      %4247 = vmatpush1.msra.mxu0 0.0
      %4248 = vmatprep.subr.mxu0 0.0
      %4249 = vmatpush1.msra.mxu0 0.0
      %4250 = vmatprep.subr.mxu0 0.0
      %4251 = vmatpush1.msra.mxu0 0.0
      %4252 = vmatprep.subr.mxu0 0.0
      %4253 = vmatpush1.msra.mxu0 0.0
      %4254 = vmatprep.subr.mxu0 0.0
      %4255 = vmatpush1.msra.mxu0 0.0
      %4256 = vmatprep.subr.mxu0 0.0
      %4257 = vmatpush1.msra.mxu0 0.0
      %4258 = vmatprep.subr.mxu0 0.0
      %4259 = vmatpush1.msra.mxu0 0.0
      %4260 = vmatprep.subr.mxu0 0.0
      %4261 = vmatpush1.msra.mxu0 0.0
      %4262 = vmatprep.subr.mxu0 0.0
      %4263 = vmatpush1.msra.mxu0 0.0
      %4264 = vmatprep.subr.mxu0 0.0
      %4265 = vmatpush1.msra.mxu0 0.0
      %4266 = vmatprep.mubr.f32.mxu0 0.0
      %4267 = vmatmul.mubr.f32.gmra.mrb[0].mxu0 %v4196
      %v4268 = vpop.f32.mrb[0].mxu0
      %v4269 = vadd.f32 0.0, %v4268
      %v4270 = vpop.f32.mrb[0].mxu0
      %v4271 = vadd.f32 0.0, %v4270
      %4272 = vdwg.mxu0
      %v4273 = vadd.f32 %v4190, %v4269
      %v4274 = vadd.f32 %v4192, %v4271
      %v4275 = vmax.f32 %v4273, 0.0
      %v4276 = vmax.f32 %v4274, 0.0
      %4277 = vst [vmem:[%s251] sm:$0xff] %v4275
      %4278 = vst [vmem:[%s251 + $0x8] sm:$0xff] %v4276
      %p4279 = scmp.lt.s32.totalorder %s17, 1
      %s4280 = scalar_select %p4279, %s17, 1
      %s4281 = smul.addr %s4280, 2
      %s4282 = smul.addr %s4281, 8
      %s4283 = scalar_lea.vmem %s6, %s4282
      // Predicated region
      $region45: #{_lambda_.1} parent=43 // pred_check
        %p4284 = pneg %p166
      $region46: #{_lambda_.1} parent=43 // pred_check_branch
        %4286 = sbr.rel (%p4284) target = $region48
      $region47: #{_lambda_.1} parent=43 // pred_region
        _
      $region48: #{_lambda_.1} parent=43 // pred_fallthru
        _
    $region44: #{_lambda_.1} parent=5 // pred_fallthru
      _
    %p4287 = scmp.le.s32.totalorder 2, %s12
    // Predicated region
    $region49: #{_lambda_.1} parent=5 // pred_check
      %p4288 = pneg %p4287
    $region50: #{_lambda_.1} parent=5 // pred_check_branch
      %4290 = sbr.rel (%p4288) target = $region52
    $region51: #{_lambda_.1} parent=5 // pred_region
      %s4291 = ssub.s32 %s12, 2
      // Predicated region
      $region53: #{_lambda_.1} parent=51 // pred_check
        %p4292 = pneg %p172
      $region54: #{_lambda_.1} parent=51 // pred_check_branch
        %4294 = sbr.rel (%p4292) target = $region56
      $region55: #{_lambda_.1} parent=51 // pred_region
        %p4295 = scmp.lt.s32.totalorder %s18, 1
        %s4296 = scalar_select %p4295, %s18, 1
        %s4297 = smul.addr %s4296, 2
        %s4298 = smul.addr %s4297, 8
        %s4299 = scalar_lea.vmem %s6, %s4298
      $region56: #{_lambda_.1} parent=51 // pred_fallthru
        _
    $region52: #{_lambda_.1} parent=5 // pred_fallthru
      _
  $region6: #{_lambda_.1} parent=0 // loop_footer
    %s16 = sadd.s32 1, %s12
  $region7: #{_lambda_.1} parent=0 // loop_footer_branch
    %11 = sbr.rel target = $region3
  $region8: #{_lambda_.1} parent=0 // loop_exit
    _

</llo_original>
